<compile_context>
chip_gen: v6e
topology: v6e:2x2x1
jax: 0.10.0
libtpu: 0.0.40
codegen_flags: <defaults>
</compile_context>

<pallas_src>
import math

import numpy as np
import jax
import jax.numpy as jnp
from jax import lax
from jax.experimental import pallas as pl
from jax.experimental.pallas import tpu as pltpu

# ----------------- small synthetic config -----------------
VOCAB    = 100
B, S     = 2, 8
D_MODEL  = 32
N_HEADS  = 2
D_HEAD   = D_MODEL // N_HEADS
D_FF     = 4 * D_MODEL
N_LAYERS = 2
N_NODE   = 4          # node_out = Linear(d_model, n_node)
N_EDGE   = 3          # edge_out = Linear(2*d_model, n_edge)
LN_EPS   = 1e-5
LANE     = 128        # lane-dense output width


def _vmem_spec():
    return pl.BlockSpec(memory_space=pltpu.MemorySpace.VMEM)


# ----------------- in-kernel helpers (values, not refs) -----------------
def _gelu(x):
    # TODO(synk): tanh-approx GELU; HF RoBERTa default is exact erf form.
    c = math.sqrt(2.0 / math.pi)
    return 0.5 * x * (1.0 + jnp.tanh(c * (x + 0.044715 * x * x * x)))


def _layernorm(x, g, b):
    # single-pass: sum and sum-of-squares reduced independently
    inv_d = 1.0 / x.shape[-1]
    s1 = jnp.sum(x, axis=-1, keepdims=True)
    s2 = jnp.sum(x * x, axis=-1, keepdims=True)
    mu = s1 * inv_d
    var = s2 * inv_d - mu * mu
    return (x - mu) * lax.rsqrt(var + LN_EPS) * g + b


def _softmax_rows(s):
    m = jnp.max(s, axis=-1, keepdims=True)
    p = jnp.exp(s - m)
    return p * pl.reciprocal(jnp.sum(p, axis=-1, keepdims=True), approx=True)


# ----------------- single fused kernel: whole forward pass -----------------
def fused_model_kernel(
    x_ref, emb_g_ref, emb_b_ref,
    wq_ref, wk_ref, wv_ref, bq_ref, bk_ref, bv_ref, wo_ref, bo_ref,
    ln1_g_ref, ln1_b_ref, w1_ref, b1_ref, w2_ref, b2_ref, ln2_g_ref, ln2_b_ref,
    pool_node_ref, pool_e0_ref, pool_e1_ref,
    node_w_ref, node_b_ref, edge_w0_ref, edge_w1_ref, edge_b_ref,
    node_o_ref, edge_o_ref,
):
    scale = 1.0 / math.sqrt(D_HEAD)
    bf16 = jnp.bfloat16

    # ---- embedding LayerNorm ----
    x = _layernorm(x_ref[...], emb_g_ref[...], emb_b_ref[...])          # (B*S, D) f32

    # ---- transformer layers (Python-unrolled, weights stay in VMEM) ----
    # TODO(synk): no attention_mask (matches a full-length, unpadded batch).
    for l in range(N_LAYERS):
        x_bf = x.astype(bf16)
        attn = None
        for h in range(N_HEADS):
            # per-head projections via leading-axis indexing: no lane slicing
            q = jnp.dot(x_bf, wq_ref[l, h],
                        preferred_element_type=jnp.float32) + bq_ref[l, h]
            k = jnp.dot(x_bf, wk_ref[l, h],
                        preferred_element_type=jnp.float32) + bk_ref[l, h]
            v = jnp.dot(x_bf, wv_ref[l, h],
                        preferred_element_type=jnp.float32) + bv_ref[l, h]

            # batched attention over the batch dim (tile-aligned reshapes only)
            q3 = q.reshape(B, S, D_HEAD).astype(bf16)
            k3 = k.reshape(B, S, D_HEAD).astype(bf16)
            v3 = v.reshape(B, S, D_HEAD).astype(bf16)
            s = jnp.einsum('bqe,bke->bqk', q3, k3,
                           preferred_element_type=jnp.float32) * scale   # (B,S,S)
            p = _softmax_rows(s)
            ctx = jnp.einsum('bqk,bke->bqe', p.astype(bf16), v3,
                             preferred_element_type=jnp.float32)          # (B,S,Dh)

            # combine heads by summing per-head output projections (no concat)
            h_out = jnp.dot(ctx.reshape(B * S, D_HEAD).astype(bf16), wo_ref[l, h],
                            preferred_element_type=jnp.float32)           # (B*S, D)
            attn = h_out if attn is None else attn + h_out
        attn = attn + bo_ref[l]
        x = _layernorm(attn + x, ln1_g_ref[l], ln1_b_ref[l])

        # feed-forward + residual + LN (elementwise math stays f32)
        x_bf = x.astype(bf16)
        hid = _gelu(jnp.dot(x_bf, w1_ref[l],
                            preferred_element_type=jnp.float32) + b1_ref[l])
        hid = jnp.dot(hid.astype(bf16), w2_ref[l],
                      preferred_element_type=jnp.float32) + b2_ref[l]
        x = _layernorm(hid + x, ln2_g_ref[l], ln2_b_ref[l])

    # ---- span mean-pooling + node/edge heads (epilogue, f32) ----
    # Block-diagonal pooling matrices: pooled row = mean over the token-index
    # list (exactly torch.mean(raw_logits[b, idx, :], dim=0)); padded rows are
    # all-zero, matching pad_sequence -> Linear -> tanh*5 semantics.
    node_pooled = jnp.dot(pool_node_ref[...], x,
                          preferred_element_type=jnp.float32)             # (B*Nn, D)
    e0 = jnp.dot(pool_e0_ref[...], x, preferred_element_type=jnp.float32) # (B*Ne, D)
    e1 = jnp.dot(pool_e1_ref[...], x, preferred_element_type=jnp.float32) # (B*Ne, D)

    # edge Linear is split into its two D-wide halves: no (Ne, 2D) concat.
    node_logits = jnp.dot(node_pooled, node_w_ref[...],
                          preferred_element_type=jnp.float32) + node_b_ref[...]
    edge_logits = (jnp.dot(e0, edge_w0_ref[...], preferred_element_type=jnp.float32)
                   + jnp.dot(e1, edge_w1_ref[...], preferred_element_type=jnp.float32)
                   + edge_b_ref[...])

    # lane-dense (128-wide) single-write outputs; host slices off padding.
    node_o_ref[...] = (jnp.tanh(node_logits) * 5.0).astype(node_o_ref.dtype)
    edge_o_ref[...] = (jnp.tanh(edge_logits) * 5.0).astype(edge_o_ref.dtype)


# ----------------- parameters (deterministic) -----------------
def _lane_pad(w, width=LANE):
    pad = width - w.shape[-1]
    return jnp.pad(w, [(0, 0)] * (w.ndim - 1) + [(0, pad)])


def init_params(key):
    keys = iter(jax.random.split(key, 64))

    def nrm(shape, scale=0.02):
        return scale * jax.random.normal(next(keys), shape, dtype=jnp.float32)

    bf16 = jnp.bfloat16
    return {
        "tok_emb": nrm((VOCAB, D_MODEL)),
        "pos_emb": nrm((S, D_MODEL)),
        "emb_ln_g": jnp.ones((1, D_MODEL), jnp.float32),
        "emb_ln_b": jnp.zeros((1, D_MODEL), jnp.float32),
        # per-layer, per-head attention weights (bf16 matmul operands)
        "wq": nrm((N_LAYERS, N_HEADS, D_MODEL, D_HEAD)).astype(bf16),
        "wk": nrm((N_LAYERS, N_HEADS, D_MODEL, D_HEAD)).astype(bf16),
        "wv": nrm((N_LAYERS, N_HEADS, D_MODEL, D_HEAD)).astype(bf16),
        "bq": jnp.zeros((N_LAYERS, N_HEADS, 1, D_HEAD), jnp.float32),
        "bk": jnp.zeros((N_LAYERS, N_HEADS, 1, D_HEAD), jnp.float32),
        "bv": jnp.zeros((N_LAYERS, N_HEADS, 1, D_HEAD), jnp.float32),
        "wo": nrm((N_LAYERS, N_HEADS, D_HEAD, D_MODEL)).astype(bf16),
        "bo": jnp.zeros((N_LAYERS, 1, D_MODEL), jnp.float32),
        "ln1_g": jnp.ones((N_LAYERS, 1, D_MODEL), jnp.float32),
        "ln1_b": jnp.zeros((N_LAYERS, 1, D_MODEL), jnp.float32),
        "w1": nrm((N_LAYERS, D_MODEL, D_FF)).astype(bf16),
        "b1": jnp.zeros((N_LAYERS, 1, D_FF), jnp.float32),
        "w2": nrm((N_LAYERS, D_FF, D_MODEL)).astype(bf16),
        "b2": jnp.zeros((N_LAYERS, 1, D_MODEL), jnp.float32),
        "ln2_g": jnp.ones((N_LAYERS, 1, D_MODEL), jnp.float32),
        "ln2_b": jnp.zeros((N_LAYERS, 1, D_MODEL), jnp.float32),
        # prediction heads, zero-padded to 128 output lanes (lane-dense stores)
        "node_w": _lane_pad(nrm((D_MODEL, N_NODE))),
        "node_b": jnp.zeros((1, LANE), jnp.float32),
        "edge_w0": _lane_pad(nrm((D_MODEL, N_EDGE))),   # first  half of Linear(2D, n_edge)
        "edge_w1": _lane_pad(nrm((D_MODEL, N_EDGE))),   # second half of Linear(2D, n_edge)
        "edge_b": jnp.zeros((1, LANE), jnp.float32),
    }


# ----------------- model forward (single pallas_call) -----------------
def pretrained_model_forward(input_ids, pools, params, n_node_max, n_edge_max):
    # TODO(synk): at real dims move the embedding gather in-kernel via
    # PrefetchScalarGridSpec + pl.Element row-gather; here plain-JAX glue is fine.
    x = params["tok_emb"][input_ids] + params["pos_emb"][None, :, :]    # (B, S, D)
    x = x.reshape(B * S, D_MODEL).astype(jnp.float32)

    pool_node, pool_e0, pool_e1 = pools

    args = (x, params["emb_ln_g"], params["emb_ln_b"],
            params["wq"], params["wk"], params["wv"],
            params["bq"], params["bk"], params["bv"],
            params["wo"], params["bo"],
            params["ln1_g"], params["ln1_b"],
            params["w1"], params["b1"], params["w2"], params["b2"],
            params["ln2_g"], params["ln2_b"],
            pool_node, pool_e0, pool_e1,
            params["node_w"], params["node_b"],
            params["edge_w0"], params["edge_w1"], params["edge_b"])

    node_slab, edge_slab = pl.pallas_call(
        fused_model_kernel,
        out_shape=(jax.ShapeDtypeStruct((B * n_node_max, LANE), jnp.float32),
                   jax.ShapeDtypeStruct((B * n_edge_max, LANE), jnp.float32)),
        in_specs=[_vmem_spec() for _ in args],
        out_specs=(_vmem_spec(), _vmem_spec()),
        compiler_params=pltpu.CompilerParams(vmem_limit_bytes=32 * 1024 * 1024),
    )(*args)

    # host-side: drop lane padding, restore (B, N, heads) layout
    node_out = node_slab.reshape(B, n_node_max, LANE)[:, :, :N_NODE]
    edge_out = edge_slab.reshape(B, n_edge_max, LANE)[:, :, :N_EDGE]
    return node_out, edge_out


# ----------------- index lists -> block-diagonal pooling matrices -----------------
def build_flat_pools(node_ids, edge_ids, n_node_max, n_edge_max, batch, seq_len):
    pn = np.zeros((batch * n_node_max, batch * seq_len), np.float32)
    pe0 = np.zeros((batch * n_edge_max, batch * seq_len), np.float32)
    pe1 = np.zeros((batch * n_edge_max, batch * seq_len), np.float32)
    for b, nodes in enumerate(node_ids):
        for n, idx in enumerate(nodes):
            for t in idx:
                pn[b * n_node_max + n, b * seq_len + t] = 1.0 / len(idx)
    for b, pairs in enumerate(edge_ids):
        for n, (i0, i1) in enumerate(pairs):
            for t in i0:
                pe0[b * n_edge_max + n, b * seq_len + t] = 1.0 / len(i0)
            for t in i1:
                pe1[b * n_edge_max + n, b * seq_len + t] = 1.0 / len(i1)
    return jnp.asarray(pn), jnp.asarray(pe0), jnp.asarray(pe1)


# TODO(synk): nn.MSELoss / reset_prediciton_heads are not part of forward(); not implemented.

if __name__ == "__main__":
    key = jax.random.PRNGKey(0)
    k_param, k_ids = jax.random.split(key)

    params = init_params(k_param)
    input_ids = jax.random.randint(k_ids, (B, S), 0, VOCAB, dtype=jnp.int32)

    # per-sample node / edge token index lists (ragged), as in the torch module
    node_ids = [
        [[0, 1], [2], [3, 4, 5]],            # sample 0: 3 nodes
        [[1], [2, 3]],                       # sample 1: 2 nodes (padded to 3)
    ]
    edge_ids = [
        [([0, 1], [2]), ([2], [3, 4, 5])],   # sample 0: 2 edges
        [([1], [2, 3])],                     # sample 1: 1 edge (padded to 2)
    ]
    n_node_max = max(len(n) for n in node_ids)
    n_edge_max = max(len(e) for e in edge_ids)

    pools = build_flat_pools(node_ids, edge_ids, n_node_max, n_edge_max, B, S)

    node_output, edge_output = pretrained_model_forward(
        input_ids, pools, params, n_node_max, n_edge_max)
    jax.block_until_ready((node_output, edge_output))

    assert node_output.shape == (B, n_node_max, N_NODE)
    assert edge_output.shape == (B, n_edge_max, N_EDGE)
    assert bool(jnp.all(jnp.isfinite(node_output))) and bool(jnp.all(jnp.isfinite(edge_output)))
    assert bool(jnp.all(jnp.abs(node_output) <= 5.0)) and bool(jnp.all(jnp.abs(edge_output) <= 5.0))
    print("KERNEL_OK")
</pallas_src>

<mosaic_0001>
module attributes {stable_mosaic.version = 11 : i64} {
  func.func @fused_model_kernel(%arg0: memref<16x32xf32, #tpu.memory_space<vmem>>, %arg1: memref<1x32xf32, #tpu.memory_space<vmem>>, %arg2: memref<1x32xf32, #tpu.memory_space<vmem>>, %arg3: memref<2x2x32x16xbf16, #tpu.memory_space<vmem>>, %arg4: memref<2x2x32x16xbf16, #tpu.memory_space<vmem>>, %arg5: memref<2x2x32x16xbf16, #tpu.memory_space<vmem>>, %arg6: memref<2x2x1x16xf32, #tpu.memory_space<vmem>>, %arg7: memref<2x2x1x16xf32, #tpu.memory_space<vmem>>, %arg8: memref<2x2x1x16xf32, #tpu.memory_space<vmem>>, %arg9: memref<2x2x16x32xbf16, #tpu.memory_space<vmem>>, %arg10: memref<2x1x32xf32, #tpu.memory_space<vmem>>, %arg11: memref<2x1x32xf32, #tpu.memory_space<vmem>>, %arg12: memref<2x1x32xf32, #tpu.memory_space<vmem>>, %arg13: memref<2x32x128xbf16, #tpu.memory_space<vmem>>, %arg14: memref<2x1x128xf32, #tpu.memory_space<vmem>>, %arg15: memref<2x128x32xbf16, #tpu.memory_space<vmem>>, %arg16: memref<2x1x32xf32, #tpu.memory_space<vmem>>, %arg17: memref<2x1x32xf32, #tpu.memory_space<vmem>>, %arg18: memref<2x1x32xf32, #tpu.memory_space<vmem>>, %arg19: memref<6x16xf32, #tpu.memory_space<vmem>>, %arg20: memref<4x16xf32, #tpu.memory_space<vmem>>, %arg21: memref<4x16xf32, #tpu.memory_space<vmem>>, %arg22: memref<32x128xf32, #tpu.memory_space<vmem>>, %arg23: memref<1x128xf32, #tpu.memory_space<vmem>>, %arg24: memref<32x128xf32, #tpu.memory_space<vmem>>, %arg25: memref<32x128xf32, #tpu.memory_space<vmem>>, %arg26: memref<1x128xf32, #tpu.memory_space<vmem>>, %arg27: memref<6x128xf32, #tpu.memory_space<vmem>>, %arg28: memref<4x128xf32, #tpu.memory_space<vmem>>) attributes {dimension_semantics = [], scalar_prefetch = 0 : i64, scratch_operands = 0 : i64, tpu.core_type = #tpu.core_type<tc>} {
    %c0 = arith.constant 0 : index
    %c0_0 = arith.constant 0 : index
    %0 = vector.load %arg0[%c0, %c0_0] : memref<16x32xf32, #tpu.memory_space<vmem>>, vector<16x32xf32>
    %c0_1 = arith.constant 0 : index
    %c0_2 = arith.constant 0 : index
    %1 = vector.load %arg1[%c0_1, %c0_2] : memref<1x32xf32, #tpu.memory_space<vmem>>, vector<1x32xf32>
    %c0_3 = arith.constant 0 : index
    %c0_4 = arith.constant 0 : index
    %2 = vector.load %arg2[%c0_3, %c0_4] : memref<1x32xf32, #tpu.memory_space<vmem>>, vector<1x32xf32>
    %cst = arith.constant dense<0.000000e+00> : vector<16xf32>
    %3 = vector.multi_reduction <add>, %0, %cst [1] : vector<16x32xf32> to vector<16xf32>
    %4 = vector.shape_cast %3 : vector<16xf32> to vector<16x1xf32>
    %5 = arith.mulf %0, %0 : vector<16x32xf32>
    %cst_5 = arith.constant dense<0.000000e+00> : vector<16xf32>
    %6 = vector.multi_reduction <add>, %5, %cst_5 [1] : vector<16x32xf32> to vector<16xf32>
    %7 = vector.shape_cast %6 : vector<16xf32> to vector<16x1xf32>
    %cst_6 = arith.constant 3.125000e-02 : f32
    %8 = vector.broadcast %cst_6 : f32 to vector<16x1xf32>
    %9 = arith.mulf %4, %8 : vector<16x1xf32>
    %cst_7 = arith.constant 3.125000e-02 : f32
    %10 = vector.broadcast %cst_7 : f32 to vector<16x1xf32>
    %11 = arith.mulf %7, %10 : vector<16x1xf32>
    %12 = arith.mulf %9, %9 : vector<16x1xf32>
    %13 = arith.subf %11, %12 : vector<16x1xf32>
    %14 = vector.broadcast %9 : vector<16x1xf32> to vector<16x32xf32>
    %15 = arith.subf %0, %14 : vector<16x32xf32>
    %cst_8 = arith.constant 9.99999974E-6 : f32
    %16 = vector.broadcast %cst_8 : f32 to vector<16x1xf32>
    %17 = arith.addf %13, %16 : vector<16x1xf32>
    %18 = math.rsqrt %17 : vector<16x1xf32>
    %19 = vector.broadcast %18 : vector<16x1xf32> to vector<16x32xf32>
    %20 = arith.mulf %15, %19 : vector<16x32xf32>
    %21 = vector.broadcast %1 : vector<1x32xf32> to vector<16x32xf32>
    %22 = arith.mulf %20, %21 : vector<16x32xf32>
    %23 = vector.broadcast %2 : vector<1x32xf32> to vector<16x32xf32>
    %24 = arith.addf %22, %23 : vector<16x32xf32>
    %25 = arith.truncf %24 : vector<16x32xf32> to vector<16x32xbf16>
    %c0_9 = arith.constant 0 : index
    %c0_10 = arith.constant 0 : index
    %c0_11 = arith.constant 0 : index
    %c0_12 = arith.constant 0 : index
    %26 = vector.load %arg3[%c0_9, %c0_10, %c0_11, %c0_12] : memref<2x2x32x16xbf16, #tpu.memory_space<vmem>>, vector<1x1x32x16xbf16>
    %27 = vector.shape_cast %26 : vector<1x1x32x16xbf16> to vector<32x16xbf16>
    %cst_13 = arith.constant dense<0.000000e+00> : vector<16x16xf32>
    %28 = tpu.matmul %25, %27, %cst_13 {dimension_numbers = #tpu.dot_dimension_numbers<[1], [0], [0], [1], [0, 0, 1, 1], [], []>} : vector<16x32xbf16>, vector<32x16xbf16>, vector<16x16xf32> -> vector<16x16xf32>
    %c0_14 = arith.constant 0 : index
    %c0_15 = arith.constant 0 : index
    %c0_16 = arith.constant 0 : index
    %c0_17 = arith.constant 0 : index
    %29 = vector.load %arg6[%c0_14, %c0_15, %c0_16, %c0_17] : memref<2x2x1x16xf32, #tpu.memory_space<vmem>>, vector<1x1x1x16xf32>
    %30 = vector.shape_cast %29 : vector<1x1x1x16xf32> to vector<1x16xf32>
    %31 = vector.broadcast %30 : vector<1x16xf32> to vector<16x16xf32>
    %32 = arith.addf %28, %31 : vector<16x16xf32>
    %c0_18 = arith.constant 0 : index
    %c0_19 = arith.constant 0 : index
    %c0_20 = arith.constant 0 : index
    %c0_21 = arith.constant 0 : index
    %33 = vector.load %arg4[%c0_18, %c0_19, %c0_20, %c0_21] : memref<2x2x32x16xbf16, #tpu.memory_space<vmem>>, vector<1x1x32x16xbf16>
    %34 = vector.shape_cast %33 : vector<1x1x32x16xbf16> to vector<32x16xbf16>
    %cst_22 = arith.constant dense<0.000000e+00> : vector<16x16xf32>
    %35 = tpu.matmul %25, %34, %cst_22 {dimension_numbers = #tpu.dot_dimension_numbers<[1], [0], [0], [1], [0, 0, 1, 1], [], []>} : vector<16x32xbf16>, vector<32x16xbf16>, vector<16x16xf32> -> vector<16x16xf32>
    %c0_23 = arith.constant 0 : index
    %c0_24 = arith.constant 0 : index
    %c0_25 = arith.constant 0 : index
    %c0_26 = arith.constant 0 : index
    %36 = vector.load %arg7[%c0_23, %c0_24, %c0_25, %c0_26] : memref<2x2x1x16xf32, #tpu.memory_space<vmem>>, vector<1x1x1x16xf32>
    %37 = vector.shape_cast %36 : vector<1x1x1x16xf32> to vector<1x16xf32>
    %38 = vector.broadcast %37 : vector<1x16xf32> to vector<16x16xf32>
    %39 = arith.addf %35, %38 : vector<16x16xf32>
    %c0_27 = arith.constant 0 : index
    %c0_28 = arith.constant 0 : index
    %c0_29 = arith.constant 0 : index
    %c0_30 = arith.constant 0 : index
    %40 = vector.load %arg5[%c0_27, %c0_28, %c0_29, %c0_30] : memref<2x2x32x16xbf16, #tpu.memory_space<vmem>>, vector<1x1x32x16xbf16>
    %41 = vector.shape_cast %40 : vector<1x1x32x16xbf16> to vector<32x16xbf16>
    %cst_31 = arith.constant dense<0.000000e+00> : vector<16x16xf32>
    %42 = tpu.matmul %25, %41, %cst_31 {dimension_numbers = #tpu.dot_dimension_numbers<[1], [0], [0], [1], [0, 0, 1, 1], [], []>} : vector<16x32xbf16>, vector<32x16xbf16>, vector<16x16xf32> -> vector<16x16xf32>
    %c0_32 = arith.constant 0 : index
    %c0_33 = arith.constant 0 : index
    %c0_34 = arith.constant 0 : index
    %c0_35 = arith.constant 0 : index
    %43 = vector.load %arg8[%c0_32, %c0_33, %c0_34, %c0_35] : memref<2x2x1x16xf32, #tpu.memory_space<vmem>>, vector<1x1x1x16xf32>
    %44 = vector.shape_cast %43 : vector<1x1x1x16xf32> to vector<1x16xf32>
    %45 = vector.broadcast %44 : vector<1x16xf32> to vector<16x16xf32>
    %46 = arith.addf %42, %45 : vector<16x16xf32>
    %47 = vector.shape_cast %32 : vector<16x16xf32> to vector<2x8x16xf32>
    %48 = arith.truncf %47 : vector<2x8x16xf32> to vector<2x8x16xbf16>
    %49 = vector.shape_cast %39 : vector<16x16xf32> to vector<2x8x16xf32>
    %50 = arith.truncf %49 : vector<2x8x16xf32> to vector<2x8x16xbf16>
    %51 = vector.shape_cast %46 : vector<16x16xf32> to vector<2x8x16xf32>
    %52 = arith.truncf %51 : vector<2x8x16xf32> to vector<2x8x16xbf16>
    "tpu.trace_start"() <{level = 10 : i32, message = "bqe,bke->bqk"}> : () -> ()
    %cst_36 = arith.constant dense<0.000000e+00> : vector<2x8x8xf32>
    %53 = tpu.matmul %48, %50, %cst_36 {dimension_numbers = #tpu.dot_dimension_numbers<[2], [2], [1], [1], [0, 0, 0, 1, 1, 1], [0], [0]>} : vector<2x8x16xbf16>, vector<2x8x16xbf16>, vector<2x8x8xf32> -> vector<2x8x8xf32>
    "tpu.trace_stop"() : () -> ()
    %cst_37 = arith.constant 2.500000e-01 : f32
    %54 = vector.broadcast %cst_37 : f32 to vector<2x8x8xf32>
    %55 = arith.mulf %53, %54 : vector<2x8x8xf32>
    %cst_38 = arith.constant dense<0xFF800000> : vector<2x8xf32>
    %56 = vector.multi_reduction <maximumf>, %55, %cst_38 [2] : vector<2x8x8xf32> to vector<2x8xf32>
    %57 = vector.shape_cast %56 : vector<2x8xf32> to vector<2x8x1xf32>
    %58 = vector.broadcast %57 : vector<2x8x1xf32> to vector<2x8x8xf32>
    %59 = arith.subf %55, %58 : vector<2x8x8xf32>
    %60 = math.exp %59 : vector<2x8x8xf32>
    %cst_39 = arith.constant dense<0.000000e+00> : vector<2x8xf32>
    %61 = vector.multi_reduction <add>, %60, %cst_39 [2] : vector<2x8x8xf32> to vector<2x8xf32>
    %62 = vector.shape_cast %61 : vector<2x8xf32> to vector<2x8x1xf32>
    %63 = tpu.reciprocal %62 {approx = true} : vector<2x8x1xf32> -> vector<2x8x1xf32>
    %64 = vector.broadcast %63 : vector<2x8x1xf32> to vector<2x8x8xf32>
    %65 = arith.mulf %60, %64 : vector<2x8x8xf32>
    %66 = arith.truncf %65 : vector<2x8x8xf32> to vector<2x8x8xbf16>
    "tpu.trace_start"() <{level = 10 : i32, message = "bqk,bke->bqe"}> : () -> ()
    %cst_40 = arith.constant dense<0.000000e+00> : vector<2x8x16xf32>
    %67 = tpu.matmul %66, %52, %cst_40 {dimension_numbers = #tpu.dot_dimension_numbers<[2], [1], [1], [2], [0, 0, 0, 1, 1, 2], [0], [0]>} : vector<2x8x8xbf16>, vector<2x8x16xbf16>, vector<2x8x16xf32> -> vector<2x8x16xf32>
    "tpu.trace_stop"() : () -> ()
    %68 = vector.shape_cast %67 : vector<2x8x16xf32> to vector<16x16xf32>
    %69 = arith.truncf %68 : vector<16x16xf32> to vector<16x16xbf16>
    %c0_41 = arith.constant 0 : index
    %c0_42 = arith.constant 0 : index
    %c0_43 = arith.constant 0 : index
    %c0_44 = arith.constant 0 : index
    %70 = vector.load %arg9[%c0_41, %c0_42, %c0_43, %c0_44] : memref<2x2x16x32xbf16, #tpu.memory_space<vmem>>, vector<1x1x16x32xbf16>
    %71 = vector.shape_cast %70 : vector<1x1x16x32xbf16> to vector<16x32xbf16>
    %cst_45 = arith.constant dense<0.000000e+00> : vector<16x32xf32>
    %72 = tpu.matmul %69, %71, %cst_45 {dimension_numbers = #tpu.dot_dimension_numbers<[1], [0], [0], [1], [0, 0, 1, 1], [], []>} : vector<16x16xbf16>, vector<16x32xbf16>, vector<16x32xf32> -> vector<16x32xf32>
    %c0_46 = arith.constant 0 : index
    %c1 = arith.constant 1 : index
    %c0_47 = arith.constant 0 : index
    %c0_48 = arith.constant 0 : index
    %73 = vector.load %arg3[%c0_46, %c1, %c0_47, %c0_48] : memref<2x2x32x16xbf16, #tpu.memory_space<vmem>>, vector<1x1x32x16xbf16>
    %74 = vector.shape_cast %73 : vector<1x1x32x16xbf16> to vector<32x16xbf16>
    %cst_49 = arith.constant dense<0.000000e+00> : vector<16x16xf32>
    %75 = tpu.matmul %25, %74, %cst_49 {dimension_numbers = #tpu.dot_dimension_numbers<[1], [0], [0], [1], [0, 0, 1, 1], [], []>} : vector<16x32xbf16>, vector<32x16xbf16>, vector<16x16xf32> -> vector<16x16xf32>
    %c0_50 = arith.constant 0 : index
    %c1_51 = arith.constant 1 : index
    %c0_52 = arith.constant 0 : index
    %c0_53 = arith.constant 0 : index
    %76 = vector.load %arg6[%c0_50, %c1_51, %c0_52, %c0_53] : memref<2x2x1x16xf32, #tpu.memory_space<vmem>>, vector<1x1x1x16xf32>
    %77 = vector.shape_cast %76 : vector<1x1x1x16xf32> to vector<1x16xf32>
    %78 = vector.broadcast %77 : vector<1x16xf32> to vector<16x16xf32>
    %79 = arith.addf %75, %78 : vector<16x16xf32>
    %c0_54 = arith.constant 0 : index
    %c1_55 = arith.constant 1 : index
    %c0_56 = arith.constant 0 : index
    %c0_57 = arith.constant 0 : index
    %80 = vector.load %arg4[%c0_54, %c1_55, %c0_56, %c0_57] : memref<2x2x32x16xbf16, #tpu.memory_space<vmem>>, vector<1x1x32x16xbf16>
    %81 = vector.shape_cast %80 : vector<1x1x32x16xbf16> to vector<32x16xbf16>
    %cst_58 = arith.constant dense<0.000000e+00> : vector<16x16xf32>
    %82 = tpu.matmul %25, %81, %cst_58 {dimension_numbers = #tpu.dot_dimension_numbers<[1], [0], [0], [1], [0, 0, 1, 1], [], []>} : vector<16x32xbf16>, vector<32x16xbf16>, vector<16x16xf32> -> vector<16x16xf32>
    %c0_59 = arith.constant 0 : index
    %c1_60 = arith.constant 1 : index
    %c0_61 = arith.constant 0 : index
    %c0_62 = arith.constant 0 : index
    %83 = vector.load %arg7[%c0_59, %c1_60, %c0_61, %c0_62] : memref<2x2x1x16xf32, #tpu.memory_space<vmem>>, vector<1x1x1x16xf32>
    %84 = vector.shape_cast %83 : vector<1x1x1x16xf32> to vector<1x16xf32>
    %85 = vector.broadcast %84 : vector<1x16xf32> to vector<16x16xf32>
    %86 = arith.addf %82, %85 : vector<16x16xf32>
    %c0_63 = arith.constant 0 : index
    %c1_64 = arith.constant 1 : index
    %c0_65 = arith.constant 0 : index
    %c0_66 = arith.constant 0 : index
    %87 = vector.load %arg5[%c0_63, %c1_64, %c0_65, %c0_66] : memref<2x2x32x16xbf16, #tpu.memory_space<vmem>>, vector<1x1x32x16xbf16>
    %88 = vector.shape_cast %87 : vector<1x1x32x16xbf16> to vector<32x16xbf16>
    %cst_67 = arith.constant dense<0.000000e+00> : vector<16x16xf32>
    %89 = tpu.matmul %25, %88, %cst_67 {dimension_numbers = #tpu.dot_dimension_numbers<[1], [0], [0], [1], [0, 0, 1, 1], [], []>} : vector<16x32xbf16>, vector<32x16xbf16>, vector<16x16xf32> -> vector<16x16xf32>
    %c0_68 = arith.constant 0 : index
    %c1_69 = arith.constant 1 : index
    %c0_70 = arith.constant 0 : index
    %c0_71 = arith.constant 0 : index
    %90 = vector.load %arg8[%c0_68, %c1_69, %c0_70, %c0_71] : memref<2x2x1x16xf32, #tpu.memory_space<vmem>>, vector<1x1x1x16xf32>
    %91 = vector.shape_cast %90 : vector<1x1x1x16xf32> to vector<1x16xf32>
    %92 = vector.broadcast %91 : vector<1x16xf32> to vector<16x16xf32>
    %93 = arith.addf %89, %92 : vector<16x16xf32>
    %94 = vector.shape_cast %79 : vector<16x16xf32> to vector<2x8x16xf32>
    %95 = arith.truncf %94 : vector<2x8x16xf32> to vector<2x8x16xbf16>
    %96 = vector.shape_cast %86 : vector<16x16xf32> to vector<2x8x16xf32>
    %97 = arith.truncf %96 : vector<2x8x16xf32> to vector<2x8x16xbf16>
    %98 = vector.shape_cast %93 : vector<16x16xf32> to vector<2x8x16xf32>
    %99 = arith.truncf %98 : vector<2x8x16xf32> to vector<2x8x16xbf16>
    "tpu.trace_start"() <{level = 10 : i32, message = "bqe,bke->bqk"}> : () -> ()
    %cst_72 = arith.constant dense<0.000000e+00> : vector<2x8x8xf32>
    %100 = tpu.matmul %95, %97, %cst_72 {dimension_numbers = #tpu.dot_dimension_numbers<[2], [2], [1], [1], [0, 0, 0, 1, 1, 1], [0], [0]>} : vector<2x8x16xbf16>, vector<2x8x16xbf16>, vector<2x8x8xf32> -> vector<2x8x8xf32>
    "tpu.trace_stop"() : () -> ()
    %cst_73 = arith.constant 2.500000e-01 : f32
    %101 = vector.broadcast %cst_73 : f32 to vector<2x8x8xf32>
    %102 = arith.mulf %100, %101 : vector<2x8x8xf32>
    %cst_74 = arith.constant dense<0xFF800000> : vector<2x8xf32>
    %103 = vector.multi_reduction <maximumf>, %102, %cst_74 [2] : vector<2x8x8xf32> to vector<2x8xf32>
    %104 = vector.shape_cast %103 : vector<2x8xf32> to vector<2x8x1xf32>
    %105 = vector.broadcast %104 : vector<2x8x1xf32> to vector<2x8x8xf32>
    %106 = arith.subf %102, %105 : vector<2x8x8xf32>
    %107 = math.exp %106 : vector<2x8x8xf32>
    %cst_75 = arith.constant dense<0.000000e+00> : vector<2x8xf32>
    %108 = vector.multi_reduction <add>, %107, %cst_75 [2] : vector<2x8x8xf32> to vector<2x8xf32>
    %109 = vector.shape_cast %108 : vector<2x8xf32> to vector<2x8x1xf32>
    %110 = tpu.reciprocal %109 {approx = true} : vector<2x8x1xf32> -> vector<2x8x1xf32>
    %111 = vector.broadcast %110 : vector<2x8x1xf32> to vector<2x8x8xf32>
    %112 = arith.mulf %107, %111 : vector<2x8x8xf32>
    %113 = arith.truncf %112 : vector<2x8x8xf32> to vector<2x8x8xbf16>
    "tpu.trace_start"() <{level = 10 : i32, message = "bqk,bke->bqe"}> : () -> ()
    %cst_76 = arith.constant dense<0.000000e+00> : vector<2x8x16xf32>
    %114 = tpu.matmul %113, %99, %cst_76 {dimension_numbers = #tpu.dot_dimension_numbers<[2], [1], [1], [2], [0, 0, 0, 1, 1, 2], [0], [0]>} : vector<2x8x8xbf16>, vector<2x8x16xbf16>, vector<2x8x16xf32> -> vector<2x8x16xf32>
    "tpu.trace_stop"() : () -> ()
    %115 = vector.shape_cast %114 : vector<2x8x16xf32> to vector<16x16xf32>
    %116 = arith.truncf %115 : vector<16x16xf32> to vector<16x16xbf16>
    %c0_77 = arith.constant 0 : index
    %c1_78 = arith.constant 1 : index
    %c0_79 = arith.constant 0 : index
    %c0_80 = arith.constant 0 : index
    %117 = vector.load %arg9[%c0_77, %c1_78, %c0_79, %c0_80] : memref<2x2x16x32xbf16, #tpu.memory_space<vmem>>, vector<1x1x16x32xbf16>
    %118 = vector.shape_cast %117 : vector<1x1x16x32xbf16> to vector<16x32xbf16>
    %cst_81 = arith.constant dense<0.000000e+00> : vector<16x32xf32>
    %119 = tpu.matmul %116, %118, %cst_81 {dimension_numbers = #tpu.dot_dimension_numbers<[1], [0], [0], [1], [0, 0, 1, 1], [], []>} : vector<16x16xbf16>, vector<16x32xbf16>, vector<16x32xf32> -> vector<16x32xf32>
    %120 = arith.addf %72, %119 : vector<16x32xf32>
    %c0_82 = arith.constant 0 : index
    %c0_83 = arith.constant 0 : index
    %c0_84 = arith.constant 0 : index
    %121 = vector.load %arg10[%c0_82, %c0_83, %c0_84] : memref<2x1x32xf32, #tpu.memory_space<vmem>>, vector<1x1x32xf32>
    %122 = vector.shape_cast %121 : vector<1x1x32xf32> to vector<1x32xf32>
    %123 = vector.broadcast %122 : vector<1x32xf32> to vector<16x32xf32>
    %124 = arith.addf %120, %123 : vector<16x32xf32>
    %125 = arith.addf %124, %24 : vector<16x32xf32>
    %c0_85 = arith.constant 0 : index
    %c0_86 = arith.constant 0 : index
    %c0_87 = arith.constant 0 : index
    %126 = vector.load %arg11[%c0_85, %c0_86, %c0_87] : memref<2x1x32xf32, #tpu.memory_space<vmem>>, vector<1x1x32xf32>
    %127 = vector.shape_cast %126 : vector<1x1x32xf32> to vector<1x32xf32>
    %c0_88 = arith.constant 0 : index
    %c0_89 = arith.constant 0 : index
    %c0_90 = arith.constant 0 : index
    %128 = vector.load %arg12[%c0_88, %c0_89, %c0_90] : memref<2x1x32xf32, #tpu.memory_space<vmem>>, vector<1x1x32xf32>
    %129 = vector.shape_cast %128 : vector<1x1x32xf32> to vector<1x32xf32>
    %cst_91 = arith.constant dense<0.000000e+00> : vector<16xf32>
    %130 = vector.multi_reduction <add>, %125, %cst_91 [1] : vector<16x32xf32> to vector<16xf32>
    %131 = vector.shape_cast %130 : vector<16xf32> to vector<16x1xf32>
    %132 = arith.mulf %125, %125 : vector<16x32xf32>
    %cst_92 = arith.constant dense<0.000000e+00> : vector<16xf32>
    %133 = vector.multi_reduction <add>, %132, %cst_92 [1] : vector<16x32xf32> to vector<16xf32>
    %134 = vector.shape_cast %133 : vector<16xf32> to vector<16x1xf32>
    %cst_93 = arith.constant 3.125000e-02 : f32
    %135 = vector.broadcast %cst_93 : f32 to vector<16x1xf32>
    %136 = arith.mulf %131, %135 : vector<16x1xf32>
    %cst_94 = arith.constant 3.125000e-02 : f32
    %137 = vector.broadcast %cst_94 : f32 to vector<16x1xf32>
    %138 = arith.mulf %134, %137 : vector<16x1xf32>
    %139 = arith.mulf %136, %136 : vector<16x1xf32>
    %140 = arith.subf %138, %139 : vector<16x1xf32>
    %141 = vector.broadcast %136 : vector<16x1xf32> to vector<16x32xf32>
    %142 = arith.subf %125, %141 : vector<16x32xf32>
    %cst_95 = arith.constant 9.99999974E-6 : f32
    %143 = vector.broadcast %cst_95 : f32 to vector<16x1xf32>
    %144 = arith.addf %140, %143 : vector<16x1xf32>
    %145 = math.rsqrt %144 : vector<16x1xf32>
    %146 = vector.broadcast %145 : vector<16x1xf32> to vector<16x32xf32>
    %147 = arith.mulf %142, %146 : vector<16x32xf32>
    %148 = vector.broadcast %127 : vector<1x32xf32> to vector<16x32xf32>
    %149 = arith.mulf %147, %148 : vector<16x32xf32>
    %150 = vector.broadcast %129 : vector<1x32xf32> to vector<16x32xf32>
    %151 = arith.addf %149, %150 : vector<16x32xf32>
    %152 = arith.truncf %151 : vector<16x32xf32> to vector<16x32xbf16>
    %c0_96 = arith.constant 0 : index
    %c0_97 = arith.constant 0 : index
    %c0_98 = arith.constant 0 : index
    %153 = vector.load %arg13[%c0_96, %c0_97, %c0_98] : memref<2x32x128xbf16, #tpu.memory_space<vmem>>, vector<1x32x128xbf16>
    %154 = vector.shape_cast %153 : vector<1x32x128xbf16> to vector<32x128xbf16>
    %cst_99 = arith.constant dense<0.000000e+00> : vector<16x128xf32>
    %155 = tpu.matmul %152, %154, %cst_99 {dimension_numbers = #tpu.dot_dimension_numbers<[1], [0], [0], [1], [0, 0, 1, 1], [], []>} : vector<16x32xbf16>, vector<32x128xbf16>, vector<16x128xf32> -> vector<16x128xf32>
    %c0_100 = arith.constant 0 : index
    %c0_101 = arith.constant 0 : index
    %c0_102 = arith.constant 0 : index
    %156 = vector.load %arg14[%c0_100, %c0_101, %c0_102] : memref<2x1x128xf32, #tpu.memory_space<vmem>>, vector<1x1x128xf32>
    %157 = vector.shape_cast %156 : vector<1x1x128xf32> to vector<1x128xf32>
    %158 = vector.broadcast %157 : vector<1x128xf32> to vector<16x128xf32>
    %159 = arith.addf %155, %158 : vector<16x128xf32>
    %cst_103 = arith.constant 5.000000e-01 : f32
    %160 = vector.broadcast %cst_103 : f32 to vector<16x128xf32>
    %161 = arith.mulf %160, %159 : vector<16x128xf32>
    %cst_104 = arith.constant 4.471500e-02 : f32
    %162 = vector.broadcast %cst_104 : f32 to vector<16x128xf32>
    %163 = arith.mulf %162, %159 : vector<16x128xf32>
    %164 = arith.mulf %163, %159 : vector<16x128xf32>
    %165 = arith.mulf %164, %159 : vector<16x128xf32>
    %166 = arith.addf %159, %165 : vector<16x128xf32>
    %cst_105 = arith.constant 0.797884583 : f32
    %167 = vector.broadcast %cst_105 : f32 to vector<16x128xf32>
    %168 = arith.mulf %167, %166 : vector<16x128xf32>
    %169 = math.tanh %168 : vector<16x128xf32>
    %cst_106 = arith.constant 1.000000e+00 : f32
    %170 = vector.broadcast %cst_106 : f32 to vector<16x128xf32>
    %171 = arith.addf %170, %169 : vector<16x128xf32>
    %172 = arith.mulf %161, %171 : vector<16x128xf32>
    %173 = arith.truncf %172 : vector<16x128xf32> to vector<16x128xbf16>
    %c0_107 = arith.constant 0 : index
    %c0_108 = arith.constant 0 : index
    %c0_109 = arith.constant 0 : index
    %174 = vector.load %arg15[%c0_107, %c0_108, %c0_109] : memref<2x128x32xbf16, #tpu.memory_space<vmem>>, vector<1x128x32xbf16>
    %175 = vector.shape_cast %174 : vector<1x128x32xbf16> to vector<128x32xbf16>
    %cst_110 = arith.constant dense<0.000000e+00> : vector<16x32xf32>
    %176 = tpu.matmul %173, %175, %cst_110 {dimension_numbers = #tpu.dot_dimension_numbers<[1], [0], [0], [1], [0, 0, 1, 1], [], []>} : vector<16x128xbf16>, vector<128x32xbf16>, vector<16x32xf32> -> vector<16x32xf32>
    %c0_111 = arith.constant 0 : index
    %c0_112 = arith.constant 0 : index
    %c0_113 = arith.constant 0 : index
    %177 = vector.load %arg16[%c0_111, %c0_112, %c0_113] : memref<2x1x32xf32, #tpu.memory_space<vmem>>, vector<1x1x32xf32>
    %178 = vector.shape_cast %177 : vector<1x1x32xf32> to vector<1x32xf32>
    %179 = vector.broadcast %178 : vector<1x32xf32> to vector<16x32xf32>
    %180 = arith.addf %176, %179 : vector<16x32xf32>
    %181 = arith.addf %180, %151 : vector<16x32xf32>
    %c0_114 = arith.constant 0 : index
    %c0_115 = arith.constant 0 : index
    %c0_116 = arith.constant 0 : index
    %182 = vector.load %arg17[%c0_114, %c0_115, %c0_116] : memref<2x1x32xf32, #tpu.memory_space<vmem>>, vector<1x1x32xf32>
    %183 = vector.shape_cast %182 : vector<1x1x32xf32> to vector<1x32xf32>
    %c0_117 = arith.constant 0 : index
    %c0_118 = arith.constant 0 : index
    %c0_119 = arith.constant 0 : index
    %184 = vector.load %arg18[%c0_117, %c0_118, %c0_119] : memref<2x1x32xf32, #tpu.memory_space<vmem>>, vector<1x1x32xf32>
    %185 = vector.shape_cast %184 : vector<1x1x32xf32> to vector<1x32xf32>
    %cst_120 = arith.constant dense<0.000000e+00> : vector<16xf32>
    %186 = vector.multi_reduction <add>, %181, %cst_120 [1] : vector<16x32xf32> to vector<16xf32>
    %187 = vector.shape_cast %186 : vector<16xf32> to vector<16x1xf32>
    %188 = arith.mulf %181, %181 : vector<16x32xf32>
    %cst_121 = arith.constant dense<0.000000e+00> : vector<16xf32>
    %189 = vector.multi_reduction <add>, %188, %cst_121 [1] : vector<16x32xf32> to vector<16xf32>
    %190 = vector.shape_cast %189 : vector<16xf32> to vector<16x1xf32>
    %cst_122 = arith.constant 3.125000e-02 : f32
    %191 = vector.broadcast %cst_122 : f32 to vector<16x1xf32>
    %192 = arith.mulf %187, %191 : vector<16x1xf32>
    %cst_123 = arith.constant 3.125000e-02 : f32
    %193 = vector.broadcast %cst_123 : f32 to vector<16x1xf32>
    %194 = arith.mulf %190, %193 : vector<16x1xf32>
    %195 = arith.mulf %192, %192 : vector<16x1xf32>
    %196 = arith.subf %194, %195 : vector<16x1xf32>
    %197 = vector.broadcast %192 : vector<16x1xf32> to vector<16x32xf32>
    %198 = arith.subf %181, %197 : vector<16x32xf32>
    %cst_124 = arith.constant 9.99999974E-6 : f32
    %199 = vector.broadcast %cst_124 : f32 to vector<16x1xf32>
    %200 = arith.addf %196, %199 : vector<16x1xf32>
    %201 = math.rsqrt %200 : vector<16x1xf32>
    %202 = vector.broadcast %201 : vector<16x1xf32> to vector<16x32xf32>
    %203 = arith.mulf %198, %202 : vector<16x32xf32>
    %204 = vector.broadcast %183 : vector<1x32xf32> to vector<16x32xf32>
    %205 = arith.mulf %203, %204 : vector<16x32xf32>
    %206 = vector.broadcast %185 : vector<1x32xf32> to vector<16x32xf32>
    %207 = arith.addf %205, %206 : vector<16x32xf32>
    %208 = arith.truncf %207 : vector<16x32xf32> to vector<16x32xbf16>
    %c1_125 = arith.constant 1 : index
    %c0_126 = arith.constant 0 : index
    %c0_127 = arith.constant 0 : index
    %c0_128 = arith.constant 0 : index
    %209 = vector.load %arg3[%c1_125, %c0_126, %c0_127, %c0_128] : memref<2x2x32x16xbf16, #tpu.memory_space<vmem>>, vector<1x1x32x16xbf16>
    %210 = vector.shape_cast %209 : vector<1x1x32x16xbf16> to vector<32x16xbf16>
    %cst_129 = arith.constant dense<0.000000e+00> : vector<16x16xf32>
    %211 = tpu.matmul %208, %210, %cst_129 {dimension_numbers = #tpu.dot_dimension_numbers<[1], [0], [0], [1], [0, 0, 1, 1], [], []>} : vector<16x32xbf16>, vector<32x16xbf16>, vector<16x16xf32> -> vector<16x16xf32>
    %c1_130 = arith.constant 1 : index
    %c0_131 = arith.constant 0 : index
    %c0_132 = arith.constant 0 : index
    %c0_133 = arith.constant 0 : index
    %212 = vector.load %arg6[%c1_130, %c0_131, %c0_132, %c0_133] : memref<2x2x1x16xf32, #tpu.memory_space<vmem>>, vector<1x1x1x16xf32>
    %213 = vector.shape_cast %212 : vector<1x1x1x16xf32> to vector<1x16xf32>
    %214 = vector.broadcast %213 : vector<1x16xf32> to vector<16x16xf32>
    %215 = arith.addf %211, %214 : vector<16x16xf32>
    %c1_134 = arith.constant 1 : index
    %c0_135 = arith.constant 0 : index
    %c0_136 = arith.constant 0 : index
    %c0_137 = arith.constant 0 : index
    %216 = vector.load %arg4[%c1_134, %c0_135, %c0_136, %c0_137] : memref<2x2x32x16xbf16, #tpu.memory_space<vmem>>, vector<1x1x32x16xbf16>
    %217 = vector.shape_cast %216 : vector<1x1x32x16xbf16> to vector<32x16xbf16>
    %cst_138 = arith.constant dense<0.000000e+00> : vector<16x16xf32>
    %218 = tpu.matmul %208, %217, %cst_138 {dimension_numbers = #tpu.dot_dimension_numbers<[1], [0], [0], [1], [0, 0, 1, 1], [], []>} : vector<16x32xbf16>, vector<32x16xbf16>, vector<16x16xf32> -> vector<16x16xf32>
    %c1_139 = arith.constant 1 : index
    %c0_140 = arith.constant 0 : index
    %c0_141 = arith.constant 0 : index
    %c0_142 = arith.constant 0 : index
    %219 = vector.load %arg7[%c1_139, %c0_140, %c0_141, %c0_142] : memref<2x2x1x16xf32, #tpu.memory_space<vmem>>, vector<1x1x1x16xf32>
    %220 = vector.shape_cast %219 : vector<1x1x1x16xf32> to vector<1x16xf32>
    %221 = vector.broadcast %220 : vector<1x16xf32> to vector<16x16xf32>
    %222 = arith.addf %218, %221 : vector<16x16xf32>
    %c1_143 = arith.constant 1 : index
    %c0_144 = arith.constant 0 : index
    %c0_145 = arith.constant 0 : index
    %c0_146 = arith.constant 0 : index
    %223 = vector.load %arg5[%c1_143, %c0_144, %c0_145, %c0_146] : memref<2x2x32x16xbf16, #tpu.memory_space<vmem>>, vector<1x1x32x16xbf16>
    %224 = vector.shape_cast %223 : vector<1x1x32x16xbf16> to vector<32x16xbf16>
    %cst_147 = arith.constant dense<0.000000e+00> : vector<16x16xf32>
    %225 = tpu.matmul %208, %224, %cst_147 {dimension_numbers = #tpu.dot_dimension_numbers<[1], [0], [0], [1], [0, 0, 1, 1], [], []>} : vector<16x32xbf16>, vector<32x16xbf16>, vector<16x16xf32> -> vector<16x16xf32>
    %c1_148 = arith.constant 1 : index
    %c0_149 = arith.constant 0 : index
    %c0_150 = arith.constant 0 : index
    %c0_151 = arith.constant 0 : index
    %226 = vector.load %arg8[%c1_148, %c0_149, %c0_150, %c0_151] : memref<2x2x1x16xf32, #tpu.memory_space<vmem>>, vector<1x1x1x16xf32>
    %227 = vector.shape_cast %226 : vector<1x1x1x16xf32> to vector<1x16xf32>
    %228 = vector.broadcast %227 : vector<1x16xf32> to vector<16x16xf32>
    %229 = arith.addf %225, %228 : vector<16x16xf32>
    %230 = vector.shape_cast %215 : vector<16x16xf32> to vector<2x8x16xf32>
    %231 = arith.truncf %230 : vector<2x8x16xf32> to vector<2x8x16xbf16>
    %232 = vector.shape_cast %222 : vector<16x16xf32> to vector<2x8x16xf32>
    %233 = arith.truncf %232 : vector<2x8x16xf32> to vector<2x8x16xbf16>
    %234 = vector.shape_cast %229 : vector<16x16xf32> to vector<2x8x16xf32>
    %235 = arith.truncf %234 : vector<2x8x16xf32> to vector<2x8x16xbf16>
    "tpu.trace_start"() <{level = 10 : i32, message = "bqe,bke->bqk"}> : () -> ()
    %cst_152 = arith.constant dense<0.000000e+00> : vector<2x8x8xf32>
    %236 = tpu.matmul %231, %233, %cst_152 {dimension_numbers = #tpu.dot_dimension_numbers<[2], [2], [1], [1], [0, 0, 0, 1, 1, 1], [0], [0]>} : vector<2x8x16xbf16>, vector<2x8x16xbf16>, vector<2x8x8xf32> -> vector<2x8x8xf32>
    "tpu.trace_stop"() : () -> ()
    %cst_153 = arith.constant 2.500000e-01 : f32
    %237 = vector.broadcast %cst_153 : f32 to vector<2x8x8xf32>
    %238 = arith.mulf %236, %237 : vector<2x8x8xf32>
    %cst_154 = arith.constant dense<0xFF800000> : vector<2x8xf32>
    %239 = vector.multi_reduction <maximumf>, %238, %cst_154 [2] : vector<2x8x8xf32> to vector<2x8xf32>
    %240 = vector.shape_cast %239 : vector<2x8xf32> to vector<2x8x1xf32>
    %241 = vector.broadcast %240 : vector<2x8x1xf32> to vector<2x8x8xf32>
    %242 = arith.subf %238, %241 : vector<2x8x8xf32>
    %243 = math.exp %242 : vector<2x8x8xf32>
    %cst_155 = arith.constant dense<0.000000e+00> : vector<2x8xf32>
    %244 = vector.multi_reduction <add>, %243, %cst_155 [2] : vector<2x8x8xf32> to vector<2x8xf32>
    %245 = vector.shape_cast %244 : vector<2x8xf32> to vector<2x8x1xf32>
    %246 = tpu.reciprocal %245 {approx = true} : vector<2x8x1xf32> -> vector<2x8x1xf32>
    %247 = vector.broadcast %246 : vector<2x8x1xf32> to vector<2x8x8xf32>
    %248 = arith.mulf %243, %247 : vector<2x8x8xf32>
    %249 = arith.truncf %248 : vector<2x8x8xf32> to vector<2x8x8xbf16>
    "tpu.trace_start"() <{level = 10 : i32, message = "bqk,bke->bqe"}> : () -> ()
    %cst_156 = arith.constant dense<0.000000e+00> : vector<2x8x16xf32>
    %250 = tpu.matmul %249, %235, %cst_156 {dimension_numbers = #tpu.dot_dimension_numbers<[2], [1], [1], [2], [0, 0, 0, 1, 1, 2], [0], [0]>} : vector<2x8x8xbf16>, vector<2x8x16xbf16>, vector<2x8x16xf32> -> vector<2x8x16xf32>
    "tpu.trace_stop"() : () -> ()
    %251 = vector.shape_cast %250 : vector<2x8x16xf32> to vector<16x16xf32>
    %252 = arith.truncf %251 : vector<16x16xf32> to vector<16x16xbf16>
    %c1_157 = arith.constant 1 : index
    %c0_158 = arith.constant 0 : index
    %c0_159 = arith.constant 0 : index
    %c0_160 = arith.constant 0 : index
    %253 = vector.load %arg9[%c1_157, %c0_158, %c0_159, %c0_160] : memref<2x2x16x32xbf16, #tpu.memory_space<vmem>>, vector<1x1x16x32xbf16>
    %254 = vector.shape_cast %253 : vector<1x1x16x32xbf16> to vector<16x32xbf16>
    %cst_161 = arith.constant dense<0.000000e+00> : vector<16x32xf32>
    %255 = tpu.matmul %252, %254, %cst_161 {dimension_numbers = #tpu.dot_dimension_numbers<[1], [0], [0], [1], [0, 0, 1, 1], [], []>} : vector<16x16xbf16>, vector<16x32xbf16>, vector<16x32xf32> -> vector<16x32xf32>
    %c1_162 = arith.constant 1 : index
    %c1_163 = arith.constant 1 : index
    %c0_164 = arith.constant 0 : index
    %c0_165 = arith.constant 0 : index
    %256 = vector.load %arg3[%c1_162, %c1_163, %c0_164, %c0_165] : memref<2x2x32x16xbf16, #tpu.memory_space<vmem>>, vector<1x1x32x16xbf16>
    %257 = vector.shape_cast %256 : vector<1x1x32x16xbf16> to vector<32x16xbf16>
    %cst_166 = arith.constant dense<0.000000e+00> : vector<16x16xf32>
    %258 = tpu.matmul %208, %257, %cst_166 {dimension_numbers = #tpu.dot_dimension_numbers<[1], [0], [0], [1], [0, 0, 1, 1], [], []>} : vector<16x32xbf16>, vector<32x16xbf16>, vector<16x16xf32> -> vector<16x16xf32>
    %c1_167 = arith.constant 1 : index
    %c1_168 = arith.constant 1 : index
    %c0_169 = arith.constant 0 : index
    %c0_170 = arith.constant 0 : index
    %259 = vector.load %arg6[%c1_167, %c1_168, %c0_169, %c0_170] : memref<2x2x1x16xf32, #tpu.memory_space<vmem>>, vector<1x1x1x16xf32>
    %260 = vector.shape_cast %259 : vector<1x1x1x16xf32> to vector<1x16xf32>
    %261 = vector.broadcast %260 : vector<1x16xf32> to vector<16x16xf32>
    %262 = arith.addf %258, %261 : vector<16x16xf32>
    %c1_171 = arith.constant 1 : index
    %c1_172 = arith.constant 1 : index
    %c0_173 = arith.constant 0 : index
    %c0_174 = arith.constant 0 : index
    %263 = vector.load %arg4[%c1_171, %c1_172, %c0_173, %c0_174] : memref<2x2x32x16xbf16, #tpu.memory_space<vmem>>, vector<1x1x32x16xbf16>
    %264 = vector.shape_cast %263 : vector<1x1x32x16xbf16> to vector<32x16xbf16>
    %cst_175 = arith.constant dense<0.000000e+00> : vector<16x16xf32>
    %265 = tpu.matmul %208, %264, %cst_175 {dimension_numbers = #tpu.dot_dimension_numbers<[1], [0], [0], [1], [0, 0, 1, 1], [], []>} : vector<16x32xbf16>, vector<32x16xbf16>, vector<16x16xf32> -> vector<16x16xf32>
    %c1_176 = arith.constant 1 : index
    %c1_177 = arith.constant 1 : index
    %c0_178 = arith.constant 0 : index
    %c0_179 = arith.constant 0 : index
    %266 = vector.load %arg7[%c1_176, %c1_177, %c0_178, %c0_179] : memref<2x2x1x16xf32, #tpu.memory_space<vmem>>, vector<1x1x1x16xf32>
    %267 = vector.shape_cast %266 : vector<1x1x1x16xf32> to vector<1x16xf32>
    %268 = vector.broadcast %267 : vector<1x16xf32> to vector<16x16xf32>
    %269 = arith.addf %265, %268 : vector<16x16xf32>
    %c1_180 = arith.constant 1 : index
    %c1_181 = arith.constant 1 : index
    %c0_182 = arith.constant 0 : index
    %c0_183 = arith.constant 0 : index
    %270 = vector.load %arg5[%c1_180, %c1_181, %c0_182, %c0_183] : memref<2x2x32x16xbf16, #tpu.memory_space<vmem>>, vector<1x1x32x16xbf16>
    %271 = vector.shape_cast %270 : vector<1x1x32x16xbf16> to vector<32x16xbf16>
    %cst_184 = arith.constant dense<0.000000e+00> : vector<16x16xf32>
    %272 = tpu.matmul %208, %271, %cst_184 {dimension_numbers = #tpu.dot_dimension_numbers<[1], [0], [0], [1], [0, 0, 1, 1], [], []>} : vector<16x32xbf16>, vector<32x16xbf16>, vector<16x16xf32> -> vector<16x16xf32>
    %c1_185 = arith.constant 1 : index
    %c1_186 = arith.constant 1 : index
    %c0_187 = arith.constant 0 : index
    %c0_188 = arith.constant 0 : index
    %273 = vector.load %arg8[%c1_185, %c1_186, %c0_187, %c0_188] : memref<2x2x1x16xf32, #tpu.memory_space<vmem>>, vector<1x1x1x16xf32>
    %274 = vector.shape_cast %273 : vector<1x1x1x16xf32> to vector<1x16xf32>
    %275 = vector.broadcast %274 : vector<1x16xf32> to vector<16x16xf32>
    %276 = arith.addf %272, %275 : vector<16x16xf32>
    %277 = vector.shape_cast %262 : vector<16x16xf32> to vector<2x8x16xf32>
    %278 = arith.truncf %277 : vector<2x8x16xf32> to vector<2x8x16xbf16>
    %279 = vector.shape_cast %269 : vector<16x16xf32> to vector<2x8x16xf32>
    %280 = arith.truncf %279 : vector<2x8x16xf32> to vector<2x8x16xbf16>
    %281 = vector.shape_cast %276 : vector<16x16xf32> to vector<2x8x16xf32>
    %282 = arith.truncf %281 : vector<2x8x16xf32> to vector<2x8x16xbf16>
    "tpu.trace_start"() <{level = 10 : i32, message = "bqe,bke->bqk"}> : () -> ()
    %cst_189 = arith.constant dense<0.000000e+00> : vector<2x8x8xf32>
    %283 = tpu.matmul %278, %280, %cst_189 {dimension_numbers = #tpu.dot_dimension_numbers<[2], [2], [1], [1], [0, 0, 0, 1, 1, 1], [0], [0]>} : vector<2x8x16xbf16>, vector<2x8x16xbf16>, vector<2x8x8xf32> -> vector<2x8x8xf32>
    "tpu.trace_stop"() : () -> ()
    %cst_190 = arith.constant 2.500000e-01 : f32
    %284 = vector.broadcast %cst_190 : f32 to vector<2x8x8xf32>
    %285 = arith.mulf %283, %284 : vector<2x8x8xf32>
    %cst_191 = arith.constant dense<0xFF800000> : vector<2x8xf32>
    %286 = vector.multi_reduction <maximumf>, %285, %cst_191 [2] : vector<2x8x8xf32> to vector<2x8xf32>
    %287 = vector.shape_cast %286 : vector<2x8xf32> to vector<2x8x1xf32>
    %288 = vector.broadcast %287 : vector<2x8x1xf32> to vector<2x8x8xf32>
    %289 = arith.subf %285, %288 : vector<2x8x8xf32>
    %290 = math.exp %289 : vector<2x8x8xf32>
    %cst_192 = arith.constant dense<0.000000e+00> : vector<2x8xf32>
    %291 = vector.multi_reduction <add>, %290, %cst_192 [2] : vector<2x8x8xf32> to vector<2x8xf32>
    %292 = vector.shape_cast %291 : vector<2x8xf32> to vector<2x8x1xf32>
    %293 = tpu.reciprocal %292 {approx = true} : vector<2x8x1xf32> -> vector<2x8x1xf32>
    %294 = vector.broadcast %293 : vector<2x8x1xf32> to vector<2x8x8xf32>
    %295 = arith.mulf %290, %294 : vector<2x8x8xf32>
    %296 = arith.truncf %295 : vector<2x8x8xf32> to vector<2x8x8xbf16>
    "tpu.trace_start"() <{level = 10 : i32, message = "bqk,bke->bqe"}> : () -> ()
    %cst_193 = arith.constant dense<0.000000e+00> : vector<2x8x16xf32>
    %297 = tpu.matmul %296, %282, %cst_193 {dimension_numbers = #tpu.dot_dimension_numbers<[2], [1], [1], [2], [0, 0, 0, 1, 1, 2], [0], [0]>} : vector<2x8x8xbf16>, vector<2x8x16xbf16>, vector<2x8x16xf32> -> vector<2x8x16xf32>
    "tpu.trace_stop"() : () -> ()
    %298 = vector.shape_cast %297 : vector<2x8x16xf32> to vector<16x16xf32>
    %299 = arith.truncf %298 : vector<16x16xf32> to vector<16x16xbf16>
    %c1_194 = arith.constant 1 : index
    %c1_195 = arith.constant 1 : index
    %c0_196 = arith.constant 0 : index
    %c0_197 = arith.constant 0 : index
    %300 = vector.load %arg9[%c1_194, %c1_195, %c0_196, %c0_197] : memref<2x2x16x32xbf16, #tpu.memory_space<vmem>>, vector<1x1x16x32xbf16>
    %301 = vector.shape_cast %300 : vector<1x1x16x32xbf16> to vector<16x32xbf16>
    %cst_198 = arith.constant dense<0.000000e+00> : vector<16x32xf32>
    %302 = tpu.matmul %299, %301, %cst_198 {dimension_numbers = #tpu.dot_dimension_numbers<[1], [0], [0], [1], [0, 0, 1, 1], [], []>} : vector<16x16xbf16>, vector<16x32xbf16>, vector<16x32xf32> -> vector<16x32xf32>
    %303 = arith.addf %255, %302 : vector<16x32xf32>
    %c1_199 = arith.constant 1 : index
    %c0_200 = arith.constant 0 : index
    %c0_201 = arith.constant 0 : index
    %304 = vector.load %arg10[%c1_199, %c0_200, %c0_201] : memref<2x1x32xf32, #tpu.memory_space<vmem>>, vector<1x1x32xf32>
    %305 = vector.shape_cast %304 : vector<1x1x32xf32> to vector<1x32xf32>
    %306 = vector.broadcast %305 : vector<1x32xf32> to vector<16x32xf32>
    %307 = arith.addf %303, %306 : vector<16x32xf32>
    %308 = arith.addf %307, %207 : vector<16x32xf32>
    %c1_202 = arith.constant 1 : index
    %c0_203 = arith.constant 0 : index
    %c0_204 = arith.constant 0 : index
    %309 = vector.load %arg11[%c1_202, %c0_203, %c0_204] : memref<2x1x32xf32, #tpu.memory_space<vmem>>, vector<1x1x32xf32>
    %310 = vector.shape_cast %309 : vector<1x1x32xf32> to vector<1x32xf32>
    %c1_205 = arith.constant 1 : index
    %c0_206 = arith.constant 0 : index
    %c0_207 = arith.constant 0 : index
    %311 = vector.load %arg12[%c1_205, %c0_206, %c0_207] : memref<2x1x32xf32, #tpu.memory_space<vmem>>, vector<1x1x32xf32>
    %312 = vector.shape_cast %311 : vector<1x1x32xf32> to vector<1x32xf32>
    %cst_208 = arith.constant dense<0.000000e+00> : vector<16xf32>
    %313 = vector.multi_reduction <add>, %308, %cst_208 [1] : vector<16x32xf32> to vector<16xf32>
    %314 = vector.shape_cast %313 : vector<16xf32> to vector<16x1xf32>
    %315 = arith.mulf %308, %308 : vector<16x32xf32>
    %cst_209 = arith.constant dense<0.000000e+00> : vector<16xf32>
    %316 = vector.multi_reduction <add>, %315, %cst_209 [1] : vector<16x32xf32> to vector<16xf32>
    %317 = vector.shape_cast %316 : vector<16xf32> to vector<16x1xf32>
    %cst_210 = arith.constant 3.125000e-02 : f32
    %318 = vector.broadcast %cst_210 : f32 to vector<16x1xf32>
    %319 = arith.mulf %314, %318 : vector<16x1xf32>
    %cst_211 = arith.constant 3.125000e-02 : f32
    %320 = vector.broadcast %cst_211 : f32 to vector<16x1xf32>
    %321 = arith.mulf %317, %320 : vector<16x1xf32>
    %322 = arith.mulf %319, %319 : vector<16x1xf32>
    %323 = arith.subf %321, %322 : vector<16x1xf32>
    %324 = vector.broadcast %319 : vector<16x1xf32> to vector<16x32xf32>
    %325 = arith.subf %308, %324 : vector<16x32xf32>
    %cst_212 = arith.constant 9.99999974E-6 : f32
    %326 = vector.broadcast %cst_212 : f32 to vector<16x1xf32>
    %327 = arith.addf %323, %326 : vector<16x1xf32>
    %328 = math.rsqrt %327 : vector<16x1xf32>
    %329 = vector.broadcast %328 : vector<16x1xf32> to vector<16x32xf32>
    %330 = arith.mulf %325, %329 : vector<16x32xf32>
    %331 = vector.broadcast %310 : vector<1x32xf32> to vector<16x32xf32>
    %332 = arith.mulf %330, %331 : vector<16x32xf32>
    %333 = vector.broadcast %312 : vector<1x32xf32> to vector<16x32xf32>
    %334 = arith.addf %332, %333 : vector<16x32xf32>
    %335 = arith.truncf %334 : vector<16x32xf32> to vector<16x32xbf16>
    %c1_213 = arith.constant 1 : index
    %c0_214 = arith.constant 0 : index
    %c0_215 = arith.constant 0 : index
    %336 = vector.load %arg13[%c1_213, %c0_214, %c0_215] : memref<2x32x128xbf16, #tpu.memory_space<vmem>>, vector<1x32x128xbf16>
    %337 = vector.shape_cast %336 : vector<1x32x128xbf16> to vector<32x128xbf16>
    %cst_216 = arith.constant dense<0.000000e+00> : vector<16x128xf32>
    %338 = tpu.matmul %335, %337, %cst_216 {dimension_numbers = #tpu.dot_dimension_numbers<[1], [0], [0], [1], [0, 0, 1, 1], [], []>} : vector<16x32xbf16>, vector<32x128xbf16>, vector<16x128xf32> -> vector<16x128xf32>
    %c1_217 = arith.constant 1 : index
    %c0_218 = arith.constant 0 : index
    %c0_219 = arith.constant 0 : index
    %339 = vector.load %arg14[%c1_217, %c0_218, %c0_219] : memref<2x1x128xf32, #tpu.memory_space<vmem>>, vector<1x1x128xf32>
    %340 = vector.shape_cast %339 : vector<1x1x128xf32> to vector<1x128xf32>
    %341 = vector.broadcast %340 : vector<1x128xf32> to vector<16x128xf32>
    %342 = arith.addf %338, %341 : vector<16x128xf32>
    %cst_220 = arith.constant 5.000000e-01 : f32
    %343 = vector.broadcast %cst_220 : f32 to vector<16x128xf32>
    %344 = arith.mulf %343, %342 : vector<16x128xf32>
    %cst_221 = arith.constant 4.471500e-02 : f32
    %345 = vector.broadcast %cst_221 : f32 to vector<16x128xf32>
    %346 = arith.mulf %345, %342 : vector<16x128xf32>
    %347 = arith.mulf %346, %342 : vector<16x128xf32>
    %348 = arith.mulf %347, %342 : vector<16x128xf32>
    %349 = arith.addf %342, %348 : vector<16x128xf32>
    %cst_222 = arith.constant 0.797884583 : f32
    %350 = vector.broadcast %cst_222 : f32 to vector<16x128xf32>
    %351 = arith.mulf %350, %349 : vector<16x128xf32>
    %352 = math.tanh %351 : vector<16x128xf32>
    %cst_223 = arith.constant 1.000000e+00 : f32
    %353 = vector.broadcast %cst_223 : f32 to vector<16x128xf32>
    %354 = arith.addf %353, %352 : vector<16x128xf32>
    %355 = arith.mulf %344, %354 : vector<16x128xf32>
    %356 = arith.truncf %355 : vector<16x128xf32> to vector<16x128xbf16>
    %c1_224 = arith.constant 1 : index
    %c0_225 = arith.constant 0 : index
    %c0_226 = arith.constant 0 : index
    %357 = vector.load %arg15[%c1_224, %c0_225, %c0_226] : memref<2x128x32xbf16, #tpu.memory_space<vmem>>, vector<1x128x32xbf16>
    %358 = vector.shape_cast %357 : vector<1x128x32xbf16> to vector<128x32xbf16>
    %cst_227 = arith.constant dense<0.000000e+00> : vector<16x32xf32>
    %359 = tpu.matmul %356, %358, %cst_227 {dimension_numbers = #tpu.dot_dimension_numbers<[1], [0], [0], [1], [0, 0, 1, 1], [], []>} : vector<16x128xbf16>, vector<128x32xbf16>, vector<16x32xf32> -> vector<16x32xf32>
    %c1_228 = arith.constant 1 : index
    %c0_229 = arith.constant 0 : index
    %c0_230 = arith.constant 0 : index
    %360 = vector.load %arg16[%c1_228, %c0_229, %c0_230] : memref<2x1x32xf32, #tpu.memory_space<vmem>>, vector<1x1x32xf32>
    %361 = vector.shape_cast %360 : vector<1x1x32xf32> to vector<1x32xf32>
    %362 = vector.broadcast %361 : vector<1x32xf32> to vector<16x32xf32>
    %363 = arith.addf %359, %362 : vector<16x32xf32>
    %364 = arith.addf %363, %334 : vector<16x32xf32>
    %c1_231 = arith.constant 1 : index
    %c0_232 = arith.constant 0 : index
    %c0_233 = arith.constant 0 : index
    %365 = vector.load %arg17[%c1_231, %c0_232, %c0_233] : memref<2x1x32xf32, #tpu.memory_space<vmem>>, vector<1x1x32xf32>
    %366 = vector.shape_cast %365 : vector<1x1x32xf32> to vector<1x32xf32>
    %c1_234 = arith.constant 1 : index
    %c0_235 = arith.constant 0 : index
    %c0_236 = arith.constant 0 : index
    %367 = vector.load %arg18[%c1_234, %c0_235, %c0_236] : memref<2x1x32xf32, #tpu.memory_space<vmem>>, vector<1x1x32xf32>
    %368 = vector.shape_cast %367 : vector<1x1x32xf32> to vector<1x32xf32>
    %cst_237 = arith.constant dense<0.000000e+00> : vector<16xf32>
    %369 = vector.multi_reduction <add>, %364, %cst_237 [1] : vector<16x32xf32> to vector<16xf32>
    %370 = vector.shape_cast %369 : vector<16xf32> to vector<16x1xf32>
    %371 = arith.mulf %364, %364 : vector<16x32xf32>
    %cst_238 = arith.constant dense<0.000000e+00> : vector<16xf32>
    %372 = vector.multi_reduction <add>, %371, %cst_238 [1] : vector<16x32xf32> to vector<16xf32>
    %373 = vector.shape_cast %372 : vector<16xf32> to vector<16x1xf32>
    %cst_239 = arith.constant 3.125000e-02 : f32
    %374 = vector.broadcast %cst_239 : f32 to vector<16x1xf32>
    %375 = arith.mulf %370, %374 : vector<16x1xf32>
    %cst_240 = arith.constant 3.125000e-02 : f32
    %376 = vector.broadcast %cst_240 : f32 to vector<16x1xf32>
    %377 = arith.mulf %373, %376 : vector<16x1xf32>
    %378 = arith.mulf %375, %375 : vector<16x1xf32>
    %379 = arith.subf %377, %378 : vector<16x1xf32>
    %380 = vector.broadcast %375 : vector<16x1xf32> to vector<16x32xf32>
    %381 = arith.subf %364, %380 : vector<16x32xf32>
    %cst_241 = arith.constant 9.99999974E-6 : f32
    %382 = vector.broadcast %cst_241 : f32 to vector<16x1xf32>
    %383 = arith.addf %379, %382 : vector<16x1xf32>
    %384 = math.rsqrt %383 : vector<16x1xf32>
    %385 = vector.broadcast %384 : vector<16x1xf32> to vector<16x32xf32>
    %386 = arith.mulf %381, %385 : vector<16x32xf32>
    %387 = vector.broadcast %366 : vector<1x32xf32> to vector<16x32xf32>
    %388 = arith.mulf %386, %387 : vector<16x32xf32>
    %389 = vector.broadcast %368 : vector<1x32xf32> to vector<16x32xf32>
    %390 = arith.addf %388, %389 : vector<16x32xf32>
    %c0_242 = arith.constant 0 : index
    %c0_243 = arith.constant 0 : index
    %391 = vector.load %arg19[%c0_242, %c0_243] : memref<6x16xf32, #tpu.memory_space<vmem>>, vector<6x16xf32>
    %cst_244 = arith.constant dense<0.000000e+00> : vector<6x32xf32>
    %392 = tpu.matmul %391, %390, %cst_244 {dimension_numbers = #tpu.dot_dimension_numbers<[1], [0], [0], [1], [0, 0, 1, 1], [], []>} : vector<6x16xf32>, vector<16x32xf32>, vector<6x32xf32> -> vector<6x32xf32>
    %c0_245 = arith.constant 0 : index
    %c0_246 = arith.constant 0 : index
    %393 = vector.load %arg20[%c0_245, %c0_246] : memref<4x16xf32, #tpu.memory_space<vmem>>, vector<4x16xf32>
    %cst_247 = arith.constant dense<0.000000e+00> : vector<4x32xf32>
    %394 = tpu.matmul %393, %390, %cst_247 {dimension_numbers = #tpu.dot_dimension_numbers<[1], [0], [0], [1], [0, 0, 1, 1], [], []>} : vector<4x16xf32>, vector<16x32xf32>, vector<4x32xf32> -> vector<4x32xf32>
    %c0_248 = arith.constant 0 : index
    %c0_249 = arith.constant 0 : index
    %395 = vector.load %arg21[%c0_248, %c0_249] : memref<4x16xf32, #tpu.memory_space<vmem>>, vector<4x16xf32>
    %cst_250 = arith.constant dense<0.000000e+00> : vector<4x32xf32>
    %396 = tpu.matmul %395, %390, %cst_250 {dimension_numbers = #tpu.dot_dimension_numbers<[1], [0], [0], [1], [0, 0, 1, 1], [], []>} : vector<4x16xf32>, vector<16x32xf32>, vector<4x32xf32> -> vector<4x32xf32>
    %c0_251 = arith.constant 0 : index
    %c0_252 = arith.constant 0 : index
    %397 = vector.load %arg22[%c0_251, %c0_252] : memref<32x128xf32, #tpu.memory_space<vmem>>, vector<32x128xf32>
    %cst_253 = arith.constant dense<0.000000e+00> : vector<6x128xf32>
    %398 = tpu.matmul %392, %397, %cst_253 {dimension_numbers = #tpu.dot_dimension_numbers<[1], [0], [0], [1], [0, 0, 1, 1], [], []>} : vector<6x32xf32>, vector<32x128xf32>, vector<6x128xf32> -> vector<6x128xf32>
    %c0_254 = arith.constant 0 : index
    %c0_255 = arith.constant 0 : index
    %399 = vector.load %arg23[%c0_254, %c0_255] : memref<1x128xf32, #tpu.memory_space<vmem>>, vector<1x128xf32>
    %400 = vector.broadcast %399 : vector<1x128xf32> to vector<6x128xf32>
    %401 = arith.addf %398, %400 : vector<6x128xf32>
    %c0_256 = arith.constant 0 : index
    %c0_257 = arith.constant 0 : index
    %402 = vector.load %arg24[%c0_256, %c0_257] : memref<32x128xf32, #tpu.memory_space<vmem>>, vector<32x128xf32>
    %cst_258 = arith.constant dense<0.000000e+00> : vector<4x128xf32>
    %403 = tpu.matmul %394, %402, %cst_258 {dimension_numbers = #tpu.dot_dimension_numbers<[1], [0], [0], [1], [0, 0, 1, 1], [], []>} : vector<4x32xf32>, vector<32x128xf32>, vector<4x128xf32> -> vector<4x128xf32>
    %c0_259 = arith.constant 0 : index
    %c0_260 = arith.constant 0 : index
    %404 = vector.load %arg25[%c0_259, %c0_260] : memref<32x128xf32, #tpu.memory_space<vmem>>, vector<32x128xf32>
    %cst_261 = arith.constant dense<0.000000e+00> : vector<4x128xf32>
    %405 = tpu.matmul %396, %404, %cst_261 {dimension_numbers = #tpu.dot_dimension_numbers<[1], [0], [0], [1], [0, 0, 1, 1], [], []>} : vector<4x32xf32>, vector<32x128xf32>, vector<4x128xf32> -> vector<4x128xf32>
    %406 = arith.addf %403, %405 : vector<4x128xf32>
    %c0_262 = arith.constant 0 : index
    %c0_263 = arith.constant 0 : index
    %407 = vector.load %arg26[%c0_262, %c0_263] : memref<1x128xf32, #tpu.memory_space<vmem>>, vector<1x128xf32>
    %408 = vector.broadcast %407 : vector<1x128xf32> to vector<4x128xf32>
    %409 = arith.addf %406, %408 : vector<4x128xf32>
    %410 = math.tanh %401 : vector<6x128xf32>
    %cst_264 = arith.constant 5.000000e+00 : f32
    %411 = vector.broadcast %cst_264 : f32 to vector<6x128xf32>
    %412 = arith.mulf %410, %411 : vector<6x128xf32>
    %c0_265 = arith.constant 0 : index
    %c0_266 = arith.constant 0 : index
    %413 = vector.load %arg27[%c0_265, %c0_266] : memref<6x128xf32, #tpu.memory_space<vmem>>, vector<6x128xf32>
    tpu.vector_store %arg27[%c0_265, %c0_266], %412 {strides = array<i32>} : memref<6x128xf32, #tpu.memory_space<vmem>>, vector<6x128xf32>,
    %414 = math.tanh %409 : vector<4x128xf32>
    %cst_267 = arith.constant 5.000000e+00 : f32
    %415 = vector.broadcast %cst_267 : f32 to vector<4x128xf32>
    %416 = arith.mulf %414, %415 : vector<4x128xf32>
    %c0_268 = arith.constant 0 : index
    %c0_269 = arith.constant 0 : index
    %417 = vector.load %arg28[%c0_268, %c0_269] : memref<4x128xf32, #tpu.memory_space<vmem>>, vector<4x128xf32>
    tpu.vector_store %arg28[%c0_268, %c0_269], %416 {strides = array<i32>} : memref<4x128xf32, #tpu.memory_space<vmem>>, vector<4x128xf32>,
    return
  }
}

</mosaic_0001>

<llo_original>
// kernel: tpu_custom_call.1
$region0: #{tpu_custom_call.1}
  #allocation0 [shape = 'u32[]', space=smem, size = 0x4, offset = 0x4, fixed_abs, tag = 'smem constant byte address 0x4 - core index']
  #allocation1 [shape = 'u32[144,128]{1,0:T(1,128)}', space=vmem, size = 0x12000, scoped, tag = 'internal scratch']
  %s0 = inlined_call_operand.vmem [shape: f32[16,32], index: 0, kind: input, shape index: {}]
  %s1 = inlined_call_operand.vmem [shape: f32[1,32], index: 1, kind: input, shape index: {}]
  %s2 = inlined_call_operand.vmem [shape: f32[1,32], index: 2, kind: input, shape index: {}]
  %s3 = inlined_call_operand.vmem [shape: bf16[2,2,32,16], index: 3, kind: input, shape index: {}]
  %s4 = inlined_call_operand.vmem [shape: bf16[2,2,32,16], index: 4, kind: input, shape index: {}]
  %s5 = inlined_call_operand.vmem [shape: bf16[2,2,32,16], index: 5, kind: input, shape index: {}]
  %s6 = inlined_call_operand.vmem [shape: f32[2,2,1,16], index: 6, kind: input, shape index: {}]
  %s7 = inlined_call_operand.vmem [shape: f32[2,2,1,16], index: 7, kind: input, shape index: {}]
  %s8 = inlined_call_operand.vmem [shape: f32[2,2,1,16], index: 8, kind: input, shape index: {}]
  %s9 = inlined_call_operand.vmem [shape: bf16[2,2,16,32], index: 9, kind: input, shape index: {}]
  %s10 = inlined_call_operand.vmem [shape: f32[2,1,32], index: 10, kind: input, shape index: {}]
  %s11 = inlined_call_operand.vmem [shape: f32[2,1,32], index: 11, kind: input, shape index: {}]
  %s12 = inlined_call_operand.vmem [shape: f32[2,1,32], index: 12, kind: input, shape index: {}]
  %s13 = inlined_call_operand.vmem [shape: bf16[2,32,128], index: 13, kind: input, shape index: {}]
  %s14 = inlined_call_operand.vmem [shape: f32[2,1,128], index: 14, kind: input, shape index: {}]
  %s15 = inlined_call_operand.vmem [shape: bf16[2,128,32], index: 15, kind: input, shape index: {}]
  %s16 = inlined_call_operand.vmem [shape: f32[2,1,32], index: 16, kind: input, shape index: {}]
  %s17 = inlined_call_operand.vmem [shape: f32[2,1,32], index: 17, kind: input, shape index: {}]
  %s18 = inlined_call_operand.vmem [shape: f32[2,1,32], index: 18, kind: input, shape index: {}]
  %s19 = inlined_call_operand.vmem [shape: f32[6,16], index: 19, kind: input, shape index: {}]
  %s20 = inlined_call_operand.vmem [shape: f32[4,16], index: 20, kind: input, shape index: {}]
  %s21 = inlined_call_operand.vmem [shape: f32[4,16], index: 21, kind: input, shape index: {}]
  %s22 = inlined_call_operand.vmem [shape: f32[32,128], index: 22, kind: input, shape index: {}]
  %s23 = inlined_call_operand.vmem [shape: f32[1,128], index: 23, kind: input, shape index: {}]
  %s24 = inlined_call_operand.vmem [shape: f32[32,128], index: 24, kind: input, shape index: {}]
  %s25 = inlined_call_operand.vmem [shape: f32[32,128], index: 25, kind: input, shape index: {}]
  %s26 = inlined_call_operand.vmem [shape: f32[1,128], index: 26, kind: input, shape index: {}]
  %s27 = inlined_call_operand.hbm [shape: f32[6,128], index: 27, kind: output, shape index: {0}]
  %s28 = inlined_call_operand.hbm [shape: f32[4,128], index: 28, kind: output, shape index: {1}]
  %29 = xla_tuple %s27, %s28
  %s30 = sld [smem:[#allocation0]]
  $region126: #{tpu_custom_call.1} parent=0
    _
  %s32 = ssub.s32 1, %s30
  %s33 = scalar_select 0, %s32, %s30
  $region1: #{tpu_custom_call.1} parent=0
    #allocation2 [shape = 'u8[4096]{0}', space=vmem, size = 0x1000, scoped, tag = 'output window, operand 0, single buffered']
    #allocation3 [shape = 's32[1]{0}', space=sflag, size = 0x4, scoped, tag = 'scoped memory for tpu_custom_call.1']
    #allocation4 [shape = 'u8[2048]{0}', space=vmem, size = 0x800, scoped, tag = 'output window, operand 1, single buffered']
    #allocation5 [shape = 's32[1]{0}', space=sflag, size = 0x4, scoped, tag = 'scoped memory for tpu_custom_call.1']
    %34 = vsyncpa [#allocation3], 0
    %35 = vsyncpa [#allocation5], 0
    // Predicated region
    $region2: #{tpu_custom_call.1} parent=1 // pred_check
      _
    $region3: #{tpu_custom_call.1} parent=1 // pred_check_branch
      %37 = sbr.rel (0) target = $region5
    $region4: #{tpu_custom_call.1} parent=1 // pred_region
      _
    $region5: #{tpu_custom_call.1} parent=1 // pred_fallthru
      _
    // Predicated region
    $region6: #{tpu_custom_call.1} parent=1 // pred_check
      _
    $region7: #{tpu_custom_call.1} parent=1 // pred_check_branch
      %39 = sbr.rel (0) target = $region9
    $region8: #{tpu_custom_call.1} parent=1 // pred_region
      _
    $region9: #{tpu_custom_call.1} parent=1 // pred_fallthru
      _
    // Predicated region
    $region10: #{tpu_custom_call.1} parent=1 // pred_check
      _
    $region11: #{tpu_custom_call.1} parent=1 // pred_check_branch
      %41 = sbr.rel (0) target = $region13
    $region12: #{tpu_custom_call.1} parent=1 // pred_region
      _
    $region13: #{tpu_custom_call.1} parent=1 // pred_fallthru
      _
    // Predicated region
    $region14: #{tpu_custom_call.1} parent=1 // pred_check
      _
    $region15: #{tpu_custom_call.1} parent=1 // pred_check_branch
      %43 = sbr.rel (0) target = $region17
    $region16: #{tpu_custom_call.1} parent=1 // pred_region
      _
    $region17: #{tpu_custom_call.1} parent=1 // pred_fallthru
      _
    // Predicated region
    $region18: #{tpu_custom_call.1} parent=1 // pred_check
      _
    $region19: #{tpu_custom_call.1} parent=1 // pred_check_branch
      %45 = sbr.rel (0) target = $region21
    $region20: #{tpu_custom_call.1} parent=1 // pred_region
      _
    $region21: #{tpu_custom_call.1} parent=1 // pred_fallthru
      _
    // Predicated region
    $region22: #{tpu_custom_call.1} parent=1 // pred_check
      _
    $region23: #{tpu_custom_call.1} parent=1 // pred_check_branch
      %47 = sbr.rel (0) target = $region25
    $region24: #{tpu_custom_call.1} parent=1 // pred_region
      _
    $region25: #{tpu_custom_call.1} parent=1 // pred_fallthru
      _
    // Predicated region
    $region26: #{tpu_custom_call.1} parent=1 // pred_check
      _
    $region27: #{tpu_custom_call.1} parent=1 // pred_check_branch
      %49 = sbr.rel (0) target = $region29
    $region28: #{tpu_custom_call.1} parent=1 // pred_region
      _
    $region29: #{tpu_custom_call.1} parent=1 // pred_fallthru
      _
    // Predicated region
    $region30: #{tpu_custom_call.1} parent=1 // pred_check
      _
    $region31: #{tpu_custom_call.1} parent=1 // pred_check_branch
      %51 = sbr.rel (0) target = $region33
    $region32: #{tpu_custom_call.1} parent=1 // pred_region
      _
    $region33: #{tpu_custom_call.1} parent=1 // pred_fallthru
      _
    // Predicated region
    $region34: #{tpu_custom_call.1} parent=1 // pred_check
      _
    $region35: #{tpu_custom_call.1} parent=1 // pred_check_branch
      %53 = sbr.rel (0) target = $region37
    $region36: #{tpu_custom_call.1} parent=1 // pred_region
      _
    $region37: #{tpu_custom_call.1} parent=1 // pred_fallthru
      _
    // Predicated region
    $region38: #{tpu_custom_call.1} parent=1 // pred_check
      _
    $region39: #{tpu_custom_call.1} parent=1 // pred_check_branch
      %55 = sbr.rel (0) target = $region41
    $region40: #{tpu_custom_call.1} parent=1 // pred_region
      _
    $region41: #{tpu_custom_call.1} parent=1 // pred_fallthru
      _
    // Predicated region
    $region42: #{tpu_custom_call.1} parent=1 // pred_check
      _
    $region43: #{tpu_custom_call.1} parent=1 // pred_check_branch
      %57 = sbr.rel (0) target = $region45
    $region44: #{tpu_custom_call.1} parent=1 // pred_region
      _
    $region45: #{tpu_custom_call.1} parent=1 // pred_fallthru
      _
    // Predicated region
    $region46: #{tpu_custom_call.1} parent=1 // pred_check
      _
    $region47: #{tpu_custom_call.1} parent=1 // pred_check_branch
      %59 = sbr.rel (0) target = $region49
    $region48: #{tpu_custom_call.1} parent=1 // pred_region
      _
    $region49: #{tpu_custom_call.1} parent=1 // pred_fallthru
      _
    // Predicated region
    $region50: #{tpu_custom_call.1} parent=1 // pred_check
      _
    $region51: #{tpu_custom_call.1} parent=1 // pred_check_branch
      %61 = sbr.rel (0) target = $region53
    $region52: #{tpu_custom_call.1} parent=1 // pred_region
      _
    $region53: #{tpu_custom_call.1} parent=1 // pred_fallthru
      _
    // Predicated region
    $region54: #{tpu_custom_call.1} parent=1 // pred_check
      _
    $region55: #{tpu_custom_call.1} parent=1 // pred_check_branch
      %63 = sbr.rel (0) target = $region57
    $region56: #{tpu_custom_call.1} parent=1 // pred_region
      _
    $region57: #{tpu_custom_call.1} parent=1 // pred_fallthru
      _
    // Predicated region
    $region58: #{tpu_custom_call.1} parent=1 // pred_check
      _
    $region59: #{tpu_custom_call.1} parent=1 // pred_check_branch
      %65 = sbr.rel (0) target = $region61
    $region60: #{tpu_custom_call.1} parent=1 // pred_region
      _
    $region61: #{tpu_custom_call.1} parent=1 // pred_fallthru
      _
    // Predicated region
    $region62: #{tpu_custom_call.1} parent=1 // pred_check
      _
    $region63: #{tpu_custom_call.1} parent=1 // pred_check_branch
      %67 = sbr.rel (0) target = $region65
    $region64: #{tpu_custom_call.1} parent=1 // pred_region
      _
    $region65: #{tpu_custom_call.1} parent=1 // pred_fallthru
      _
    // Predicated region
    $region66: #{tpu_custom_call.1} parent=1 // pred_check
      _
    $region67: #{tpu_custom_call.1} parent=1 // pred_check_branch
      %69 = sbr.rel (0) target = $region69
    $region68: #{tpu_custom_call.1} parent=1 // pred_region
      _
    $region69: #{tpu_custom_call.1} parent=1 // pred_fallthru
      _
    // Predicated region
    $region70: #{tpu_custom_call.1} parent=1 // pred_check
      _
    $region71: #{tpu_custom_call.1} parent=1 // pred_check_branch
      %71 = sbr.rel (0) target = $region73
    $region72: #{tpu_custom_call.1} parent=1 // pred_region
      _
    $region73: #{tpu_custom_call.1} parent=1 // pred_fallthru
      _
    // Predicated region
    $region74: #{tpu_custom_call.1} parent=1 // pred_check
      _
    $region75: #{tpu_custom_call.1} parent=1 // pred_check_branch
      %73 = sbr.rel (0) target = $region77
    $region76: #{tpu_custom_call.1} parent=1 // pred_region
      _
    $region77: #{tpu_custom_call.1} parent=1 // pred_fallthru
      _
    // Predicated region
    $region78: #{tpu_custom_call.1} parent=1 // pred_check
      _
    $region79: #{tpu_custom_call.1} parent=1 // pred_check_branch
      %75 = sbr.rel (0) target = $region81
    $region80: #{tpu_custom_call.1} parent=1 // pred_region
      _
    $region81: #{tpu_custom_call.1} parent=1 // pred_fallthru
      _
    // Predicated region
    $region82: #{tpu_custom_call.1} parent=1 // pred_check
      _
    $region83: #{tpu_custom_call.1} parent=1 // pred_check_branch
      %77 = sbr.rel (0) target = $region85
    $region84: #{tpu_custom_call.1} parent=1 // pred_region
      _
    $region85: #{tpu_custom_call.1} parent=1 // pred_fallthru
      _
    // Predicated region
    $region86: #{tpu_custom_call.1} parent=1 // pred_check
      _
    $region87: #{tpu_custom_call.1} parent=1 // pred_check_branch
      %79 = sbr.rel (0) target = $region89
    $region88: #{tpu_custom_call.1} parent=1 // pred_region
      _
    $region89: #{tpu_custom_call.1} parent=1 // pred_fallthru
      _
    // Predicated region
    $region90: #{tpu_custom_call.1} parent=1 // pred_check
      _
    $region91: #{tpu_custom_call.1} parent=1 // pred_check_branch
      %81 = sbr.rel (0) target = $region93
    $region92: #{tpu_custom_call.1} parent=1 // pred_region
      _
    $region93: #{tpu_custom_call.1} parent=1 // pred_fallthru
      _
    // Predicated region
    $region94: #{tpu_custom_call.1} parent=1 // pred_check
      _
    $region95: #{tpu_custom_call.1} parent=1 // pred_check_branch
      %83 = sbr.rel (0) target = $region97
    $region96: #{tpu_custom_call.1} parent=1 // pred_region
      _
    $region97: #{tpu_custom_call.1} parent=1 // pred_fallthru
      _
    // Predicated region
    $region98: #{tpu_custom_call.1} parent=1 // pred_check
      _
    $region99: #{tpu_custom_call.1} parent=1 // pred_check_branch
      %85 = sbr.rel (0) target = $region101
    $region100: #{tpu_custom_call.1} parent=1 // pred_region
      _
    $region101: #{tpu_custom_call.1} parent=1 // pred_fallthru
      _
    // Predicated region
    $region102: #{tpu_custom_call.1} parent=1 // pred_check
      _
    $region103: #{tpu_custom_call.1} parent=1 // pred_check_branch
      %87 = sbr.rel (0) target = $region105
    $region104: #{tpu_custom_call.1} parent=1 // pred_region
      _
    $region105: #{tpu_custom_call.1} parent=1 // pred_fallthru
      _
    // Predicated region
    $region106: #{tpu_custom_call.1} parent=1 // pred_check
      _
    $region107: #{tpu_custom_call.1} parent=1 // pred_check_branch
      %89 = sbr.rel (0) target = $region109
    $region108: #{tpu_custom_call.1} parent=1 // pred_region
      _
    $region109: #{tpu_custom_call.1} parent=1 // pred_fallthru
      _
    %v91 = vld [vmem:[%s0] sm:$0xff]
    %v92 = vld [vmem:[%s0 + $0x8] sm:$0xff]
    %v93 = vld [vmem:[%s1] sm:$0x1]
    %v94 = vld [vmem:[%s2] sm:$0x1]
    %vm95 = vcmask 261120
    %v96 = vsel %vm95, %v91, 0.0
    %97 = vadd.xlane.f32.xlu0 %v96
    %v98 = vpop.xlane.xlu0 %97
    %v99 = vsel %vm95, %v92, 0.0
    %100 = vadd.xlane.f32.xlu0 %v99
    %v101 = vpop.xlane.xlu0 %100
    %v102 = vmul.f32 %v91, %v91
    %v103 = vmul.f32 %v92, %v92
    %v104 = vsel %vm95, %v102, 0.0
    %105 = vadd.xlane.f32.xlu0 %v104
    %v106 = vpop.xlane.xlu0 %105
    %v107 = vsel %vm95, %v103, 0.0
    %108 = vadd.xlane.f32.xlu0 %v107
    %v109 = vpop.xlane.xlu0 %108
    %v110 = vmul.f32 %v98, 0.03125
    %v111 = vmul.f32 %v101, 0.03125
    %v112 = vmul.f32 %v106, 0.03125
    %v113 = vmul.f32 %v109, 0.03125
    %v114 = vmul.f32 %v110, %v110
    %v115 = vmul.f32 %v111, %v111
    %v116 = vsub.f32 %v112, %v114
    %v117 = vsub.f32 %v113, %v115
    %v118 = vsub.f32 %v91, %v110
    %v119 = vsub.f32 %v92, %v111
    %v120 = vadd.f32 %v116, 1e-05
    %v121 = vadd.f32 %v117, 1e-05
    %v122 = vrsqrt.pop %v120
    %v123 = vrsqrt.pop %v121
    %v124 = vmul.f32 %v118, %v122
    %v125 = vmul.f32 %v119, %v123
    %v127 = vlaneseq
    %v128 = vshrl.u32 %v127, 7
    %v129 = vsub.s32 0, %v128
    %v130 = vrot.slane %v93, %v129
    %v132 = vmul.f32 %v124, %v130
    %v133 = vmul.f32 %v125, %v130
    %v135 = vlaneseq
    %v136 = vshrl.u32 %v135, 7
    %v137 = vsub.s32 0, %v136
    %v138 = vrot.slane %v94, %v137
    %v140 = vadd.f32 %v132, %v138
    %v141 = vadd.f32 %v133, %v138
    %v142 = vpack.c.bf16 %v141, %v140
    %v143 = vld [vmem:[%s3] sm:$0xf]
    %v144 = vld [vmem:[%s3 + $0x4] sm:$0xf]
    %v145 = vld [vmem:[%s3 + $0x8] sm:$0xf]
    %v146 = vld [vmem:[%s3 + $0xc] sm:$0xf]
    %v147 = vld [vmem:[%s6] sm:$0x1]
    %v149 = vlaneseq
    %v150 = vshrl.u32 %v149, 7
    %v151 = vsub.s32 0, %v150
    %v152 = vrot.slane %v147, %v151
    %v158 = vunpack.c.l.b16 %v143
    %v159 = vunpack.c.l.b16 %v144
    %v160 = vunpack.c.l.b16 %v145
    %v161 = vunpack.c.l.b16 %v146
    %v162 = vpack.c.b16 %v159, %v158
    %v163 = vpack.c.b16 %v161, %v160
    %v167 = vsel %vm95, %v142, 0
    %169 = vmatprep.subr.bf16.mxu0 0
    %170 = vmatpush1.bf16.msra.mxu0 0
    %171 = vmatprep.subr.bf16.mxu0 0
    %172 = vmatpush1.bf16.msra.mxu0 0
    %173 = vmatprep.subr.bf16.mxu0 0
    %174 = vmatpush1.bf16.msra.mxu0 0
    %175 = vmatprep.subr.bf16.mxu0 0
    %176 = vmatpush1.bf16.msra.mxu0 0
    %177 = vmatprep.subr.bf16.mxu0 0
    %178 = vmatpush1.bf16.msra.mxu0 0
    %179 = vmatprep.subr.bf16.mxu0 0
    %180 = vmatpush1.bf16.msra.mxu0 0
    %181 = vmatprep.subr.bf16.mxu0 0
    %182 = vmatpush1.bf16.msra.mxu0 %v163
    %183 = vmatprep.subr.bf16.mxu0 0
    %184 = vmatpush1.bf16.msra.mxu0 %v162
    %185 = vmatprep.subr.bf16.mxu0 0
    %186 = vmatpush2.bf16.msra.mxu0 0
    %187 = vmatprep.subr.bf16.mxu0 0
    %188 = vmatpush2.bf16.msra.mxu0 0
    %189 = vmatprep.subr.bf16.mxu0 0
    %190 = vmatpush2.bf16.msra.mxu0 0
    %191 = vmatprep.subr.bf16.mxu0 0
    %192 = vmatpush2.bf16.msra.mxu0 0
    %193 = vmatprep.subr.bf16.mxu0 0
    %194 = vmatpush2.bf16.msra.mxu0 0
    %195 = vmatprep.subr.bf16.mxu0 0
    %196 = vmatpush2.bf16.msra.mxu0 0
    %197 = vmatprep.subr.bf16.mxu0 0
    %198 = vmatpush2.bf16.msra.mxu0 0
    %199 = vmatprep.subr.bf16.mxu0 0
    %200 = vmatpush2.bf16.msra.mxu0 0
    %201 = vmatprep.mubr.bf16.mxu0 0
    %202 = vmatmul.mubr.bf16.gmra.mxu0 %v167
    %v203 = vpop.f32.mrf.mxu0
    %v204 = vadd.f32 %v152, %v203
    %v205 = vpop.f32.mrf.mxu0
    %v206 = vpop.f32.mrf.mxu0
    %v207 = vadd.f32 %v152, %v206
    %v208 = vpop.f32.mrf.mxu0
    %209 = vdwg.mxu0
    %v210 = vld [vmem:[%s4] sm:$0xf]
    %v211 = vld [vmem:[%s4 + $0x4] sm:$0xf]
    %v212 = vld [vmem:[%s4 + $0x8] sm:$0xf]
    %v213 = vld [vmem:[%s4 + $0xc] sm:$0xf]
    %v214 = vld [vmem:[%s7] sm:$0x1]
    %v216 = vlaneseq
    %v217 = vshrl.u32 %v216, 7
    %v218 = vsub.s32 0, %v217
    %v219 = vrot.slane %v214, %v218
    %v225 = vunpack.c.l.b16 %v210
    %v226 = vunpack.c.l.b16 %v211
    %v227 = vunpack.c.l.b16 %v212
    %v228 = vunpack.c.l.b16 %v213
    %v229 = vpack.c.b16 %v226, %v225
    %v230 = vpack.c.b16 %v228, %v227
    %233 = vmatprep.subr.bf16.mxu0 0
    %234 = vmatpush1.bf16.msra.mxu0 0
    %235 = vmatprep.subr.bf16.mxu0 0
    %236 = vmatpush1.bf16.msra.mxu0 0
    %237 = vmatprep.subr.bf16.mxu0 0
    %238 = vmatpush1.bf16.msra.mxu0 0
    %239 = vmatprep.subr.bf16.mxu0 0
    %240 = vmatpush1.bf16.msra.mxu0 0
    %241 = vmatprep.subr.bf16.mxu0 0
    %242 = vmatpush1.bf16.msra.mxu0 0
    %243 = vmatprep.subr.bf16.mxu0 0
    %244 = vmatpush1.bf16.msra.mxu0 0
    %245 = vmatprep.subr.bf16.mxu0 0
    %246 = vmatpush1.bf16.msra.mxu0 %v230
    %247 = vmatprep.subr.bf16.mxu0 0
    %248 = vmatpush1.bf16.msra.mxu0 %v229
    %249 = vmatprep.subr.bf16.mxu0 0
    %250 = vmatpush2.bf16.msra.mxu0 0
    %251 = vmatprep.subr.bf16.mxu0 0
    %252 = vmatpush2.bf16.msra.mxu0 0
    %253 = vmatprep.subr.bf16.mxu0 0
    %254 = vmatpush2.bf16.msra.mxu0 0
    %255 = vmatprep.subr.bf16.mxu0 0
    %256 = vmatpush2.bf16.msra.mxu0 0
    %257 = vmatprep.subr.bf16.mxu0 0
    %258 = vmatpush2.bf16.msra.mxu0 0
    %259 = vmatprep.subr.bf16.mxu0 0
    %260 = vmatpush2.bf16.msra.mxu0 0
    %261 = vmatprep.subr.bf16.mxu0 0
    %262 = vmatpush2.bf16.msra.mxu0 0
    %263 = vmatprep.subr.bf16.mxu0 0
    %264 = vmatpush2.bf16.msra.mxu0 0
    %265 = vmatprep.mubr.bf16.mxu0 0
    %266 = vmatmul.mubr.bf16.gmra.mxu0 %v167
    %v267 = vpop.f32.mrf.mxu0
    %v268 = vadd.f32 %v219, %v267
    %v269 = vpop.f32.mrf.mxu0
    %v270 = vpop.f32.mrf.mxu0
    %v271 = vadd.f32 %v219, %v270
    %v272 = vpop.f32.mrf.mxu0
    %273 = vdwg.mxu0
    %v274 = vld [vmem:[%s5] sm:$0xf]
    %v275 = vld [vmem:[%s5 + $0x4] sm:$0xf]
    %v276 = vld [vmem:[%s5 + $0x8] sm:$0xf]
    %v277 = vld [vmem:[%s5 + $0xc] sm:$0xf]
    %v278 = vld [vmem:[%s8] sm:$0x1]
    %v280 = vlaneseq
    %v281 = vshrl.u32 %v280, 7
    %v282 = vsub.s32 0, %v281
    %v283 = vrot.slane %v278, %v282
    %v289 = vunpack.c.l.b16 %v274
    %v290 = vunpack.c.l.b16 %v275
    %v291 = vunpack.c.l.b16 %v276
    %v292 = vunpack.c.l.b16 %v277
    %v293 = vpack.c.b16 %v290, %v289
    %v294 = vpack.c.b16 %v292, %v291
    %297 = vmatprep.subr.bf16.mxu0 0
    %298 = vmatpush1.bf16.msra.mxu0 0
    %299 = vmatprep.subr.bf16.mxu0 0
    %300 = vmatpush1.bf16.msra.mxu0 0
    %301 = vmatprep.subr.bf16.mxu0 0
    %302 = vmatpush1.bf16.msra.mxu0 0
    %303 = vmatprep.subr.bf16.mxu0 0
    %304 = vmatpush1.bf16.msra.mxu0 0
    %305 = vmatprep.subr.bf16.mxu0 0
    %306 = vmatpush1.bf16.msra.mxu0 0
    %307 = vmatprep.subr.bf16.mxu0 0
    %308 = vmatpush1.bf16.msra.mxu0 0
    %309 = vmatprep.subr.bf16.mxu0 0
    %310 = vmatpush1.bf16.msra.mxu0 %v294
    %311 = vmatprep.subr.bf16.mxu0 0
    %312 = vmatpush1.bf16.msra.mxu0 %v293
    %313 = vmatprep.subr.bf16.mxu0 0
    %314 = vmatpush2.bf16.msra.mxu0 0
    %315 = vmatprep.subr.bf16.mxu0 0
    %316 = vmatpush2.bf16.msra.mxu0 0
    %317 = vmatprep.subr.bf16.mxu0 0
    %318 = vmatpush2.bf16.msra.mxu0 0
    %319 = vmatprep.subr.bf16.mxu0 0
    %320 = vmatpush2.bf16.msra.mxu0 0
    %321 = vmatprep.subr.bf16.mxu0 0
    %322 = vmatpush2.bf16.msra.mxu0 0
    %323 = vmatprep.subr.bf16.mxu0 0
    %324 = vmatpush2.bf16.msra.mxu0 0
    %325 = vmatprep.subr.bf16.mxu0 0
    %326 = vmatpush2.bf16.msra.mxu0 0
    %327 = vmatprep.subr.bf16.mxu0 0
    %328 = vmatpush2.bf16.msra.mxu0 0
    %329 = vmatprep.mubr.bf16.mxu0 0
    %330 = vmatmul.mubr.bf16.gmra.mxu0 %v167
    %v331 = vpop.f32.mrf.mxu0
    %v332 = vadd.f32 %v283, %v331
    %v333 = vpop.f32.mrf.mxu0
    %v334 = vpop.f32.mrf.mxu0
    %v335 = vadd.f32 %v283, %v334
    %v336 = vpop.f32.mrf.mxu0
    %337 = vdwg.mxu0
    %v338 = vpack.c.bf16 %v204, %v204
    %v339 = vpack.c.bf16 %v207, %v207
    %v340 = vpack.c.bf16 %v268, %v268
    %v341 = vpack.c.bf16 %v271, %v271
    %v342 = vpack.c.bf16 %v332, %v332
    %v343 = vpack.c.bf16 %v335, %v335
    %vm344 = vcmask 130048
    %v346 = vsel %vm344, %v338, 0
    %v349 = vsel %vm344, %v340, 0
    %351 = vmatprep.subr.bf16.mxu0 0
    %352 = vmatpush1.bf16.xpose.msra.mxu0 0
    %353 = vmatprep.subr.bf16.mxu0 0
    %354 = vmatpush1.bf16.xpose.msra.mxu0 0
    %355 = vmatprep.subr.bf16.mxu0 0
    %356 = vmatpush1.bf16.xpose.msra.mxu0 0
    %357 = vmatprep.subr.bf16.mxu0 0
    %358 = vmatpush1.bf16.xpose.msra.mxu0 0
    %359 = vmatprep.subr.bf16.mxu0 0
    %360 = vmatpush1.bf16.xpose.msra.mxu0 0
    %361 = vmatprep.subr.bf16.mxu0 0
    %362 = vmatpush1.bf16.xpose.msra.mxu0 0
    %363 = vmatprep.subr.bf16.mxu0 0
    %364 = vmatpush1.bf16.xpose.msra.mxu0 0
    %365 = vmatprep.subr.bf16.mxu0 0
    %366 = vmatpush1.bf16.xpose.msra.mxu0 %v349
    %367 = vmatprep.subr.bf16.mxu0 0
    %368 = vmatpush2.bf16.xpose.msra.mxu0 0
    %369 = vmatprep.subr.bf16.mxu0 0
    %370 = vmatpush2.bf16.xpose.msra.mxu0 0
    %371 = vmatprep.subr.bf16.mxu0 0
    %372 = vmatpush2.bf16.xpose.msra.mxu0 0
    %373 = vmatprep.subr.bf16.mxu0 0
    %374 = vmatpush2.bf16.xpose.msra.mxu0 0
    %375 = vmatprep.subr.bf16.mxu0 0
    %376 = vmatpush2.bf16.xpose.msra.mxu0 0
    %377 = vmatprep.subr.bf16.mxu0 0
    %378 = vmatpush2.bf16.xpose.msra.mxu0 0
    %379 = vmatprep.subr.bf16.mxu0 0
    %380 = vmatpush2.bf16.xpose.msra.mxu0 0
    %381 = vmatprep.subr.bf16.mxu0 0
    %382 = vmatpush2.bf16.xpose.msra.mxu0 0
    %383 = vmatprep.mubr.bf16.mxu0 0
    %384 = vmatmul.mubr.bf16.gmra.mxu0 %v346
    %v385 = vpop.f32.mrf.mxu0
    %v386 = vadd.f32 0.0, %v385
    %v387 = vpop.f32.mrf.mxu0
    %v388 = vpop.f32.mrf.mxu0
    %v389 = vpop.f32.mrf.mxu0
    %390 = vdwg.mxu0
    %v392 = vsel %vm344, %v339, 0
    %v395 = vsel %vm344, %v341, 0
    %397 = vmatprep.subr.bf16.mxu0 0
    %398 = vmatpush1.bf16.xpose.msra.mxu0 0
    %399 = vmatprep.subr.bf16.mxu0 0
    %400 = vmatpush1.bf16.xpose.msra.mxu0 0
    %401 = vmatprep.subr.bf16.mxu0 0
    %402 = vmatpush1.bf16.xpose.msra.mxu0 0
    %403 = vmatprep.subr.bf16.mxu0 0
    %404 = vmatpush1.bf16.xpose.msra.mxu0 0
    %405 = vmatprep.subr.bf16.mxu0 0
    %406 = vmatpush1.bf16.xpose.msra.mxu0 0
    %407 = vmatprep.subr.bf16.mxu0 0
    %408 = vmatpush1.bf16.xpose.msra.mxu0 0
    %409 = vmatprep.subr.bf16.mxu0 0
    %410 = vmatpush1.bf16.xpose.msra.mxu0 0
    %411 = vmatprep.subr.bf16.mxu0 0
    %412 = vmatpush1.bf16.xpose.msra.mxu0 %v395
    %413 = vmatprep.subr.bf16.mxu0 0
    %414 = vmatpush2.bf16.xpose.msra.mxu0 0
    %415 = vmatprep.subr.bf16.mxu0 0
    %416 = vmatpush2.bf16.xpose.msra.mxu0 0
    %417 = vmatprep.subr.bf16.mxu0 0
    %418 = vmatpush2.bf16.xpose.msra.mxu0 0
    %419 = vmatprep.subr.bf16.mxu0 0
    %420 = vmatpush2.bf16.xpose.msra.mxu0 0
    %421 = vmatprep.subr.bf16.mxu0 0
    %422 = vmatpush2.bf16.xpose.msra.mxu0 0
    %423 = vmatprep.subr.bf16.mxu0 0
    %424 = vmatpush2.bf16.xpose.msra.mxu0 0
    %425 = vmatprep.subr.bf16.mxu0 0
    %426 = vmatpush2.bf16.xpose.msra.mxu0 0
    %427 = vmatprep.subr.bf16.mxu0 0
    %428 = vmatpush2.bf16.xpose.msra.mxu0 0
    %429 = vmatprep.mubr.bf16.mxu0 0
    %430 = vmatmul.mubr.bf16.gmra.mxu0 %v392
    %v431 = vpop.f32.mrf.mxu0
    %v432 = vadd.f32 0.0, %v431
    %v433 = vpop.f32.mrf.mxu0
    %v434 = vpop.f32.mrf.mxu0
    %v435 = vpop.f32.mrf.mxu0
    %436 = vdwg.mxu0
    %v437 = vmul.f32 %v386, 0.25
    %v438 = vmul.f32 %v432, 0.25
    %vm439 = vcmask 64512
    %v440 = vsel %vm439, %v437, -inf
    %441 = vmax.xlane.f32.xlu0 %v440
    %v442 = vpop.xlane.xlu0 %441
    %v443 = vsel %vm439, %v438, -inf
    %444 = vmax.xlane.f32.xlu0 %v443
    %v445 = vpop.xlane.xlu0 %444
    %v446 = vsub.f32 %v437, %v442
    %v447 = vsub.f32 %v438, %v445
    %v448 = vmul.f32 %v446, 1.442695
    %v449 = vpow.pop %v448
    %v450 = vmul.f32 %v447, 1.442695
    %v451 = vpow.pop %v450
    %v452 = vsel %vm439, %v449, 0.0
    %453 = vadd.xlane.f32.xlu0 %v452
    %v454 = vpop.xlane.xlu0 %453
    %v455 = vsel %vm439, %v451, 0.0
    %456 = vadd.xlane.f32.xlu0 %v455
    %v457 = vpop.xlane.xlu0 %456
    %v458 = vrcp.pop %v454
    %v459 = vrcp.pop %v457
    %v460 = vmul.f32 %v449, %v458
    %v461 = vmul.f32 %v451, %v459
    %v462 = vpack.c.bf16 %v460, %v460
    %v463 = vpack.c.bf16 %v461, %v461
    %v465 = vsel %vm439, %v462, 0
    %vm467 = vcmask 1043456
    %v469 = vsel %vm467, %v342, 0
    %471 = vmatprep.subr.bf16.mxu0 0
    %472 = vmatpush1.bf16.msra.mxu0 0
    %473 = vmatprep.subr.bf16.mxu0 0
    %474 = vmatpush1.bf16.msra.mxu0 0
    %475 = vmatprep.subr.bf16.mxu0 0
    %476 = vmatpush1.bf16.msra.mxu0 0
    %477 = vmatprep.subr.bf16.mxu0 0
    %478 = vmatpush1.bf16.msra.mxu0 0
    %479 = vmatprep.subr.bf16.mxu0 0
    %480 = vmatpush1.bf16.msra.mxu0 0
    %481 = vmatprep.subr.bf16.mxu0 0
    %482 = vmatpush1.bf16.msra.mxu0 0
    %483 = vmatprep.subr.bf16.mxu0 0
    %484 = vmatpush1.bf16.msra.mxu0 0
    %485 = vmatprep.subr.bf16.mxu0 0
    %486 = vmatpush1.bf16.msra.mxu0 %v469
    %487 = vmatprep.subr.bf16.mxu0 0
    %488 = vmatpush2.bf16.msra.mxu0 0
    %489 = vmatprep.subr.bf16.mxu0 0
    %490 = vmatpush2.bf16.msra.mxu0 0
    %491 = vmatprep.subr.bf16.mxu0 0
    %492 = vmatpush2.bf16.msra.mxu0 0
    %493 = vmatprep.subr.bf16.mxu0 0
    %494 = vmatpush2.bf16.msra.mxu0 0
    %495 = vmatprep.subr.bf16.mxu0 0
    %496 = vmatpush2.bf16.msra.mxu0 0
    %497 = vmatprep.subr.bf16.mxu0 0
    %498 = vmatpush2.bf16.msra.mxu0 0
    %499 = vmatprep.subr.bf16.mxu0 0
    %500 = vmatpush2.bf16.msra.mxu0 0
    %501 = vmatprep.subr.bf16.mxu0 0
    %502 = vmatpush2.bf16.msra.mxu0 0
    %503 = vmatprep.mubr.bf16.mxu0 0
    %504 = vmatmul.mubr.bf16.gmra.mxu0 %v465
    %v505 = vpop.f32.mrf.mxu0
    %v506 = vadd.f32 0.0, %v505
    %v507 = vpop.f32.mrf.mxu0
    %v508 = vpop.f32.mrf.mxu0
    %v509 = vpop.f32.mrf.mxu0
    %510 = vdwg.mxu0
    %v512 = vsel %vm439, %v463, 0
    %v515 = vsel %vm467, %v343, 0
    %517 = vmatprep.subr.bf16.mxu0 0
    %518 = vmatpush1.bf16.msra.mxu0 0
    %519 = vmatprep.subr.bf16.mxu0 0
    %520 = vmatpush1.bf16.msra.mxu0 0
    %521 = vmatprep.subr.bf16.mxu0 0
    %522 = vmatpush1.bf16.msra.mxu0 0
    %523 = vmatprep.subr.bf16.mxu0 0
    %524 = vmatpush1.bf16.msra.mxu0 0
    %525 = vmatprep.subr.bf16.mxu0 0
    %526 = vmatpush1.bf16.msra.mxu0 0
    %527 = vmatprep.subr.bf16.mxu0 0
    %528 = vmatpush1.bf16.msra.mxu0 0
    %529 = vmatprep.subr.bf16.mxu0 0
    %530 = vmatpush1.bf16.msra.mxu0 0
    %531 = vmatprep.subr.bf16.mxu0 0
    %532 = vmatpush1.bf16.msra.mxu0 %v515
    %533 = vmatprep.subr.bf16.mxu0 0
    %534 = vmatpush2.bf16.msra.mxu0 0
    %535 = vmatprep.subr.bf16.mxu0 0
    %536 = vmatpush2.bf16.msra.mxu0 0
    %537 = vmatprep.subr.bf16.mxu0 0
    %538 = vmatpush2.bf16.msra.mxu0 0
    %539 = vmatprep.subr.bf16.mxu0 0
    %540 = vmatpush2.bf16.msra.mxu0 0
    %541 = vmatprep.subr.bf16.mxu0 0
    %542 = vmatpush2.bf16.msra.mxu0 0
    %543 = vmatprep.subr.bf16.mxu0 0
    %544 = vmatpush2.bf16.msra.mxu0 0
    %545 = vmatprep.subr.bf16.mxu0 0
    %546 = vmatpush2.bf16.msra.mxu0 0
    %547 = vmatprep.subr.bf16.mxu0 0
    %548 = vmatpush2.bf16.msra.mxu0 0
    %549 = vmatprep.mubr.bf16.mxu0 0
    %550 = vmatmul.mubr.bf16.gmra.mxu0 %v512
    %v551 = vpop.f32.mrf.mxu0
    %v552 = vadd.f32 0.0, %v551
    %v553 = vpop.f32.mrf.mxu0
    %v554 = vpop.f32.mrf.mxu0
    %v555 = vpop.f32.mrf.mxu0
    %556 = vdwg.mxu0
    %v557 = vpack.c.bf16 %v552, %v506
    %v558 = vld [vmem:[%s9] sm:$0xf]
    %v559 = vld [vmem:[%s9 + $0x4] sm:$0xf]
    %s560 = scalar_lea.vmem %s3, 16
    %v561 = vld [vmem:[%s560] sm:$0xf]
    %v562 = vld [vmem:[%s560 + $0x4] sm:$0xf]
    %v563 = vld [vmem:[%s560 + $0x8] sm:$0xf]
    %v564 = vld [vmem:[%s560 + $0xc] sm:$0xf]
    %s565 = scalar_lea.vmem %s6, 1
    %v566 = vld [vmem:[%s565] sm:$0x1]
    %v568 = vlaneseq
    %v569 = vshrl.u32 %v568, 7
    %v570 = vsub.s32 0, %v569
    %v571 = vrot.slane %v566, %v570
    %v577 = vunpack.c.l.b16 %v561
    %v578 = vunpack.c.l.b16 %v562
    %v579 = vunpack.c.l.b16 %v563
    %v580 = vunpack.c.l.b16 %v564
    %v581 = vpack.c.b16 %v578, %v577
    %v582 = vpack.c.b16 %v580, %v579
    %585 = vmatprep.subr.bf16.mxu0 0
    %586 = vmatpush1.bf16.msra.mxu0 0
    %587 = vmatprep.subr.bf16.mxu0 0
    %588 = vmatpush1.bf16.msra.mxu0 0
    %589 = vmatprep.subr.bf16.mxu0 0
    %590 = vmatpush1.bf16.msra.mxu0 0
    %591 = vmatprep.subr.bf16.mxu0 0
    %592 = vmatpush1.bf16.msra.mxu0 0
    %593 = vmatprep.subr.bf16.mxu0 0
    %594 = vmatpush1.bf16.msra.mxu0 0
    %595 = vmatprep.subr.bf16.mxu0 0
    %596 = vmatpush1.bf16.msra.mxu0 0
    %597 = vmatprep.subr.bf16.mxu0 0
    %598 = vmatpush1.bf16.msra.mxu0 %v582
    %599 = vmatprep.subr.bf16.mxu0 0
    %600 = vmatpush1.bf16.msra.mxu0 %v581
    %601 = vmatprep.subr.bf16.mxu0 0
    %602 = vmatpush2.bf16.msra.mxu0 0
    %603 = vmatprep.subr.bf16.mxu0 0
    %604 = vmatpush2.bf16.msra.mxu0 0
    %605 = vmatprep.subr.bf16.mxu0 0
    %606 = vmatpush2.bf16.msra.mxu0 0
    %607 = vmatprep.subr.bf16.mxu0 0
    %608 = vmatpush2.bf16.msra.mxu0 0
    %609 = vmatprep.subr.bf16.mxu0 0
    %610 = vmatpush2.bf16.msra.mxu0 0
    %611 = vmatprep.subr.bf16.mxu0 0
    %612 = vmatpush2.bf16.msra.mxu0 0
    %613 = vmatprep.subr.bf16.mxu0 0
    %614 = vmatpush2.bf16.msra.mxu0 0
    %615 = vmatprep.subr.bf16.mxu0 0
    %616 = vmatpush2.bf16.msra.mxu0 0
    %617 = vmatprep.mubr.bf16.mxu0 0
    %618 = vmatmul.mubr.bf16.gmra.mxu0 %v167
    %v619 = vpop.f32.mrf.mxu0
    %v620 = vadd.f32 %v571, %v619
    %v621 = vpop.f32.mrf.mxu0
    %v622 = vpop.f32.mrf.mxu0
    %v623 = vadd.f32 %v571, %v622
    %v624 = vpop.f32.mrf.mxu0
    %625 = vdwg.mxu0
    %s626 = scalar_lea.vmem %s4, 16
    %v627 = vld [vmem:[%s626] sm:$0xf]
    %v628 = vld [vmem:[%s626 + $0x4] sm:$0xf]
    %v629 = vld [vmem:[%s626 + $0x8] sm:$0xf]
    %v630 = vld [vmem:[%s626 + $0xc] sm:$0xf]
    %s631 = scalar_lea.vmem %s7, 1
    %v632 = vld [vmem:[%s631] sm:$0x1]
    %v634 = vlaneseq
    %v635 = vshrl.u32 %v634, 7
    %v636 = vsub.s32 0, %v635
    %v637 = vrot.slane %v632, %v636
    %v643 = vunpack.c.l.b16 %v627
    %v644 = vunpack.c.l.b16 %v628
    %v645 = vunpack.c.l.b16 %v629
    %v646 = vunpack.c.l.b16 %v630
    %v647 = vpack.c.b16 %v644, %v643
    %v648 = vpack.c.b16 %v646, %v645
    %651 = vmatprep.subr.bf16.mxu0 0
    %652 = vmatpush1.bf16.msra.mxu0 0
    %653 = vmatprep.subr.bf16.mxu0 0
    %654 = vmatpush1.bf16.msra.mxu0 0
    %655 = vmatprep.subr.bf16.mxu0 0
    %656 = vmatpush1.bf16.msra.mxu0 0
    %657 = vmatprep.subr.bf16.mxu0 0
    %658 = vmatpush1.bf16.msra.mxu0 0
    %659 = vmatprep.subr.bf16.mxu0 0
    %660 = vmatpush1.bf16.msra.mxu0 0
    %661 = vmatprep.subr.bf16.mxu0 0
    %662 = vmatpush1.bf16.msra.mxu0 0
    %663 = vmatprep.subr.bf16.mxu0 0
    %664 = vmatpush1.bf16.msra.mxu0 %v648
    %665 = vmatprep.subr.bf16.mxu0 0
    %666 = vmatpush1.bf16.msra.mxu0 %v647
    %667 = vmatprep.subr.bf16.mxu0 0
    %668 = vmatpush2.bf16.msra.mxu0 0
    %669 = vmatprep.subr.bf16.mxu0 0
    %670 = vmatpush2.bf16.msra.mxu0 0
    %671 = vmatprep.subr.bf16.mxu0 0
    %672 = vmatpush2.bf16.msra.mxu0 0
    %673 = vmatprep.subr.bf16.mxu0 0
    %674 = vmatpush2.bf16.msra.mxu0 0
    %675 = vmatprep.subr.bf16.mxu0 0
    %676 = vmatpush2.bf16.msra.mxu0 0
    %677 = vmatprep.subr.bf16.mxu0 0
    %678 = vmatpush2.bf16.msra.mxu0 0
    %679 = vmatprep.subr.bf16.mxu0 0
    %680 = vmatpush2.bf16.msra.mxu0 0
    %681 = vmatprep.subr.bf16.mxu0 0
    %682 = vmatpush2.bf16.msra.mxu0 0
    %683 = vmatprep.mubr.bf16.mxu0 0
    %684 = vmatmul.mubr.bf16.gmra.mxu0 %v167
    %v685 = vpop.f32.mrf.mxu0
    %v686 = vadd.f32 %v637, %v685
    %v687 = vpop.f32.mrf.mxu0
    %v688 = vpop.f32.mrf.mxu0
    %v689 = vadd.f32 %v637, %v688
    %v690 = vpop.f32.mrf.mxu0
    %691 = vdwg.mxu0
    %s692 = scalar_lea.vmem %s5, 16
    %v693 = vld [vmem:[%s692] sm:$0xf]
    %v694 = vld [vmem:[%s692 + $0x4] sm:$0xf]
    %v695 = vld [vmem:[%s692 + $0x8] sm:$0xf]
    %v696 = vld [vmem:[%s692 + $0xc] sm:$0xf]
    %s697 = scalar_lea.vmem %s8, 1
    %v698 = vld [vmem:[%s697] sm:$0x1]
    %v700 = vlaneseq
    %v701 = vshrl.u32 %v700, 7
    %v702 = vsub.s32 0, %v701
    %v703 = vrot.slane %v698, %v702
    %v709 = vunpack.c.l.b16 %v693
    %v710 = vunpack.c.l.b16 %v694
    %v711 = vunpack.c.l.b16 %v695
    %v712 = vunpack.c.l.b16 %v696
    %v713 = vpack.c.b16 %v710, %v709
    %v714 = vpack.c.b16 %v712, %v711
    %717 = vmatprep.subr.bf16.mxu0 0
    %718 = vmatpush1.bf16.msra.mxu0 0
    %719 = vmatprep.subr.bf16.mxu0 0
    %720 = vmatpush1.bf16.msra.mxu0 0
    %721 = vmatprep.subr.bf16.mxu0 0
    %722 = vmatpush1.bf16.msra.mxu0 0
    %723 = vmatprep.subr.bf16.mxu0 0
    %724 = vmatpush1.bf16.msra.mxu0 0
    %725 = vmatprep.subr.bf16.mxu0 0
    %726 = vmatpush1.bf16.msra.mxu0 0
    %727 = vmatprep.subr.bf16.mxu0 0
    %728 = vmatpush1.bf16.msra.mxu0 0
    %729 = vmatprep.subr.bf16.mxu0 0
    %730 = vmatpush1.bf16.msra.mxu0 %v714
    %731 = vmatprep.subr.bf16.mxu0 0
    %732 = vmatpush1.bf16.msra.mxu0 %v713
    %733 = vmatprep.subr.bf16.mxu0 0
    %734 = vmatpush2.bf16.msra.mxu0 0
    %735 = vmatprep.subr.bf16.mxu0 0
    %736 = vmatpush2.bf16.msra.mxu0 0
    %737 = vmatprep.subr.bf16.mxu0 0
    %738 = vmatpush2.bf16.msra.mxu0 0
    %739 = vmatprep.subr.bf16.mxu0 0
    %740 = vmatpush2.bf16.msra.mxu0 0
    %741 = vmatprep.subr.bf16.mxu0 0
    %742 = vmatpush2.bf16.msra.mxu0 0
    %743 = vmatprep.subr.bf16.mxu0 0
    %744 = vmatpush2.bf16.msra.mxu0 0
    %745 = vmatprep.subr.bf16.mxu0 0
    %746 = vmatpush2.bf16.msra.mxu0 0
    %747 = vmatprep.subr.bf16.mxu0 0
    %748 = vmatpush2.bf16.msra.mxu0 0
    %749 = vmatprep.mubr.bf16.mxu0 0
    %750 = vmatmul.mubr.bf16.gmra.mxu0 %v167
    %v751 = vpop.f32.mrf.mxu0
    %v752 = vadd.f32 %v703, %v751
    %v753 = vpop.f32.mrf.mxu0
    %v754 = vpop.f32.mrf.mxu0
    %v755 = vadd.f32 %v703, %v754
    %v756 = vpop.f32.mrf.mxu0
    %757 = vdwg.mxu0
    %v758 = vpack.c.bf16 %v620, %v620
    %v759 = vpack.c.bf16 %v623, %v623
    %v760 = vpack.c.bf16 %v686, %v686
    %v761 = vpack.c.bf16 %v689, %v689
    %v762 = vpack.c.bf16 %v752, %v752
    %v763 = vpack.c.bf16 %v755, %v755
    %v765 = vsel %vm344, %v758, 0
    %v768 = vsel %vm344, %v760, 0
    %770 = vmatprep.subr.bf16.mxu0 0
    %771 = vmatpush1.bf16.xpose.msra.mxu0 0
    %772 = vmatprep.subr.bf16.mxu0 0
    %773 = vmatpush1.bf16.xpose.msra.mxu0 0
    %774 = vmatprep.subr.bf16.mxu0 0
    %775 = vmatpush1.bf16.xpose.msra.mxu0 0
    %776 = vmatprep.subr.bf16.mxu0 0
    %777 = vmatpush1.bf16.xpose.msra.mxu0 0
    %778 = vmatprep.subr.bf16.mxu0 0
    %779 = vmatpush1.bf16.xpose.msra.mxu0 0
    %780 = vmatprep.subr.bf16.mxu0 0
    %781 = vmatpush1.bf16.xpose.msra.mxu0 0
    %782 = vmatprep.subr.bf16.mxu0 0
    %783 = vmatpush1.bf16.xpose.msra.mxu0 0
    %784 = vmatprep.subr.bf16.mxu0 0
    %785 = vmatpush1.bf16.xpose.msra.mxu0 %v768
    %786 = vmatprep.subr.bf16.mxu0 0
    %787 = vmatpush2.bf16.xpose.msra.mxu0 0
    %788 = vmatprep.subr.bf16.mxu0 0
    %789 = vmatpush2.bf16.xpose.msra.mxu0 0
    %790 = vmatprep.subr.bf16.mxu0 0
    %791 = vmatpush2.bf16.xpose.msra.mxu0 0
    %792 = vmatprep.subr.bf16.mxu0 0
    %793 = vmatpush2.bf16.xpose.msra.mxu0 0
    %794 = vmatprep.subr.bf16.mxu0 0
    %795 = vmatpush2.bf16.xpose.msra.mxu0 0
    %796 = vmatprep.subr.bf16.mxu0 0
    %797 = vmatpush2.bf16.xpose.msra.mxu0 0
    %798 = vmatprep.subr.bf16.mxu0 0
    %799 = vmatpush2.bf16.xpose.msra.mxu0 0
    %800 = vmatprep.subr.bf16.mxu0 0
    %801 = vmatpush2.bf16.xpose.msra.mxu0 0
    %802 = vmatprep.mubr.bf16.mxu0 0
    %803 = vmatmul.mubr.bf16.gmra.mxu0 %v765
    %v804 = vpop.f32.mrf.mxu0
    %v805 = vadd.f32 0.0, %v804
    %v806 = vpop.f32.mrf.mxu0
    %v807 = vpop.f32.mrf.mxu0
    %v808 = vpop.f32.mrf.mxu0
    %809 = vdwg.mxu0
    %v811 = vsel %vm344, %v759, 0
    %v814 = vsel %vm344, %v761, 0
    %816 = vmatprep.subr.bf16.mxu0 0
    %817 = vmatpush1.bf16.xpose.msra.mxu0 0
    %818 = vmatprep.subr.bf16.mxu0 0
    %819 = vmatpush1.bf16.xpose.msra.mxu0 0
    %820 = vmatprep.subr.bf16.mxu0 0
    %821 = vmatpush1.bf16.xpose.msra.mxu0 0
    %822 = vmatprep.subr.bf16.mxu0 0
    %823 = vmatpush1.bf16.xpose.msra.mxu0 0
    %824 = vmatprep.subr.bf16.mxu0 0
    %825 = vmatpush1.bf16.xpose.msra.mxu0 0
    %826 = vmatprep.subr.bf16.mxu0 0
    %827 = vmatpush1.bf16.xpose.msra.mxu0 0
    %828 = vmatprep.subr.bf16.mxu0 0
    %829 = vmatpush1.bf16.xpose.msra.mxu0 0
    %830 = vmatprep.subr.bf16.mxu0 0
    %831 = vmatpush1.bf16.xpose.msra.mxu0 %v814
    %832 = vmatprep.subr.bf16.mxu0 0
    %833 = vmatpush2.bf16.xpose.msra.mxu0 0
    %834 = vmatprep.subr.bf16.mxu0 0
    %835 = vmatpush2.bf16.xpose.msra.mxu0 0
    %836 = vmatprep.subr.bf16.mxu0 0
    %837 = vmatpush2.bf16.xpose.msra.mxu0 0
    %838 = vmatprep.subr.bf16.mxu0 0
    %839 = vmatpush2.bf16.xpose.msra.mxu0 0
    %840 = vmatprep.subr.bf16.mxu0 0
    %841 = vmatpush2.bf16.xpose.msra.mxu0 0
    %842 = vmatprep.subr.bf16.mxu0 0
    %843 = vmatpush2.bf16.xpose.msra.mxu0 0
    %844 = vmatprep.subr.bf16.mxu0 0
    %845 = vmatpush2.bf16.xpose.msra.mxu0 0
    %846 = vmatprep.subr.bf16.mxu0 0
    %847 = vmatpush2.bf16.xpose.msra.mxu0 0
    %848 = vmatprep.mubr.bf16.mxu0 0
    %849 = vmatmul.mubr.bf16.gmra.mxu0 %v811
    %v850 = vpop.f32.mrf.mxu0
    %v851 = vadd.f32 0.0, %v850
    %v852 = vpop.f32.mrf.mxu0
    %v853 = vpop.f32.mrf.mxu0
    %v854 = vpop.f32.mrf.mxu0
    %855 = vdwg.mxu0
    %v856 = vmul.f32 %v805, 0.25
    %v857 = vmul.f32 %v851, 0.25
    %v858 = vsel %vm439, %v856, -inf
    %859 = vmax.xlane.f32.xlu0 %v858
    %v860 = vpop.xlane.xlu0 %859
    %v861 = vsel %vm439, %v857, -inf
    %862 = vmax.xlane.f32.xlu0 %v861
    %v863 = vpop.xlane.xlu0 %862
    %v864 = vsub.f32 %v856, %v860
    %v865 = vsub.f32 %v857, %v863
    %v866 = vmul.f32 %v864, 1.442695
    %v867 = vpow.pop %v866
    %v868 = vmul.f32 %v865, 1.442695
    %v869 = vpow.pop %v868
    %v870 = vsel %vm439, %v867, 0.0
    %871 = vadd.xlane.f32.xlu0 %v870
    %v872 = vpop.xlane.xlu0 %871
    %v873 = vsel %vm439, %v869, 0.0
    %874 = vadd.xlane.f32.xlu0 %v873
    %v875 = vpop.xlane.xlu0 %874
    %v876 = vrcp.pop %v872
    %v877 = vrcp.pop %v875
    %v878 = vmul.f32 %v867, %v876
    %v879 = vmul.f32 %v869, %v877
    %v880 = vpack.c.bf16 %v878, %v878
    %v881 = vpack.c.bf16 %v879, %v879
    %v883 = vsel %vm439, %v880, 0
    %v886 = vsel %vm467, %v762, 0
    %888 = vmatprep.subr.bf16.mxu0 0
    %889 = vmatpush1.bf16.msra.mxu0 0
    %890 = vmatprep.subr.bf16.mxu0 0
    %891 = vmatpush1.bf16.msra.mxu0 0
    %892 = vmatprep.subr.bf16.mxu0 0
    %893 = vmatpush1.bf16.msra.mxu0 0
    %894 = vmatprep.subr.bf16.mxu0 0
    %895 = vmatpush1.bf16.msra.mxu0 0
    %896 = vmatprep.subr.bf16.mxu0 0
    %897 = vmatpush1.bf16.msra.mxu0 0
    %898 = vmatprep.subr.bf16.mxu0 0
    %899 = vmatpush1.bf16.msra.mxu0 0
    %900 = vmatprep.subr.bf16.mxu0 0
    %901 = vmatpush1.bf16.msra.mxu0 0
    %902 = vmatprep.subr.bf16.mxu0 0
    %903 = vmatpush1.bf16.msra.mxu0 %v886
    %904 = vmatprep.subr.bf16.mxu0 0
    %905 = vmatpush2.bf16.msra.mxu0 0
    %906 = vmatprep.subr.bf16.mxu0 0
    %907 = vmatpush2.bf16.msra.mxu0 0
    %908 = vmatprep.subr.bf16.mxu0 0
    %909 = vmatpush2.bf16.msra.mxu0 0
    %910 = vmatprep.subr.bf16.mxu0 0
    %911 = vmatpush2.bf16.msra.mxu0 0
    %912 = vmatprep.subr.bf16.mxu0 0
    %913 = vmatpush2.bf16.msra.mxu0 0
    %914 = vmatprep.subr.bf16.mxu0 0
    %915 = vmatpush2.bf16.msra.mxu0 0
    %916 = vmatprep.subr.bf16.mxu0 0
    %917 = vmatpush2.bf16.msra.mxu0 0
    %918 = vmatprep.subr.bf16.mxu0 0
    %919 = vmatpush2.bf16.msra.mxu0 0
    %920 = vmatprep.mubr.bf16.mxu0 0
    %921 = vmatmul.mubr.bf16.gmra.mxu0 %v883
    %v922 = vpop.f32.mrf.mxu0
    %v923 = vadd.f32 0.0, %v922
    %v924 = vpop.f32.mrf.mxu0
    %v925 = vpop.f32.mrf.mxu0
    %v926 = vpop.f32.mrf.mxu0
    %927 = vdwg.mxu0
    %v929 = vsel %vm439, %v881, 0
    %v932 = vsel %vm467, %v763, 0
    %934 = vmatprep.subr.bf16.mxu0 0
    %935 = vmatpush1.bf16.msra.mxu0 0
    %936 = vmatprep.subr.bf16.mxu0 0
    %937 = vmatpush1.bf16.msra.mxu0 0
    %938 = vmatprep.subr.bf16.mxu0 0
    %939 = vmatpush1.bf16.msra.mxu0 0
    %940 = vmatprep.subr.bf16.mxu0 0
    %941 = vmatpush1.bf16.msra.mxu0 0
    %942 = vmatprep.subr.bf16.mxu0 0
    %943 = vmatpush1.bf16.msra.mxu0 0
    %944 = vmatprep.subr.bf16.mxu0 0
    %945 = vmatpush1.bf16.msra.mxu0 0
    %946 = vmatprep.subr.bf16.mxu0 0
    %947 = vmatpush1.bf16.msra.mxu0 0
    %948 = vmatprep.subr.bf16.mxu0 0
    %949 = vmatpush1.bf16.msra.mxu0 %v932
    %950 = vmatprep.subr.bf16.mxu0 0
    %951 = vmatpush2.bf16.msra.mxu0 0
    %952 = vmatprep.subr.bf16.mxu0 0
    %953 = vmatpush2.bf16.msra.mxu0 0
    %954 = vmatprep.subr.bf16.mxu0 0
    %955 = vmatpush2.bf16.msra.mxu0 0
    %956 = vmatprep.subr.bf16.mxu0 0
    %957 = vmatpush2.bf16.msra.mxu0 0
    %958 = vmatprep.subr.bf16.mxu0 0
    %959 = vmatpush2.bf16.msra.mxu0 0
    %960 = vmatprep.subr.bf16.mxu0 0
    %961 = vmatpush2.bf16.msra.mxu0 0
    %962 = vmatprep.subr.bf16.mxu0 0
    %963 = vmatpush2.bf16.msra.mxu0 0
    %964 = vmatprep.subr.bf16.mxu0 0
    %965 = vmatpush2.bf16.msra.mxu0 0
    %966 = vmatprep.mubr.bf16.mxu0 0
    %967 = vmatmul.mubr.bf16.gmra.mxu0 %v929
    %v968 = vpop.f32.mrf.mxu0
    %v969 = vadd.f32 0.0, %v968
    %v970 = vpop.f32.mrf.mxu0
    %v971 = vpop.f32.mrf.mxu0
    %v972 = vpop.f32.mrf.mxu0
    %973 = vdwg.mxu0
    %v974 = vpack.c.bf16 %v969, %v923
    %s975 = scalar_lea.vmem %s9, 8
    %v976 = vld [vmem:[%s975] sm:$0xf]
    %v977 = vld [vmem:[%s975 + $0x4] sm:$0xf]
    %v980 = vunpack.c.l.b16 %v976
    %v981 = vunpack.c.l.b16 %v977
    %v982 = vpack.c.b16 %v981, %v980
    %v985 = vsel %vm344, %v974, 0
    %987 = vmatprep.subr.bf16.mxu0 0
    %988 = vmatpush1.bf16.msra.mxu0 0
    %989 = vmatprep.subr.bf16.mxu0 0
    %990 = vmatpush1.bf16.msra.mxu0 0
    %991 = vmatprep.subr.bf16.mxu0 0
    %992 = vmatpush1.bf16.msra.mxu0 0
    %993 = vmatprep.subr.bf16.mxu0 0
    %994 = vmatpush1.bf16.msra.mxu0 0
    %995 = vmatprep.subr.bf16.mxu0 0
    %996 = vmatpush1.bf16.msra.mxu0 0
    %997 = vmatprep.subr.bf16.mxu0 0
    %998 = vmatpush1.bf16.msra.mxu0 0
    %999 = vmatprep.subr.bf16.mxu0 0
    %1000 = vmatpush1.bf16.msra.mxu0 0
    %1001 = vmatprep.subr.bf16.mxu0 0
    %1002 = vmatpush1.bf16.msra.mxu0 %v982
    %1003 = vmatprep.subr.bf16.mxu0 0
    %1004 = vmatpush2.bf16.msra.mxu0 0
    %1005 = vmatprep.subr.bf16.mxu0 0
    %1006 = vmatpush2.bf16.msra.mxu0 0
    %1007 = vmatprep.subr.bf16.mxu0 0
    %1008 = vmatpush2.bf16.msra.mxu0 0
    %1009 = vmatprep.subr.bf16.mxu0 0
    %1010 = vmatpush2.bf16.msra.mxu0 0
    %1011 = vmatprep.subr.bf16.mxu0 0
    %1012 = vmatpush2.bf16.msra.mxu0 0
    %1013 = vmatprep.subr.bf16.mxu0 0
    %1014 = vmatpush2.bf16.msra.mxu0 0
    %1015 = vmatprep.subr.bf16.mxu0 0
    %1016 = vmatpush2.bf16.msra.mxu0 0
    %1017 = vmatprep.subr.bf16.mxu0 0
    %1018 = vmatpush2.bf16.msra.mxu0 0
    %1019 = vmatprep.mubr.bf16.mxu0 0
    %1020 = vmatmul.mubr.bf16.gmra.mxu0 %v985
    %v1021 = vpop.f32.mrf.mxu0
    %v1022 = vadd.f32 0.0, %v1021
    %v1023 = vpop.f32.mrf.mxu0
    %v1024 = vpop.f32.mrf.mxu0
    %v1025 = vadd.f32 0.0, %v1024
    %v1026 = vpop.f32.mrf.mxu0
    %1027 = vdwg.mxu0
    %v1030 = vunpack.c.l.b16 %v558
    %v1031 = vunpack.c.l.b16 %v559
    %v1032 = vpack.c.b16 %v1031, %v1030
    %v1035 = vsel %vm344, %v557, 0
    %1037 = vmatprep.subr.bf16.mxu0 0
    %1038 = vmatpush1.bf16.msra.mxu0 0
    %1039 = vmatprep.subr.bf16.mxu0 0
    %1040 = vmatpush1.bf16.msra.mxu0 0
    %1041 = vmatprep.subr.bf16.mxu0 0
    %1042 = vmatpush1.bf16.msra.mxu0 0
    %1043 = vmatprep.subr.bf16.mxu0 0
    %1044 = vmatpush1.bf16.msra.mxu0 0
    %1045 = vmatprep.subr.bf16.mxu0 0
    %1046 = vmatpush1.bf16.msra.mxu0 0
    %1047 = vmatprep.subr.bf16.mxu0 0
    %1048 = vmatpush1.bf16.msra.mxu0 0
    %1049 = vmatprep.subr.bf16.mxu0 0
    %1050 = vmatpush1.bf16.msra.mxu0 0
    %1051 = vmatprep.subr.bf16.mxu0 0
    %1052 = vmatpush1.bf16.msra.mxu0 %v1032
    %1053 = vmatprep.subr.bf16.mxu0 0
    %1054 = vmatpush2.bf16.msra.mxu0 0
    %1055 = vmatprep.subr.bf16.mxu0 0
    %1056 = vmatpush2.bf16.msra.mxu0 0
    %1057 = vmatprep.subr.bf16.mxu0 0
    %1058 = vmatpush2.bf16.msra.mxu0 0
    %1059 = vmatprep.subr.bf16.mxu0 0
    %1060 = vmatpush2.bf16.msra.mxu0 0
    %1061 = vmatprep.subr.bf16.mxu0 0
    %1062 = vmatpush2.bf16.msra.mxu0 0
    %1063 = vmatprep.subr.bf16.mxu0 0
    %1064 = vmatpush2.bf16.msra.mxu0 0
    %1065 = vmatprep.subr.bf16.mxu0 0
    %1066 = vmatpush2.bf16.msra.mxu0 0
    %1067 = vmatprep.subr.bf16.mxu0 0
    %1068 = vmatpush2.bf16.msra.mxu0 0
    %1069 = vmatprep.mubr.bf16.mxu0 0
    %1070 = vmatmul.mubr.bf16.gmra.mxu0 %v1035
    %v1071 = vpop.f32.mrf.mxu0
    %v1072 = vadd.f32 %v1022, %v1071
    %v1073 = vpop.f32.mrf.mxu0
    %v1074 = vpop.f32.mrf.mxu0
    %v1075 = vadd.f32 %v1025, %v1074
    %v1076 = vpop.f32.mrf.mxu0
    %1077 = vdwg.mxu0
    %v1078 = vld [vmem:[%s10] sm:$0x1]
    %v1080 = vlaneseq
    %v1081 = vshrl.u32 %v1080, 7
    %v1082 = vsub.s32 0, %v1081
    %v1083 = vrot.slane %v1078, %v1082
    %v1085 = vadd.f32 %v1072, %v1083
    %v1086 = vadd.f32 %v1075, %v1083
    %v1087 = vadd.f32 %v1085, %v140
    %v1088 = vadd.f32 %v1086, %v141
    %v1089 = vld [vmem:[%s11] sm:$0x1]
    %v1090 = vld [vmem:[%s12] sm:$0x1]
    %v1091 = vsel %vm95, %v1087, 0.0
    %1092 = vadd.xlane.f32.xlu0 %v1091
    %v1093 = vpop.xlane.xlu0 %1092
    %v1094 = vsel %vm95, %v1088, 0.0
    %1095 = vadd.xlane.f32.xlu0 %v1094
    %v1096 = vpop.xlane.xlu0 %1095
    %v1097 = vmul.f32 %v1087, %v1087
    %v1098 = vmul.f32 %v1088, %v1088
    %v1099 = vsel %vm95, %v1097, 0.0
    %1100 = vadd.xlane.f32.xlu0 %v1099
    %v1101 = vpop.xlane.xlu0 %1100
    %v1102 = vsel %vm95, %v1098, 0.0
    %1103 = vadd.xlane.f32.xlu0 %v1102
    %v1104 = vpop.xlane.xlu0 %1103
    %v1105 = vmul.f32 %v1093, 0.03125
    %v1106 = vmul.f32 %v1096, 0.03125
    %v1107 = vmul.f32 %v1101, 0.03125
    %v1108 = vmul.f32 %v1104, 0.03125
    %v1109 = vmul.f32 %v1105, %v1105
    %v1110 = vmul.f32 %v1106, %v1106
    %v1111 = vsub.f32 %v1107, %v1109
    %v1112 = vsub.f32 %v1108, %v1110
    %v1113 = vsub.f32 %v1087, %v1105
    %v1114 = vsub.f32 %v1088, %v1106
    %v1115 = vadd.f32 %v1111, 1e-05
    %v1116 = vadd.f32 %v1112, 1e-05
    %v1117 = vrsqrt.pop %v1115
    %v1118 = vrsqrt.pop %v1116
    %v1119 = vmul.f32 %v1113, %v1117
    %v1120 = vmul.f32 %v1114, %v1118
    %v1122 = vlaneseq
    %v1123 = vshrl.u32 %v1122, 7
    %v1124 = vsub.s32 0, %v1123
    %v1125 = vrot.slane %v1089, %v1124
    %v1127 = vmul.f32 %v1119, %v1125
    %v1128 = vmul.f32 %v1120, %v1125
    %v1130 = vlaneseq
    %v1131 = vshrl.u32 %v1130, 7
    %v1132 = vsub.s32 0, %v1131
    %v1133 = vrot.slane %v1090, %v1132
    %v1135 = vadd.f32 %v1127, %v1133
    %v1136 = vadd.f32 %v1128, %v1133
    %v1137 = vpack.c.bf16 %v1136, %v1135
    %v1138 = vld [vmem:[%s13] sm:$0xf]
    %v1139 = vld [vmem:[%s13 + $0x4] sm:$0xf]
    %v1140 = vld [vmem:[%s13 + $0x8] sm:$0xf]
    %v1141 = vld [vmem:[%s13 + $0xc] sm:$0xf]
    %v1142 = vld [vmem:[%s14] sm:$0x1]
    %v1144 = vlaneseq
    %v1145 = vshrl.u32 %v1144, 7
    %v1146 = vsub.s32 0, %v1145
    %v1147 = vrot.slane %v1142, %v1146
    %v1153 = vunpack.c.l.b16 %v1138
    %v1154 = vunpack.c.l.b16 %v1139
    %v1155 = vunpack.c.l.b16 %v1140
    %v1156 = vunpack.c.l.b16 %v1141
    %v1157 = vpack.c.b16 %v1154, %v1153
    %v1158 = vpack.c.b16 %v1156, %v1155
    %v1162 = vsel %vm95, %v1137, 0
    %1164 = vmatprep.subr.bf16.mxu0 0
    %1165 = vmatpush1.bf16.msra.mxu0 0
    %1166 = vmatprep.subr.bf16.mxu0 0
    %1167 = vmatpush1.bf16.msra.mxu0 0
    %1168 = vmatprep.subr.bf16.mxu0 0
    %1169 = vmatpush1.bf16.msra.mxu0 0
    %1170 = vmatprep.subr.bf16.mxu0 0
    %1171 = vmatpush1.bf16.msra.mxu0 0
    %1172 = vmatprep.subr.bf16.mxu0 0
    %1173 = vmatpush1.bf16.msra.mxu0 0
    %1174 = vmatprep.subr.bf16.mxu0 0
    %1175 = vmatpush1.bf16.msra.mxu0 0
    %1176 = vmatprep.subr.bf16.mxu0 0
    %1177 = vmatpush1.bf16.msra.mxu0 %v1158
    %1178 = vmatprep.subr.bf16.mxu0 0
    %1179 = vmatpush1.bf16.msra.mxu0 %v1157
    %1180 = vmatprep.subr.bf16.mxu0 0
    %1181 = vmatpush2.bf16.msra.mxu0 0
    %1182 = vmatprep.subr.bf16.mxu0 0
    %1183 = vmatpush2.bf16.msra.mxu0 0
    %1184 = vmatprep.subr.bf16.mxu0 0
    %1185 = vmatpush2.bf16.msra.mxu0 0
    %1186 = vmatprep.subr.bf16.mxu0 0
    %1187 = vmatpush2.bf16.msra.mxu0 0
    %1188 = vmatprep.subr.bf16.mxu0 0
    %1189 = vmatpush2.bf16.msra.mxu0 0
    %1190 = vmatprep.subr.bf16.mxu0 0
    %1191 = vmatpush2.bf16.msra.mxu0 0
    %1192 = vmatprep.subr.bf16.mxu0 0
    %1193 = vmatpush2.bf16.msra.mxu0 0
    %1194 = vmatprep.subr.bf16.mxu0 0
    %1195 = vmatpush2.bf16.msra.mxu0 0
    %1196 = vmatprep.mubr.bf16.mxu0 0
    %1197 = vmatmul.mubr.bf16.gmra.mxu0 %v1162
    %v1198 = vpop.f32.mrf.mxu0
    %v1199 = vadd.f32 %v1147, %v1198
    %v1200 = vpop.f32.mrf.mxu0
    %v1201 = vpop.f32.mrf.mxu0
    %v1202 = vadd.f32 %v1147, %v1201
    %v1203 = vpop.f32.mrf.mxu0
    %1204 = vdwg.mxu0
    %v1205 = vmul.f32 %v1199, 0.5
    %v1206 = vmul.f32 %v1202, 0.5
    %v1207 = vmul.f32 %v1199, 0.044715
    %v1208 = vmul.f32 %v1202, 0.044715
    %v1209 = vmul.f32 %v1207, %v1199
    %v1210 = vmul.f32 %v1208, %v1202
    %v1211 = vmul.f32 %v1209, %v1199
    %v1212 = vmul.f32 %v1210, %v1202
    %v1213 = vadd.f32 %v1199, %v1211
    %v1214 = vadd.f32 %v1202, %v1212
    %v1215 = vmul.f32 %v1213, 0.7978846
    %v1216 = vmul.f32 %v1214, 0.7978846
    %v1217 = vtanh.pop %v1215
    %v1218 = vtanh.pop %v1216
    %v1219 = vadd.f32 %v1217, 1.0
    %v1220 = vadd.f32 %v1218, 1.0
    %v1221 = vmul.f32 %v1205, %v1219
    %v1222 = vmul.f32 %v1206, %v1220
    %v1223 = vpack.c.bf16 %v1222, %v1221
    %v1224 = vld [vmem:[%s15] sm:$0xf]
    %v1225 = vld [vmem:[%s15 + $0x4] sm:$0xf]
    %v1226 = vld [vmem:[%s15 + $0x8] sm:$0xf]
    %v1227 = vld [vmem:[%s15 + $0xc] sm:$0xf]
    %v1228 = vld [vmem:[%s15 + $0x10] sm:$0xf]
    %v1229 = vld [vmem:[%s15 + $0x14] sm:$0xf]
    %v1230 = vld [vmem:[%s15 + $0x18] sm:$0xf]
    %v1231 = vld [vmem:[%s15 + $0x1c] sm:$0xf]
    %v1232 = vld [vmem:[%s15 + $0x20] sm:$0xf]
    %v1233 = vld [vmem:[%s15 + $0x24] sm:$0xf]
    %v1234 = vld [vmem:[%s15 + $0x28] sm:$0xf]
    %v1235 = vld [vmem:[%s15 + $0x2c] sm:$0xf]
    %v1236 = vld [vmem:[%s15 + $0x30] sm:$0xf]
    %v1237 = vld [vmem:[%s15 + $0x34] sm:$0xf]
    %v1238 = vld [vmem:[%s15 + $0x38] sm:$0xf]
    %v1239 = vld [vmem:[%s15 + $0x3c] sm:$0xf]
    %v1240 = vld [vmem:[%s16] sm:$0x1]
    %v1242 = vlaneseq
    %v1243 = vshrl.u32 %v1242, 7
    %v1244 = vsub.s32 0, %v1243
    %v1245 = vrot.slane %v1240, %v1244
    %v1263 = vunpack.c.l.b16 %v1224
    %v1264 = vunpack.c.l.b16 %v1225
    %v1265 = vunpack.c.l.b16 %v1226
    %v1266 = vunpack.c.l.b16 %v1227
    %v1267 = vunpack.c.l.b16 %v1228
    %v1268 = vunpack.c.l.b16 %v1229
    %v1269 = vunpack.c.l.b16 %v1230
    %v1270 = vunpack.c.l.b16 %v1231
    %v1271 = vunpack.c.l.b16 %v1232
    %v1272 = vunpack.c.l.b16 %v1233
    %v1273 = vunpack.c.l.b16 %v1234
    %v1274 = vunpack.c.l.b16 %v1235
    %v1275 = vunpack.c.l.b16 %v1236
    %v1276 = vunpack.c.l.b16 %v1237
    %v1277 = vunpack.c.l.b16 %v1238
    %v1278 = vunpack.c.l.b16 %v1239
    %v1279 = vpack.c.b16 %v1264, %v1263
    %v1280 = vpack.c.b16 %v1266, %v1265
    %v1281 = vpack.c.b16 %v1268, %v1267
    %v1282 = vpack.c.b16 %v1270, %v1269
    %v1283 = vpack.c.b16 %v1272, %v1271
    %v1284 = vpack.c.b16 %v1274, %v1273
    %v1285 = vpack.c.b16 %v1276, %v1275
    %v1286 = vpack.c.b16 %v1278, %v1277
    %1295 = vmatprep.subr.bf16.mxu0 0
    %1296 = vmatpush1.bf16.msra.mxu0 %v1286
    %1297 = vmatprep.subr.bf16.mxu0 0
    %1298 = vmatpush1.bf16.msra.mxu0 %v1285
    %1299 = vmatprep.subr.bf16.mxu0 0
    %1300 = vmatpush1.bf16.msra.mxu0 %v1284
    %1301 = vmatprep.subr.bf16.mxu0 0
    %1302 = vmatpush1.bf16.msra.mxu0 %v1283
    %1303 = vmatprep.subr.bf16.mxu0 0
    %1304 = vmatpush1.bf16.msra.mxu0 %v1282
    %1305 = vmatprep.subr.bf16.mxu0 0
    %1306 = vmatpush1.bf16.msra.mxu0 %v1281
    %1307 = vmatprep.subr.bf16.mxu0 0
    %1308 = vmatpush1.bf16.msra.mxu0 %v1280
    %1309 = vmatprep.subr.bf16.mxu0 0
    %1310 = vmatpush1.bf16.msra.mxu0 %v1279
    %1311 = vmatprep.subr.bf16.mxu0 0
    %1312 = vmatpush2.bf16.msra.mxu0 0
    %1313 = vmatprep.subr.bf16.mxu0 0
    %1314 = vmatpush2.bf16.msra.mxu0 0
    %1315 = vmatprep.subr.bf16.mxu0 0
    %1316 = vmatpush2.bf16.msra.mxu0 0
    %1317 = vmatprep.subr.bf16.mxu0 0
    %1318 = vmatpush2.bf16.msra.mxu0 0
    %1319 = vmatprep.subr.bf16.mxu0 0
    %1320 = vmatpush2.bf16.msra.mxu0 0
    %1321 = vmatprep.subr.bf16.mxu0 0
    %1322 = vmatpush2.bf16.msra.mxu0 0
    %1323 = vmatprep.subr.bf16.mxu0 0
    %1324 = vmatpush2.bf16.msra.mxu0 0
    %1325 = vmatprep.subr.bf16.mxu0 0
    %1326 = vmatpush2.bf16.msra.mxu0 0
    %1327 = vmatprep.mubr.bf16.mxu0 0
    %1328 = vmatmul.mubr.bf16.gmra.mxu0 %v1223
    %v1329 = vpop.f32.mrf.mxu0
    %v1330 = vadd.f32 %v1245, %v1329
    %v1331 = vpop.f32.mrf.mxu0
    %v1332 = vpop.f32.mrf.mxu0
    %v1333 = vadd.f32 %v1245, %v1332
    %v1334 = vpop.f32.mrf.mxu0
    %1335 = vdwg.mxu0
    %v1336 = vadd.f32 %v1330, %v1135
    %v1337 = vadd.f32 %v1333, %v1136
    %v1338 = vld [vmem:[%s17] sm:$0x1]
    %v1339 = vld [vmem:[%s18] sm:$0x1]
    %v1340 = vsel %vm95, %v1336, 0.0
    %1341 = vadd.xlane.f32.xlu0 %v1340
    %v1342 = vpop.xlane.xlu0 %1341
    %v1343 = vsel %vm95, %v1337, 0.0
    %1344 = vadd.xlane.f32.xlu0 %v1343
    %v1345 = vpop.xlane.xlu0 %1344
    %v1346 = vmul.f32 %v1336, %v1336
    %v1347 = vmul.f32 %v1337, %v1337
    %v1348 = vsel %vm95, %v1346, 0.0
    %1349 = vadd.xlane.f32.xlu0 %v1348
    %v1350 = vpop.xlane.xlu0 %1349
    %v1351 = vsel %vm95, %v1347, 0.0
    %1352 = vadd.xlane.f32.xlu0 %v1351
    %v1353 = vpop.xlane.xlu0 %1352
    %v1354 = vmul.f32 %v1342, 0.03125
    %v1355 = vmul.f32 %v1345, 0.03125
    %v1356 = vmul.f32 %v1350, 0.03125
    %v1357 = vmul.f32 %v1353, 0.03125
    %v1358 = vmul.f32 %v1354, %v1354
    %v1359 = vmul.f32 %v1355, %v1355
    %v1360 = vsub.f32 %v1356, %v1358
    %v1361 = vsub.f32 %v1357, %v1359
    %v1362 = vsub.f32 %v1336, %v1354
    %v1363 = vsub.f32 %v1337, %v1355
    %v1364 = vadd.f32 %v1360, 1e-05
    %v1365 = vadd.f32 %v1361, 1e-05
    %v1366 = vrsqrt.pop %v1364
    %v1367 = vrsqrt.pop %v1365
    %v1368 = vmul.f32 %v1362, %v1366
    %v1369 = vmul.f32 %v1363, %v1367
    %v1371 = vlaneseq
    %v1372 = vshrl.u32 %v1371, 7
    %v1373 = vsub.s32 0, %v1372
    %v1374 = vrot.slane %v1338, %v1373
    %v1376 = vmul.f32 %v1368, %v1374
    %v1377 = vmul.f32 %v1369, %v1374
    %v1379 = vlaneseq
    %v1380 = vshrl.u32 %v1379, 7
    %v1381 = vsub.s32 0, %v1380
    %v1382 = vrot.slane %v1339, %v1381
    %v1384 = vadd.f32 %v1376, %v1382
    %v1385 = vadd.f32 %v1377, %v1382
    %v1386 = vpack.c.bf16 %v1385, %v1384
    %s1387 = scalar_lea.vmem %s3, 32
    %v1388 = vld [vmem:[%s1387] sm:$0xf]
    %v1389 = vld [vmem:[%s1387 + $0x4] sm:$0xf]
    %v1390 = vld [vmem:[%s1387 + $0x8] sm:$0xf]
    %v1391 = vld [vmem:[%s1387 + $0xc] sm:$0xf]
    %s1392 = scalar_lea.vmem %s6, 2
    %v1393 = vld [vmem:[%s1392] sm:$0x1]
    %v1395 = vlaneseq
    %v1396 = vshrl.u32 %v1395, 7
    %v1397 = vsub.s32 0, %v1396
    %v1398 = vrot.slane %v1393, %v1397
    %v1404 = vunpack.c.l.b16 %v1388
    %v1405 = vunpack.c.l.b16 %v1389
    %v1406 = vunpack.c.l.b16 %v1390
    %v1407 = vunpack.c.l.b16 %v1391
    %v1408 = vpack.c.b16 %v1405, %v1404
    %v1409 = vpack.c.b16 %v1407, %v1406
    %v1413 = vsel %vm95, %v1386, 0
    %1415 = vmatprep.subr.bf16.mxu0 0
    %1416 = vmatpush1.bf16.msra.mxu0 0
    %1417 = vmatprep.subr.bf16.mxu0 0
    %1418 = vmatpush1.bf16.msra.mxu0 0
    %1419 = vmatprep.subr.bf16.mxu0 0
    %1420 = vmatpush1.bf16.msra.mxu0 0
    %1421 = vmatprep.subr.bf16.mxu0 0
    %1422 = vmatpush1.bf16.msra.mxu0 0
    %1423 = vmatprep.subr.bf16.mxu0 0
    %1424 = vmatpush1.bf16.msra.mxu0 0
    %1425 = vmatprep.subr.bf16.mxu0 0
    %1426 = vmatpush1.bf16.msra.mxu0 0
    %1427 = vmatprep.subr.bf16.mxu0 0
    %1428 = vmatpush1.bf16.msra.mxu0 %v1409
    %1429 = vmatprep.subr.bf16.mxu0 0
    %1430 = vmatpush1.bf16.msra.mxu0 %v1408
    %1431 = vmatprep.subr.bf16.mxu0 0
    %1432 = vmatpush2.bf16.msra.mxu0 0
    %1433 = vmatprep.subr.bf16.mxu0 0
    %1434 = vmatpush2.bf16.msra.mxu0 0
    %1435 = vmatprep.subr.bf16.mxu0 0
    %1436 = vmatpush2.bf16.msra.mxu0 0
    %1437 = vmatprep.subr.bf16.mxu0 0
    %1438 = vmatpush2.bf16.msra.mxu0 0
    %1439 = vmatprep.subr.bf16.mxu0 0
    %1440 = vmatpush2.bf16.msra.mxu0 0
    %1441 = vmatprep.subr.bf16.mxu0 0
    %1442 = vmatpush2.bf16.msra.mxu0 0
    %1443 = vmatprep.subr.bf16.mxu0 0
    %1444 = vmatpush2.bf16.msra.mxu0 0
    %1445 = vmatprep.subr.bf16.mxu0 0
    %1446 = vmatpush2.bf16.msra.mxu0 0
    %1447 = vmatprep.mubr.bf16.mxu0 0
    %1448 = vmatmul.mubr.bf16.gmra.mxu0 %v1413
    %v1449 = vpop.f32.mrf.mxu0
    %v1450 = vadd.f32 %v1398, %v1449
    %v1451 = vpop.f32.mrf.mxu0
    %v1452 = vpop.f32.mrf.mxu0
    %v1453 = vadd.f32 %v1398, %v1452
    %v1454 = vpop.f32.mrf.mxu0
    %1455 = vdwg.mxu0
    %s1456 = scalar_lea.vmem %s4, 32
    %v1457 = vld [vmem:[%s1456] sm:$0xf]
    %v1458 = vld [vmem:[%s1456 + $0x4] sm:$0xf]
    %v1459 = vld [vmem:[%s1456 + $0x8] sm:$0xf]
    %v1460 = vld [vmem:[%s1456 + $0xc] sm:$0xf]
    %s1461 = scalar_lea.vmem %s7, 2
    %v1462 = vld [vmem:[%s1461] sm:$0x1]
    %v1464 = vlaneseq
    %v1465 = vshrl.u32 %v1464, 7
    %v1466 = vsub.s32 0, %v1465
    %v1467 = vrot.slane %v1462, %v1466
    %v1473 = vunpack.c.l.b16 %v1457
    %v1474 = vunpack.c.l.b16 %v1458
    %v1475 = vunpack.c.l.b16 %v1459
    %v1476 = vunpack.c.l.b16 %v1460
    %v1477 = vpack.c.b16 %v1474, %v1473
    %v1478 = vpack.c.b16 %v1476, %v1475
    %1481 = vmatprep.subr.bf16.mxu0 0
    %1482 = vmatpush1.bf16.msra.mxu0 0
    %1483 = vmatprep.subr.bf16.mxu0 0
    %1484 = vmatpush1.bf16.msra.mxu0 0
    %1485 = vmatprep.subr.bf16.mxu0 0
    %1486 = vmatpush1.bf16.msra.mxu0 0
    %1487 = vmatprep.subr.bf16.mxu0 0
    %1488 = vmatpush1.bf16.msra.mxu0 0
    %1489 = vmatprep.subr.bf16.mxu0 0
    %1490 = vmatpush1.bf16.msra.mxu0 0
    %1491 = vmatprep.subr.bf16.mxu0 0
    %1492 = vmatpush1.bf16.msra.mxu0 0
    %1493 = vmatprep.subr.bf16.mxu0 0
    %1494 = vmatpush1.bf16.msra.mxu0 %v1478
    %1495 = vmatprep.subr.bf16.mxu0 0
    %1496 = vmatpush1.bf16.msra.mxu0 %v1477
    %1497 = vmatprep.subr.bf16.mxu0 0
    %1498 = vmatpush2.bf16.msra.mxu0 0
    %1499 = vmatprep.subr.bf16.mxu0 0
    %1500 = vmatpush2.bf16.msra.mxu0 0
    %1501 = vmatprep.subr.bf16.mxu0 0
    %1502 = vmatpush2.bf16.msra.mxu0 0
    %1503 = vmatprep.subr.bf16.mxu0 0
    %1504 = vmatpush2.bf16.msra.mxu0 0
    %1505 = vmatprep.subr.bf16.mxu0 0
    %1506 = vmatpush2.bf16.msra.mxu0 0
    %1507 = vmatprep.subr.bf16.mxu0 0
    %1508 = vmatpush2.bf16.msra.mxu0 0
    %1509 = vmatprep.subr.bf16.mxu0 0
    %1510 = vmatpush2.bf16.msra.mxu0 0
    %1511 = vmatprep.subr.bf16.mxu0 0
    %1512 = vmatpush2.bf16.msra.mxu0 0
    %1513 = vmatprep.mubr.bf16.mxu0 0
    %1514 = vmatmul.mubr.bf16.gmra.mxu0 %v1413
    %v1515 = vpop.f32.mrf.mxu0
    %v1516 = vadd.f32 %v1467, %v1515
    %v1517 = vpop.f32.mrf.mxu0
    %v1518 = vpop.f32.mrf.mxu0
    %v1519 = vadd.f32 %v1467, %v1518
    %v1520 = vpop.f32.mrf.mxu0
    %1521 = vdwg.mxu0
    %s1522 = scalar_lea.vmem %s5, 32
    %v1523 = vld [vmem:[%s1522] sm:$0xf]
    %v1524 = vld [vmem:[%s1522 + $0x4] sm:$0xf]
    %v1525 = vld [vmem:[%s1522 + $0x8] sm:$0xf]
    %v1526 = vld [vmem:[%s1522 + $0xc] sm:$0xf]
    %s1527 = scalar_lea.vmem %s8, 2
    %v1528 = vld [vmem:[%s1527] sm:$0x1]
    %v1530 = vlaneseq
    %v1531 = vshrl.u32 %v1530, 7
    %v1532 = vsub.s32 0, %v1531
    %v1533 = vrot.slane %v1528, %v1532
    %v1539 = vunpack.c.l.b16 %v1523
    %v1540 = vunpack.c.l.b16 %v1524
    %v1541 = vunpack.c.l.b16 %v1525
    %v1542 = vunpack.c.l.b16 %v1526
    %v1543 = vpack.c.b16 %v1540, %v1539
    %v1544 = vpack.c.b16 %v1542, %v1541
    %1547 = vmatprep.subr.bf16.mxu0 0
    %1548 = vmatpush1.bf16.msra.mxu0 0
    %1549 = vmatprep.subr.bf16.mxu0 0
    %1550 = vmatpush1.bf16.msra.mxu0 0
    %1551 = vmatprep.subr.bf16.mxu0 0
    %1552 = vmatpush1.bf16.msra.mxu0 0
    %1553 = vmatprep.subr.bf16.mxu0 0
    %1554 = vmatpush1.bf16.msra.mxu0 0
    %1555 = vmatprep.subr.bf16.mxu0 0
    %1556 = vmatpush1.bf16.msra.mxu0 0
    %1557 = vmatprep.subr.bf16.mxu0 0
    %1558 = vmatpush1.bf16.msra.mxu0 0
    %1559 = vmatprep.subr.bf16.mxu0 0
    %1560 = vmatpush1.bf16.msra.mxu0 %v1544
    %1561 = vmatprep.subr.bf16.mxu0 0
    %1562 = vmatpush1.bf16.msra.mxu0 %v1543
    %1563 = vmatprep.subr.bf16.mxu0 0
    %1564 = vmatpush2.bf16.msra.mxu0 0
    %1565 = vmatprep.subr.bf16.mxu0 0
    %1566 = vmatpush2.bf16.msra.mxu0 0
    %1567 = vmatprep.subr.bf16.mxu0 0
    %1568 = vmatpush2.bf16.msra.mxu0 0
    %1569 = vmatprep.subr.bf16.mxu0 0
    %1570 = vmatpush2.bf16.msra.mxu0 0
    %1571 = vmatprep.subr.bf16.mxu0 0
    %1572 = vmatpush2.bf16.msra.mxu0 0
    %1573 = vmatprep.subr.bf16.mxu0 0
    %1574 = vmatpush2.bf16.msra.mxu0 0
    %1575 = vmatprep.subr.bf16.mxu0 0
    %1576 = vmatpush2.bf16.msra.mxu0 0
    %1577 = vmatprep.subr.bf16.mxu0 0
    %1578 = vmatpush2.bf16.msra.mxu0 0
    %1579 = vmatprep.mubr.bf16.mxu0 0
    %1580 = vmatmul.mubr.bf16.gmra.mxu0 %v1413
    %v1581 = vpop.f32.mrf.mxu0
    %v1582 = vadd.f32 %v1533, %v1581
    %v1583 = vpop.f32.mrf.mxu0
    %v1584 = vpop.f32.mrf.mxu0
    %v1585 = vadd.f32 %v1533, %v1584
    %v1586 = vpop.f32.mrf.mxu0
    %1587 = vdwg.mxu0
    %v1588 = vpack.c.bf16 %v1450, %v1450
    %v1589 = vpack.c.bf16 %v1453, %v1453
    %v1590 = vpack.c.bf16 %v1516, %v1516
    %v1591 = vpack.c.bf16 %v1519, %v1519
    %v1592 = vpack.c.bf16 %v1582, %v1582
    %v1593 = vpack.c.bf16 %v1585, %v1585
    %v1595 = vsel %vm344, %v1588, 0
    %v1598 = vsel %vm344, %v1590, 0
    %1600 = vmatprep.subr.bf16.mxu0 0
    %1601 = vmatpush1.bf16.xpose.msra.mxu0 0
    %1602 = vmatprep.subr.bf16.mxu0 0
    %1603 = vmatpush1.bf16.xpose.msra.mxu0 0
    %1604 = vmatprep.subr.bf16.mxu0 0
    %1605 = vmatpush1.bf16.xpose.msra.mxu0 0
    %1606 = vmatprep.subr.bf16.mxu0 0
    %1607 = vmatpush1.bf16.xpose.msra.mxu0 0
    %1608 = vmatprep.subr.bf16.mxu0 0
    %1609 = vmatpush1.bf16.xpose.msra.mxu0 0
    %1610 = vmatprep.subr.bf16.mxu0 0
    %1611 = vmatpush1.bf16.xpose.msra.mxu0 0
    %1612 = vmatprep.subr.bf16.mxu0 0
    %1613 = vmatpush1.bf16.xpose.msra.mxu0 0
    %1614 = vmatprep.subr.bf16.mxu0 0
    %1615 = vmatpush1.bf16.xpose.msra.mxu0 %v1598
    %1616 = vmatprep.subr.bf16.mxu0 0
    %1617 = vmatpush2.bf16.xpose.msra.mxu0 0
    %1618 = vmatprep.subr.bf16.mxu0 0
    %1619 = vmatpush2.bf16.xpose.msra.mxu0 0
    %1620 = vmatprep.subr.bf16.mxu0 0
    %1621 = vmatpush2.bf16.xpose.msra.mxu0 0
    %1622 = vmatprep.subr.bf16.mxu0 0
    %1623 = vmatpush2.bf16.xpose.msra.mxu0 0
    %1624 = vmatprep.subr.bf16.mxu0 0
    %1625 = vmatpush2.bf16.xpose.msra.mxu0 0
    %1626 = vmatprep.subr.bf16.mxu0 0
    %1627 = vmatpush2.bf16.xpose.msra.mxu0 0
    %1628 = vmatprep.subr.bf16.mxu0 0
    %1629 = vmatpush2.bf16.xpose.msra.mxu0 0
    %1630 = vmatprep.subr.bf16.mxu0 0
    %1631 = vmatpush2.bf16.xpose.msra.mxu0 0
    %1632 = vmatprep.mubr.bf16.mxu0 0
    %1633 = vmatmul.mubr.bf16.gmra.mxu0 %v1595
    %v1634 = vpop.f32.mrf.mxu0
    %v1635 = vadd.f32 0.0, %v1634
    %v1636 = vpop.f32.mrf.mxu0
    %v1637 = vpop.f32.mrf.mxu0
    %v1638 = vpop.f32.mrf.mxu0
    %1639 = vdwg.mxu0
    %v1641 = vsel %vm344, %v1589, 0
    %v1644 = vsel %vm344, %v1591, 0
    %1646 = vmatprep.subr.bf16.mxu0 0
    %1647 = vmatpush1.bf16.xpose.msra.mxu0 0
    %1648 = vmatprep.subr.bf16.mxu0 0
    %1649 = vmatpush1.bf16.xpose.msra.mxu0 0
    %1650 = vmatprep.subr.bf16.mxu0 0
    %1651 = vmatpush1.bf16.xpose.msra.mxu0 0
    %1652 = vmatprep.subr.bf16.mxu0 0
    %1653 = vmatpush1.bf16.xpose.msra.mxu0 0
    %1654 = vmatprep.subr.bf16.mxu0 0
    %1655 = vmatpush1.bf16.xpose.msra.mxu0 0
    %1656 = vmatprep.subr.bf16.mxu0 0
    %1657 = vmatpush1.bf16.xpose.msra.mxu0 0
    %1658 = vmatprep.subr.bf16.mxu0 0
    %1659 = vmatpush1.bf16.xpose.msra.mxu0 0
    %1660 = vmatprep.subr.bf16.mxu0 0
    %1661 = vmatpush1.bf16.xpose.msra.mxu0 %v1644
    %1662 = vmatprep.subr.bf16.mxu0 0
    %1663 = vmatpush2.bf16.xpose.msra.mxu0 0
    %1664 = vmatprep.subr.bf16.mxu0 0
    %1665 = vmatpush2.bf16.xpose.msra.mxu0 0
    %1666 = vmatprep.subr.bf16.mxu0 0
    %1667 = vmatpush2.bf16.xpose.msra.mxu0 0
    %1668 = vmatprep.subr.bf16.mxu0 0
    %1669 = vmatpush2.bf16.xpose.msra.mxu0 0
    %1670 = vmatprep.subr.bf16.mxu0 0
    %1671 = vmatpush2.bf16.xpose.msra.mxu0 0
    %1672 = vmatprep.subr.bf16.mxu0 0
    %1673 = vmatpush2.bf16.xpose.msra.mxu0 0
    %1674 = vmatprep.subr.bf16.mxu0 0
    %1675 = vmatpush2.bf16.xpose.msra.mxu0 0
    %1676 = vmatprep.subr.bf16.mxu0 0
    %1677 = vmatpush2.bf16.xpose.msra.mxu0 0
    %1678 = vmatprep.mubr.bf16.mxu0 0
    %1679 = vmatmul.mubr.bf16.gmra.mxu0 %v1641
    %v1680 = vpop.f32.mrf.mxu0
    %v1681 = vadd.f32 0.0, %v1680
    %v1682 = vpop.f32.mrf.mxu0
    %v1683 = vpop.f32.mrf.mxu0
    %v1684 = vpop.f32.mrf.mxu0
    %1685 = vdwg.mxu0
    %v1686 = vmul.f32 %v1635, 0.25
    %v1687 = vmul.f32 %v1681, 0.25
    %v1688 = vsel %vm439, %v1686, -inf
    %1689 = vmax.xlane.f32.xlu0 %v1688
    %v1690 = vpop.xlane.xlu0 %1689
    %v1691 = vsel %vm439, %v1687, -inf
    %1692 = vmax.xlane.f32.xlu0 %v1691
    %v1693 = vpop.xlane.xlu0 %1692
    %v1694 = vsub.f32 %v1686, %v1690
    %v1695 = vsub.f32 %v1687, %v1693
    %v1696 = vmul.f32 %v1694, 1.442695
    %v1697 = vpow.pop %v1696
    %v1698 = vmul.f32 %v1695, 1.442695
    %v1699 = vpow.pop %v1698
    %v1700 = vsel %vm439, %v1697, 0.0
    %1701 = vadd.xlane.f32.xlu0 %v1700
    %v1702 = vpop.xlane.xlu0 %1701
    %v1703 = vsel %vm439, %v1699, 0.0
    %1704 = vadd.xlane.f32.xlu0 %v1703
    %v1705 = vpop.xlane.xlu0 %1704
    %v1706 = vrcp.pop %v1702
    %v1707 = vrcp.pop %v1705
    %v1708 = vmul.f32 %v1697, %v1706
    %v1709 = vmul.f32 %v1699, %v1707
    %v1710 = vpack.c.bf16 %v1708, %v1708
    %v1711 = vpack.c.bf16 %v1709, %v1709
    %v1713 = vsel %vm439, %v1710, 0
    %v1716 = vsel %vm467, %v1592, 0
    %1718 = vmatprep.subr.bf16.mxu0 0
    %1719 = vmatpush1.bf16.msra.mxu0 0
    %1720 = vmatprep.subr.bf16.mxu0 0
    %1721 = vmatpush1.bf16.msra.mxu0 0
    %1722 = vmatprep.subr.bf16.mxu0 0
    %1723 = vmatpush1.bf16.msra.mxu0 0
    %1724 = vmatprep.subr.bf16.mxu0 0
    %1725 = vmatpush1.bf16.msra.mxu0 0
    %1726 = vmatprep.subr.bf16.mxu0 0
    %1727 = vmatpush1.bf16.msra.mxu0 0
    %1728 = vmatprep.subr.bf16.mxu0 0
    %1729 = vmatpush1.bf16.msra.mxu0 0
    %1730 = vmatprep.subr.bf16.mxu0 0
    %1731 = vmatpush1.bf16.msra.mxu0 0
    %1732 = vmatprep.subr.bf16.mxu0 0
    %1733 = vmatpush1.bf16.msra.mxu0 %v1716
    %1734 = vmatprep.subr.bf16.mxu0 0
    %1735 = vmatpush2.bf16.msra.mxu0 0
    %1736 = vmatprep.subr.bf16.mxu0 0
    %1737 = vmatpush2.bf16.msra.mxu0 0
    %1738 = vmatprep.subr.bf16.mxu0 0
    %1739 = vmatpush2.bf16.msra.mxu0 0
    %1740 = vmatprep.subr.bf16.mxu0 0
    %1741 = vmatpush2.bf16.msra.mxu0 0
    %1742 = vmatprep.subr.bf16.mxu0 0
    %1743 = vmatpush2.bf16.msra.mxu0 0
    %1744 = vmatprep.subr.bf16.mxu0 0
    %1745 = vmatpush2.bf16.msra.mxu0 0
    %1746 = vmatprep.subr.bf16.mxu0 0
    %1747 = vmatpush2.bf16.msra.mxu0 0
    %1748 = vmatprep.subr.bf16.mxu0 0
    %1749 = vmatpush2.bf16.msra.mxu0 0
    %1750 = vmatprep.mubr.bf16.mxu0 0
    %1751 = vmatmul.mubr.bf16.gmra.mxu0 %v1713
    %v1752 = vpop.f32.mrf.mxu0
    %v1753 = vadd.f32 0.0, %v1752
    %v1754 = vpop.f32.mrf.mxu0
    %v1755 = vpop.f32.mrf.mxu0
    %v1756 = vpop.f32.mrf.mxu0
    %1757 = vdwg.mxu0
    %v1759 = vsel %vm439, %v1711, 0
    %v1762 = vsel %vm467, %v1593, 0
    %1764 = vmatprep.subr.bf16.mxu0 0
    %1765 = vmatpush1.bf16.msra.mxu0 0
    %1766 = vmatprep.subr.bf16.mxu0 0
    %1767 = vmatpush1.bf16.msra.mxu0 0
    %1768 = vmatprep.subr.bf16.mxu0 0
    %1769 = vmatpush1.bf16.msra.mxu0 0
    %1770 = vmatprep.subr.bf16.mxu0 0
    %1771 = vmatpush1.bf16.msra.mxu0 0
    %1772 = vmatprep.subr.bf16.mxu0 0
    %1773 = vmatpush1.bf16.msra.mxu0 0
    %1774 = vmatprep.subr.bf16.mxu0 0
    %1775 = vmatpush1.bf16.msra.mxu0 0
    %1776 = vmatprep.subr.bf16.mxu0 0
    %1777 = vmatpush1.bf16.msra.mxu0 0
    %1778 = vmatprep.subr.bf16.mxu0 0
    %1779 = vmatpush1.bf16.msra.mxu0 %v1762
    %1780 = vmatprep.subr.bf16.mxu0 0
    %1781 = vmatpush2.bf16.msra.mxu0 0
    %1782 = vmatprep.subr.bf16.mxu0 0
    %1783 = vmatpush2.bf16.msra.mxu0 0
    %1784 = vmatprep.subr.bf16.mxu0 0
    %1785 = vmatpush2.bf16.msra.mxu0 0
    %1786 = vmatprep.subr.bf16.mxu0 0
    %1787 = vmatpush2.bf16.msra.mxu0 0
    %1788 = vmatprep.subr.bf16.mxu0 0
    %1789 = vmatpush2.bf16.msra.mxu0 0
    %1790 = vmatprep.subr.bf16.mxu0 0
    %1791 = vmatpush2.bf16.msra.mxu0 0
    %1792 = vmatprep.subr.bf16.mxu0 0
    %1793 = vmatpush2.bf16.msra.mxu0 0
    %1794 = vmatprep.subr.bf16.mxu0 0
    %1795 = vmatpush2.bf16.msra.mxu0 0
    %1796 = vmatprep.mubr.bf16.mxu0 0
    %1797 = vmatmul.mubr.bf16.gmra.mxu0 %v1759
    %v1798 = vpop.f32.mrf.mxu0
    %v1799 = vadd.f32 0.0, %v1798
    %v1800 = vpop.f32.mrf.mxu0
    %v1801 = vpop.f32.mrf.mxu0
    %v1802 = vpop.f32.mrf.mxu0
    %1803 = vdwg.mxu0
    %v1804 = vpack.c.bf16 %v1799, %v1753
    %s1805 = scalar_lea.vmem %s9, 16
    %v1806 = vld [vmem:[%s1805] sm:$0xf]
    %v1807 = vld [vmem:[%s1805 + $0x4] sm:$0xf]
    %s1808 = scalar_lea.vmem %s3, 48
    %v1809 = vld [vmem:[%s1808] sm:$0xf]
    %v1810 = vld [vmem:[%s1808 + $0x4] sm:$0xf]
    %v1811 = vld [vmem:[%s1808 + $0x8] sm:$0xf]
    %v1812 = vld [vmem:[%s1808 + $0xc] sm:$0xf]
    %s1813 = scalar_lea.vmem %s6, 3
    %v1814 = vld [vmem:[%s1813] sm:$0x1]
    %v1816 = vlaneseq
    %v1817 = vshrl.u32 %v1816, 7
    %v1818 = vsub.s32 0, %v1817
    %v1819 = vrot.slane %v1814, %v1818
    %v1825 = vunpack.c.l.b16 %v1809
    %v1826 = vunpack.c.l.b16 %v1810
    %v1827 = vunpack.c.l.b16 %v1811
    %v1828 = vunpack.c.l.b16 %v1812
    %v1829 = vpack.c.b16 %v1826, %v1825
    %v1830 = vpack.c.b16 %v1828, %v1827
    %1833 = vmatprep.subr.bf16.mxu0 0
    %1834 = vmatpush1.bf16.msra.mxu0 0
    %1835 = vmatprep.subr.bf16.mxu0 0
    %1836 = vmatpush1.bf16.msra.mxu0 0
    %1837 = vmatprep.subr.bf16.mxu0 0
    %1838 = vmatpush1.bf16.msra.mxu0 0
    %1839 = vmatprep.subr.bf16.mxu0 0
    %1840 = vmatpush1.bf16.msra.mxu0 0
    %1841 = vmatprep.subr.bf16.mxu0 0
    %1842 = vmatpush1.bf16.msra.mxu0 0
    %1843 = vmatprep.subr.bf16.mxu0 0
    %1844 = vmatpush1.bf16.msra.mxu0 0
    %1845 = vmatprep.subr.bf16.mxu0 0
    %1846 = vmatpush1.bf16.msra.mxu0 %v1830
    %1847 = vmatprep.subr.bf16.mxu0 0
    %1848 = vmatpush1.bf16.msra.mxu0 %v1829
    %1849 = vmatprep.subr.bf16.mxu0 0
    %1850 = vmatpush2.bf16.msra.mxu0 0
    %1851 = vmatprep.subr.bf16.mxu0 0
    %1852 = vmatpush2.bf16.msra.mxu0 0
    %1853 = vmatprep.subr.bf16.mxu0 0
    %1854 = vmatpush2.bf16.msra.mxu0 0
    %1855 = vmatprep.subr.bf16.mxu0 0
    %1856 = vmatpush2.bf16.msra.mxu0 0
    %1857 = vmatprep.subr.bf16.mxu0 0
    %1858 = vmatpush2.bf16.msra.mxu0 0
    %1859 = vmatprep.subr.bf16.mxu0 0
    %1860 = vmatpush2.bf16.msra.mxu0 0
    %1861 = vmatprep.subr.bf16.mxu0 0
    %1862 = vmatpush2.bf16.msra.mxu0 0
    %1863 = vmatprep.subr.bf16.mxu0 0
    %1864 = vmatpush2.bf16.msra.mxu0 0
    %1865 = vmatprep.mubr.bf16.mxu0 0
    %1866 = vmatmul.mubr.bf16.gmra.mxu0 %v1413
    %v1867 = vpop.f32.mrf.mxu0
    %v1868 = vadd.f32 %v1819, %v1867
    %v1869 = vpop.f32.mrf.mxu0
    %v1870 = vpop.f32.mrf.mxu0
    %v1871 = vadd.f32 %v1819, %v1870
    %v1872 = vpop.f32.mrf.mxu0
    %1873 = vdwg.mxu0
    %s1874 = scalar_lea.vmem %s4, 48
    %v1875 = vld [vmem:[%s1874] sm:$0xf]
    %v1876 = vld [vmem:[%s1874 + $0x4] sm:$0xf]
    %v1877 = vld [vmem:[%s1874 + $0x8] sm:$0xf]
    %v1878 = vld [vmem:[%s1874 + $0xc] sm:$0xf]
    %s1879 = scalar_lea.vmem %s7, 3
    %v1880 = vld [vmem:[%s1879] sm:$0x1]
    %v1882 = vlaneseq
    %v1883 = vshrl.u32 %v1882, 7
    %v1884 = vsub.s32 0, %v1883
    %v1885 = vrot.slane %v1880, %v1884
    %v1891 = vunpack.c.l.b16 %v1875
    %v1892 = vunpack.c.l.b16 %v1876
    %v1893 = vunpack.c.l.b16 %v1877
    %v1894 = vunpack.c.l.b16 %v1878
    %v1895 = vpack.c.b16 %v1892, %v1891
    %v1896 = vpack.c.b16 %v1894, %v1893
    %1899 = vmatprep.subr.bf16.mxu0 0
    %1900 = vmatpush1.bf16.msra.mxu0 0
    %1901 = vmatprep.subr.bf16.mxu0 0
    %1902 = vmatpush1.bf16.msra.mxu0 0
    %1903 = vmatprep.subr.bf16.mxu0 0
    %1904 = vmatpush1.bf16.msra.mxu0 0
    %1905 = vmatprep.subr.bf16.mxu0 0
    %1906 = vmatpush1.bf16.msra.mxu0 0
    %1907 = vmatprep.subr.bf16.mxu0 0
    %1908 = vmatpush1.bf16.msra.mxu0 0
    %1909 = vmatprep.subr.bf16.mxu0 0
    %1910 = vmatpush1.bf16.msra.mxu0 0
    %1911 = vmatprep.subr.bf16.mxu0 0
    %1912 = vmatpush1.bf16.msra.mxu0 %v1896
    %1913 = vmatprep.subr.bf16.mxu0 0
    %1914 = vmatpush1.bf16.msra.mxu0 %v1895
    %1915 = vmatprep.subr.bf16.mxu0 0
    %1916 = vmatpush2.bf16.msra.mxu0 0
    %1917 = vmatprep.subr.bf16.mxu0 0
    %1918 = vmatpush2.bf16.msra.mxu0 0
    %1919 = vmatprep.subr.bf16.mxu0 0
    %1920 = vmatpush2.bf16.msra.mxu0 0
    %1921 = vmatprep.subr.bf16.mxu0 0
    %1922 = vmatpush2.bf16.msra.mxu0 0
    %1923 = vmatprep.subr.bf16.mxu0 0
    %1924 = vmatpush2.bf16.msra.mxu0 0
    %1925 = vmatprep.subr.bf16.mxu0 0
    %1926 = vmatpush2.bf16.msra.mxu0 0
    %1927 = vmatprep.subr.bf16.mxu0 0
    %1928 = vmatpush2.bf16.msra.mxu0 0
    %1929 = vmatprep.subr.bf16.mxu0 0
    %1930 = vmatpush2.bf16.msra.mxu0 0
    %1931 = vmatprep.mubr.bf16.mxu0 0
    %1932 = vmatmul.mubr.bf16.gmra.mxu0 %v1413
    %v1933 = vpop.f32.mrf.mxu0
    %v1934 = vadd.f32 %v1885, %v1933
    %v1935 = vpop.f32.mrf.mxu0
    %v1936 = vpop.f32.mrf.mxu0
    %v1937 = vadd.f32 %v1885, %v1936
    %v1938 = vpop.f32.mrf.mxu0
    %1939 = vdwg.mxu0
    %s1940 = scalar_lea.vmem %s5, 48
    %v1941 = vld [vmem:[%s1940] sm:$0xf]
    %v1942 = vld [vmem:[%s1940 + $0x4] sm:$0xf]
    %v1943 = vld [vmem:[%s1940 + $0x8] sm:$0xf]
    %v1944 = vld [vmem:[%s1940 + $0xc] sm:$0xf]
    %s1945 = scalar_lea.vmem %s8, 3
    %v1946 = vld [vmem:[%s1945] sm:$0x1]
    %v1948 = vlaneseq
    %v1949 = vshrl.u32 %v1948, 7
    %v1950 = vsub.s32 0, %v1949
    %v1951 = vrot.slane %v1946, %v1950
    %v1957 = vunpack.c.l.b16 %v1941
    %v1958 = vunpack.c.l.b16 %v1942
    %v1959 = vunpack.c.l.b16 %v1943
    %v1960 = vunpack.c.l.b16 %v1944
    %v1961 = vpack.c.b16 %v1958, %v1957
    %v1962 = vpack.c.b16 %v1960, %v1959
    %1965 = vmatprep.subr.bf16.mxu0 0
    %1966 = vmatpush1.bf16.msra.mxu0 0
    %1967 = vmatprep.subr.bf16.mxu0 0
    %1968 = vmatpush1.bf16.msra.mxu0 0
    %1969 = vmatprep.subr.bf16.mxu0 0
    %1970 = vmatpush1.bf16.msra.mxu0 0
    %1971 = vmatprep.subr.bf16.mxu0 0
    %1972 = vmatpush1.bf16.msra.mxu0 0
    %1973 = vmatprep.subr.bf16.mxu0 0
    %1974 = vmatpush1.bf16.msra.mxu0 0
    %1975 = vmatprep.subr.bf16.mxu0 0
    %1976 = vmatpush1.bf16.msra.mxu0 0
    %1977 = vmatprep.subr.bf16.mxu0 0
    %1978 = vmatpush1.bf16.msra.mxu0 %v1962
    %1979 = vmatprep.subr.bf16.mxu0 0
    %1980 = vmatpush1.bf16.msra.mxu0 %v1961
    %1981 = vmatprep.subr.bf16.mxu0 0
    %1982 = vmatpush2.bf16.msra.mxu0 0
    %1983 = vmatprep.subr.bf16.mxu0 0
    %1984 = vmatpush2.bf16.msra.mxu0 0
    %1985 = vmatprep.subr.bf16.mxu0 0
    %1986 = vmatpush2.bf16.msra.mxu0 0
    %1987 = vmatprep.subr.bf16.mxu0 0
    %1988 = vmatpush2.bf16.msra.mxu0 0
    %1989 = vmatprep.subr.bf16.mxu0 0
    %1990 = vmatpush2.bf16.msra.mxu0 0
    %1991 = vmatprep.subr.bf16.mxu0 0
    %1992 = vmatpush2.bf16.msra.mxu0 0
    %1993 = vmatprep.subr.bf16.mxu0 0
    %1994 = vmatpush2.bf16.msra.mxu0 0
    %1995 = vmatprep.subr.bf16.mxu0 0
    %1996 = vmatpush2.bf16.msra.mxu0 0
    %1997 = vmatprep.mubr.bf16.mxu0 0
    %1998 = vmatmul.mubr.bf16.gmra.mxu0 %v1413
    %v1999 = vpop.f32.mrf.mxu0
    %v2000 = vadd.f32 %v1951, %v1999
    %v2001 = vpop.f32.mrf.mxu0
    %v2002 = vpop.f32.mrf.mxu0
    %v2003 = vadd.f32 %v1951, %v2002
    %v2004 = vpop.f32.mrf.mxu0
    %2005 = vdwg.mxu0
    %v2006 = vpack.c.bf16 %v1868, %v1868
    %v2007 = vpack.c.bf16 %v1871, %v1871
    %v2008 = vpack.c.bf16 %v1934, %v1934
    %v2009 = vpack.c.bf16 %v1937, %v1937
    %v2010 = vpack.c.bf16 %v2000, %v2000
    %v2011 = vpack.c.bf16 %v2003, %v2003
    %v2013 = vsel %vm344, %v2006, 0
    %v2016 = vsel %vm344, %v2008, 0
    %2018 = vmatprep.subr.bf16.mxu0 0
    %2019 = vmatpush1.bf16.xpose.msra.mxu0 0
    %2020 = vmatprep.subr.bf16.mxu0 0
    %2021 = vmatpush1.bf16.xpose.msra.mxu0 0
    %2022 = vmatprep.subr.bf16.mxu0 0
    %2023 = vmatpush1.bf16.xpose.msra.mxu0 0
    %2024 = vmatprep.subr.bf16.mxu0 0
    %2025 = vmatpush1.bf16.xpose.msra.mxu0 0
    %2026 = vmatprep.subr.bf16.mxu0 0
    %2027 = vmatpush1.bf16.xpose.msra.mxu0 0
    %2028 = vmatprep.subr.bf16.mxu0 0
    %2029 = vmatpush1.bf16.xpose.msra.mxu0 0
    %2030 = vmatprep.subr.bf16.mxu0 0
    %2031 = vmatpush1.bf16.xpose.msra.mxu0 0
    %2032 = vmatprep.subr.bf16.mxu0 0
    %2033 = vmatpush1.bf16.xpose.msra.mxu0 %v2016
    %2034 = vmatprep.subr.bf16.mxu0 0
    %2035 = vmatpush2.bf16.xpose.msra.mxu0 0
    %2036 = vmatprep.subr.bf16.mxu0 0
    %2037 = vmatpush2.bf16.xpose.msra.mxu0 0
    %2038 = vmatprep.subr.bf16.mxu0 0
    %2039 = vmatpush2.bf16.xpose.msra.mxu0 0
    %2040 = vmatprep.subr.bf16.mxu0 0
    %2041 = vmatpush2.bf16.xpose.msra.mxu0 0
    %2042 = vmatprep.subr.bf16.mxu0 0
    %2043 = vmatpush2.bf16.xpose.msra.mxu0 0
    %2044 = vmatprep.subr.bf16.mxu0 0
    %2045 = vmatpush2.bf16.xpose.msra.mxu0 0
    %2046 = vmatprep.subr.bf16.mxu0 0
    %2047 = vmatpush2.bf16.xpose.msra.mxu0 0
    %2048 = vmatprep.subr.bf16.mxu0 0
    %2049 = vmatpush2.bf16.xpose.msra.mxu0 0
    %2050 = vmatprep.mubr.bf16.mxu0 0
    %2051 = vmatmul.mubr.bf16.gmra.mxu0 %v2013
    %v2052 = vpop.f32.mrf.mxu0
    %v2053 = vadd.f32 0.0, %v2052
    %v2054 = vpop.f32.mrf.mxu0
    %v2055 = vpop.f32.mrf.mxu0
    %v2056 = vpop.f32.mrf.mxu0
    %2057 = vdwg.mxu0
    %v2059 = vsel %vm344, %v2007, 0
    %v2062 = vsel %vm344, %v2009, 0
    %2064 = vmatprep.subr.bf16.mxu0 0
    %2065 = vmatpush1.bf16.xpose.msra.mxu0 0
    %2066 = vmatprep.subr.bf16.mxu0 0
    %2067 = vmatpush1.bf16.xpose.msra.mxu0 0
    %2068 = vmatprep.subr.bf16.mxu0 0
    %2069 = vmatpush1.bf16.xpose.msra.mxu0 0
    %2070 = vmatprep.subr.bf16.mxu0 0
    %2071 = vmatpush1.bf16.xpose.msra.mxu0 0
    %2072 = vmatprep.subr.bf16.mxu0 0
    %2073 = vmatpush1.bf16.xpose.msra.mxu0 0
    %2074 = vmatprep.subr.bf16.mxu0 0
    %2075 = vmatpush1.bf16.xpose.msra.mxu0 0
    %2076 = vmatprep.subr.bf16.mxu0 0
    %2077 = vmatpush1.bf16.xpose.msra.mxu0 0
    %2078 = vmatprep.subr.bf16.mxu0 0
    %2079 = vmatpush1.bf16.xpose.msra.mxu0 %v2062
    %2080 = vmatprep.subr.bf16.mxu0 0
    %2081 = vmatpush2.bf16.xpose.msra.mxu0 0
    %2082 = vmatprep.subr.bf16.mxu0 0
    %2083 = vmatpush2.bf16.xpose.msra.mxu0 0
    %2084 = vmatprep.subr.bf16.mxu0 0
    %2085 = vmatpush2.bf16.xpose.msra.mxu0 0
    %2086 = vmatprep.subr.bf16.mxu0 0
    %2087 = vmatpush2.bf16.xpose.msra.mxu0 0
    %2088 = vmatprep.subr.bf16.mxu0 0
    %2089 = vmatpush2.bf16.xpose.msra.mxu0 0
    %2090 = vmatprep.subr.bf16.mxu0 0
    %2091 = vmatpush2.bf16.xpose.msra.mxu0 0
    %2092 = vmatprep.subr.bf16.mxu0 0
    %2093 = vmatpush2.bf16.xpose.msra.mxu0 0
    %2094 = vmatprep.subr.bf16.mxu0 0
    %2095 = vmatpush2.bf16.xpose.msra.mxu0 0
    %2096 = vmatprep.mubr.bf16.mxu0 0
    %2097 = vmatmul.mubr.bf16.gmra.mxu0 %v2059
    %v2098 = vpop.f32.mrf.mxu0
    %v2099 = vadd.f32 0.0, %v2098
    %v2100 = vpop.f32.mrf.mxu0
    %v2101 = vpop.f32.mrf.mxu0
    %v2102 = vpop.f32.mrf.mxu0
    %2103 = vdwg.mxu0
    %v2104 = vmul.f32 %v2053, 0.25
    %v2105 = vmul.f32 %v2099, 0.25
    %v2106 = vsel %vm439, %v2104, -inf
    %2107 = vmax.xlane.f32.xlu0 %v2106
    %v2108 = vpop.xlane.xlu0 %2107
    %v2109 = vsel %vm439, %v2105, -inf
    %2110 = vmax.xlane.f32.xlu0 %v2109
    %v2111 = vpop.xlane.xlu0 %2110
    %v2112 = vsub.f32 %v2104, %v2108
    %v2113 = vsub.f32 %v2105, %v2111
    %v2114 = vmul.f32 %v2112, 1.442695
    %v2115 = vpow.pop %v2114
    %v2116 = vmul.f32 %v2113, 1.442695
    %v2117 = vpow.pop %v2116
    %v2118 = vsel %vm439, %v2115, 0.0
    %2119 = vadd.xlane.f32.xlu0 %v2118
    %v2120 = vpop.xlane.xlu0 %2119
    %v2121 = vsel %vm439, %v2117, 0.0
    %2122 = vadd.xlane.f32.xlu0 %v2121
    %v2123 = vpop.xlane.xlu0 %2122
    %v2124 = vrcp.pop %v2120
    %v2125 = vrcp.pop %v2123
    %v2126 = vmul.f32 %v2115, %v2124
    %v2127 = vmul.f32 %v2117, %v2125
    %v2128 = vpack.c.bf16 %v2126, %v2126
    %v2129 = vpack.c.bf16 %v2127, %v2127
    %v2131 = vsel %vm439, %v2128, 0
    %v2134 = vsel %vm467, %v2010, 0
    %2136 = vmatprep.subr.bf16.mxu0 0
    %2137 = vmatpush1.bf16.msra.mxu0 0
    %2138 = vmatprep.subr.bf16.mxu0 0
    %2139 = vmatpush1.bf16.msra.mxu0 0
    %2140 = vmatprep.subr.bf16.mxu0 0
    %2141 = vmatpush1.bf16.msra.mxu0 0
    %2142 = vmatprep.subr.bf16.mxu0 0
    %2143 = vmatpush1.bf16.msra.mxu0 0
    %2144 = vmatprep.subr.bf16.mxu0 0
    %2145 = vmatpush1.bf16.msra.mxu0 0
    %2146 = vmatprep.subr.bf16.mxu0 0
    %2147 = vmatpush1.bf16.msra.mxu0 0
    %2148 = vmatprep.subr.bf16.mxu0 0
    %2149 = vmatpush1.bf16.msra.mxu0 0
    %2150 = vmatprep.subr.bf16.mxu0 0
    %2151 = vmatpush1.bf16.msra.mxu0 %v2134
    %2152 = vmatprep.subr.bf16.mxu0 0
    %2153 = vmatpush2.bf16.msra.mxu0 0
    %2154 = vmatprep.subr.bf16.mxu0 0
    %2155 = vmatpush2.bf16.msra.mxu0 0
    %2156 = vmatprep.subr.bf16.mxu0 0
    %2157 = vmatpush2.bf16.msra.mxu0 0
    %2158 = vmatprep.subr.bf16.mxu0 0
    %2159 = vmatpush2.bf16.msra.mxu0 0
    %2160 = vmatprep.subr.bf16.mxu0 0
    %2161 = vmatpush2.bf16.msra.mxu0 0
    %2162 = vmatprep.subr.bf16.mxu0 0
    %2163 = vmatpush2.bf16.msra.mxu0 0
    %2164 = vmatprep.subr.bf16.mxu0 0
    %2165 = vmatpush2.bf16.msra.mxu0 0
    %2166 = vmatprep.subr.bf16.mxu0 0
    %2167 = vmatpush2.bf16.msra.mxu0 0
    %2168 = vmatprep.mubr.bf16.mxu0 0
    %2169 = vmatmul.mubr.bf16.gmra.mxu0 %v2131
    %v2170 = vpop.f32.mrf.mxu0
    %v2171 = vadd.f32 0.0, %v2170
    %v2172 = vpop.f32.mrf.mxu0
    %v2173 = vpop.f32.mrf.mxu0
    %v2174 = vpop.f32.mrf.mxu0
    %2175 = vdwg.mxu0
    %v2177 = vsel %vm439, %v2129, 0
    %v2180 = vsel %vm467, %v2011, 0
    %2182 = vmatprep.subr.bf16.mxu0 0
    %2183 = vmatpush1.bf16.msra.mxu0 0
    %2184 = vmatprep.subr.bf16.mxu0 0
    %2185 = vmatpush1.bf16.msra.mxu0 0
    %2186 = vmatprep.subr.bf16.mxu0 0
    %2187 = vmatpush1.bf16.msra.mxu0 0
    %2188 = vmatprep.subr.bf16.mxu0 0
    %2189 = vmatpush1.bf16.msra.mxu0 0
    %2190 = vmatprep.subr.bf16.mxu0 0
    %2191 = vmatpush1.bf16.msra.mxu0 0
    %2192 = vmatprep.subr.bf16.mxu0 0
    %2193 = vmatpush1.bf16.msra.mxu0 0
    %2194 = vmatprep.subr.bf16.mxu0 0
    %2195 = vmatpush1.bf16.msra.mxu0 0
    %2196 = vmatprep.subr.bf16.mxu0 0
    %2197 = vmatpush1.bf16.msra.mxu0 %v2180
    %2198 = vmatprep.subr.bf16.mxu0 0
    %2199 = vmatpush2.bf16.msra.mxu0 0
    %2200 = vmatprep.subr.bf16.mxu0 0
    %2201 = vmatpush2.bf16.msra.mxu0 0
    %2202 = vmatprep.subr.bf16.mxu0 0
    %2203 = vmatpush2.bf16.msra.mxu0 0
    %2204 = vmatprep.subr.bf16.mxu0 0
    %2205 = vmatpush2.bf16.msra.mxu0 0
    %2206 = vmatprep.subr.bf16.mxu0 0
    %2207 = vmatpush2.bf16.msra.mxu0 0
    %2208 = vmatprep.subr.bf16.mxu0 0
    %2209 = vmatpush2.bf16.msra.mxu0 0
    %2210 = vmatprep.subr.bf16.mxu0 0
    %2211 = vmatpush2.bf16.msra.mxu0 0
    %2212 = vmatprep.subr.bf16.mxu0 0
    %2213 = vmatpush2.bf16.msra.mxu0 0
    %2214 = vmatprep.mubr.bf16.mxu0 0
    %2215 = vmatmul.mubr.bf16.gmra.mxu0 %v2177
    %v2216 = vpop.f32.mrf.mxu0
    %v2217 = vadd.f32 0.0, %v2216
    %v2218 = vpop.f32.mrf.mxu0
    %v2219 = vpop.f32.mrf.mxu0
    %v2220 = vpop.f32.mrf.mxu0
    %2221 = vdwg.mxu0
    %v2222 = vpack.c.bf16 %v2217, %v2171
    %s2223 = scalar_lea.vmem %s9, 24
    %v2224 = vld [vmem:[%s2223] sm:$0xf]
    %v2225 = vld [vmem:[%s2223 + $0x4] sm:$0xf]
    %v2228 = vunpack.c.l.b16 %v2224
    %v2229 = vunpack.c.l.b16 %v2225
    %v2230 = vpack.c.b16 %v2229, %v2228
    %v2233 = vsel %vm344, %v2222, 0
    %2235 = vmatprep.subr.bf16.mxu0 0
    %2236 = vmatpush1.bf16.msra.mxu0 0
    %2237 = vmatprep.subr.bf16.mxu0 0
    %2238 = vmatpush1.bf16.msra.mxu0 0
    %2239 = vmatprep.subr.bf16.mxu0 0
    %2240 = vmatpush1.bf16.msra.mxu0 0
    %2241 = vmatprep.subr.bf16.mxu0 0
    %2242 = vmatpush1.bf16.msra.mxu0 0
    %2243 = vmatprep.subr.bf16.mxu0 0
    %2244 = vmatpush1.bf16.msra.mxu0 0
    %2245 = vmatprep.subr.bf16.mxu0 0
    %2246 = vmatpush1.bf16.msra.mxu0 0
    %2247 = vmatprep.subr.bf16.mxu0 0
    %2248 = vmatpush1.bf16.msra.mxu0 0
    %2249 = vmatprep.subr.bf16.mxu0 0
    %2250 = vmatpush1.bf16.msra.mxu0 %v2230
    %2251 = vmatprep.subr.bf16.mxu0 0
    %2252 = vmatpush2.bf16.msra.mxu0 0
    %2253 = vmatprep.subr.bf16.mxu0 0
    %2254 = vmatpush2.bf16.msra.mxu0 0
    %2255 = vmatprep.subr.bf16.mxu0 0
    %2256 = vmatpush2.bf16.msra.mxu0 0
    %2257 = vmatprep.subr.bf16.mxu0 0
    %2258 = vmatpush2.bf16.msra.mxu0 0
    %2259 = vmatprep.subr.bf16.mxu0 0
    %2260 = vmatpush2.bf16.msra.mxu0 0
    %2261 = vmatprep.subr.bf16.mxu0 0
    %2262 = vmatpush2.bf16.msra.mxu0 0
    %2263 = vmatprep.subr.bf16.mxu0 0
    %2264 = vmatpush2.bf16.msra.mxu0 0
    %2265 = vmatprep.subr.bf16.mxu0 0
    %2266 = vmatpush2.bf16.msra.mxu0 0
    %2267 = vmatprep.mubr.bf16.mxu0 0
    %2268 = vmatmul.mubr.bf16.gmra.mxu0 %v2233
    %v2269 = vpop.f32.mrf.mxu0
    %v2270 = vadd.f32 0.0, %v2269
    %v2271 = vpop.f32.mrf.mxu0
    %v2272 = vpop.f32.mrf.mxu0
    %v2273 = vadd.f32 0.0, %v2272
    %v2274 = vpop.f32.mrf.mxu0
    %2275 = vdwg.mxu0
    %v2278 = vunpack.c.l.b16 %v1806
    %v2279 = vunpack.c.l.b16 %v1807
    %v2280 = vpack.c.b16 %v2279, %v2278
    %v2283 = vsel %vm344, %v1804, 0
    %2285 = vmatprep.subr.bf16.mxu0 0
    %2286 = vmatpush1.bf16.msra.mxu0 0
    %2287 = vmatprep.subr.bf16.mxu0 0
    %2288 = vmatpush1.bf16.msra.mxu0 0
    %2289 = vmatprep.subr.bf16.mxu0 0
    %2290 = vmatpush1.bf16.msra.mxu0 0
    %2291 = vmatprep.subr.bf16.mxu0 0
    %2292 = vmatpush1.bf16.msra.mxu0 0
    %2293 = vmatprep.subr.bf16.mxu0 0
    %2294 = vmatpush1.bf16.msra.mxu0 0
    %2295 = vmatprep.subr.bf16.mxu0 0
    %2296 = vmatpush1.bf16.msra.mxu0 0
    %2297 = vmatprep.subr.bf16.mxu0 0
    %2298 = vmatpush1.bf16.msra.mxu0 0
    %2299 = vmatprep.subr.bf16.mxu0 0
    %2300 = vmatpush1.bf16.msra.mxu0 %v2280
    %2301 = vmatprep.subr.bf16.mxu0 0
    %2302 = vmatpush2.bf16.msra.mxu0 0
    %2303 = vmatprep.subr.bf16.mxu0 0
    %2304 = vmatpush2.bf16.msra.mxu0 0
    %2305 = vmatprep.subr.bf16.mxu0 0
    %2306 = vmatpush2.bf16.msra.mxu0 0
    %2307 = vmatprep.subr.bf16.mxu0 0
    %2308 = vmatpush2.bf16.msra.mxu0 0
    %2309 = vmatprep.subr.bf16.mxu0 0
    %2310 = vmatpush2.bf16.msra.mxu0 0
    %2311 = vmatprep.subr.bf16.mxu0 0
    %2312 = vmatpush2.bf16.msra.mxu0 0
    %2313 = vmatprep.subr.bf16.mxu0 0
    %2314 = vmatpush2.bf16.msra.mxu0 0
    %2315 = vmatprep.subr.bf16.mxu0 0
    %2316 = vmatpush2.bf16.msra.mxu0 0
    %2317 = vmatprep.mubr.bf16.mxu0 0
    %2318 = vmatmul.mubr.bf16.gmra.mxu0 %v2283
    %v2319 = vpop.f32.mrf.mxu0
    %v2320 = vadd.f32 %v2270, %v2319
    %v2321 = vpop.f32.mrf.mxu0
    %v2322 = vpop.f32.mrf.mxu0
    %v2323 = vadd.f32 %v2273, %v2322
    %v2324 = vpop.f32.mrf.mxu0
    %2325 = vdwg.mxu0
    %s2326 = scalar_lea.vmem %s10, 1
    %v2327 = vld [vmem:[%s2326] sm:$0x1]
    %v2329 = vlaneseq
    %v2330 = vshrl.u32 %v2329, 7
    %v2331 = vsub.s32 0, %v2330
    %v2332 = vrot.slane %v2327, %v2331
    %v2334 = vadd.f32 %v2320, %v2332
    %v2335 = vadd.f32 %v2323, %v2332
    %v2336 = vadd.f32 %v2334, %v1384
    %v2337 = vadd.f32 %v2335, %v1385
    %s2338 = scalar_lea.vmem %s11, 1
    %v2339 = vld [vmem:[%s2338] sm:$0x1]
    %s2340 = scalar_lea.vmem %s12, 1
    %v2341 = vld [vmem:[%s2340] sm:$0x1]
    %v2342 = vsel %vm95, %v2336, 0.0
    %2343 = vadd.xlane.f32.xlu0 %v2342
    %v2344 = vpop.xlane.xlu0 %2343
    %v2345 = vsel %vm95, %v2337, 0.0
    %2346 = vadd.xlane.f32.xlu0 %v2345
    %v2347 = vpop.xlane.xlu0 %2346
    %v2348 = vmul.f32 %v2336, %v2336
    %v2349 = vmul.f32 %v2337, %v2337
    %v2350 = vsel %vm95, %v2348, 0.0
    %2351 = vadd.xlane.f32.xlu0 %v2350
    %v2352 = vpop.xlane.xlu0 %2351
    %v2353 = vsel %vm95, %v2349, 0.0
    %2354 = vadd.xlane.f32.xlu0 %v2353
    %v2355 = vpop.xlane.xlu0 %2354
    %v2356 = vmul.f32 %v2344, 0.03125
    %v2357 = vmul.f32 %v2347, 0.03125
    %v2358 = vmul.f32 %v2352, 0.03125
    %v2359 = vmul.f32 %v2355, 0.03125
    %v2360 = vmul.f32 %v2356, %v2356
    %v2361 = vmul.f32 %v2357, %v2357
    %v2362 = vsub.f32 %v2358, %v2360
    %v2363 = vsub.f32 %v2359, %v2361
    %v2364 = vsub.f32 %v2336, %v2356
    %v2365 = vsub.f32 %v2337, %v2357
    %v2366 = vadd.f32 %v2362, 1e-05
    %v2367 = vadd.f32 %v2363, 1e-05
    %v2368 = vrsqrt.pop %v2366
    %v2369 = vrsqrt.pop %v2367
    %v2370 = vmul.f32 %v2364, %v2368
    %v2371 = vmul.f32 %v2365, %v2369
    %v2373 = vlaneseq
    %v2374 = vshrl.u32 %v2373, 7
    %v2375 = vsub.s32 0, %v2374
    %v2376 = vrot.slane %v2339, %v2375
    %v2378 = vmul.f32 %v2370, %v2376
    %v2379 = vmul.f32 %v2371, %v2376
    %v2381 = vlaneseq
    %v2382 = vshrl.u32 %v2381, 7
    %v2383 = vsub.s32 0, %v2382
    %v2384 = vrot.slane %v2341, %v2383
    %v2386 = vadd.f32 %v2378, %v2384
    %v2387 = vadd.f32 %v2379, %v2384
    %v2388 = vpack.c.bf16 %v2387, %v2386
    %s2389 = scalar_lea.vmem %s13, 16
    %v2390 = vld [vmem:[%s2389] sm:$0xf]
    %v2391 = vld [vmem:[%s2389 + $0x4] sm:$0xf]
    %v2392 = vld [vmem:[%s2389 + $0x8] sm:$0xf]
    %v2393 = vld [vmem:[%s2389 + $0xc] sm:$0xf]
    %s2394 = scalar_lea.vmem %s14, 1
    %v2395 = vld [vmem:[%s2394] sm:$0x1]
    %v2397 = vlaneseq
    %v2398 = vshrl.u32 %v2397, 7
    %v2399 = vsub.s32 0, %v2398
    %v2400 = vrot.slane %v2395, %v2399
    %v2406 = vunpack.c.l.b16 %v2390
    %v2407 = vunpack.c.l.b16 %v2391
    %v2408 = vunpack.c.l.b16 %v2392
    %v2409 = vunpack.c.l.b16 %v2393
    %v2410 = vpack.c.b16 %v2407, %v2406
    %v2411 = vpack.c.b16 %v2409, %v2408
    %v2415 = vsel %vm95, %v2388, 0
    %2417 = vmatprep.subr.bf16.mxu0 0
    %2418 = vmatpush1.bf16.msra.mxu0 0
    %2419 = vmatprep.subr.bf16.mxu0 0
    %2420 = vmatpush1.bf16.msra.mxu0 0
    %2421 = vmatprep.subr.bf16.mxu0 0
    %2422 = vmatpush1.bf16.msra.mxu0 0
    %2423 = vmatprep.subr.bf16.mxu0 0
    %2424 = vmatpush1.bf16.msra.mxu0 0
    %2425 = vmatprep.subr.bf16.mxu0 0
    %2426 = vmatpush1.bf16.msra.mxu0 0
    %2427 = vmatprep.subr.bf16.mxu0 0
    %2428 = vmatpush1.bf16.msra.mxu0 0
    %2429 = vmatprep.subr.bf16.mxu0 0
    %2430 = vmatpush1.bf16.msra.mxu0 %v2411
    %2431 = vmatprep.subr.bf16.mxu0 0
    %2432 = vmatpush1.bf16.msra.mxu0 %v2410
    %2433 = vmatprep.subr.bf16.mxu0 0
    %2434 = vmatpush2.bf16.msra.mxu0 0
    %2435 = vmatprep.subr.bf16.mxu0 0
    %2436 = vmatpush2.bf16.msra.mxu0 0
    %2437 = vmatprep.subr.bf16.mxu0 0
    %2438 = vmatpush2.bf16.msra.mxu0 0
    %2439 = vmatprep.subr.bf16.mxu0 0
    %2440 = vmatpush2.bf16.msra.mxu0 0
    %2441 = vmatprep.subr.bf16.mxu0 0
    %2442 = vmatpush2.bf16.msra.mxu0 0
    %2443 = vmatprep.subr.bf16.mxu0 0
    %2444 = vmatpush2.bf16.msra.mxu0 0
    %2445 = vmatprep.subr.bf16.mxu0 0
    %2446 = vmatpush2.bf16.msra.mxu0 0
    %2447 = vmatprep.subr.bf16.mxu0 0
    %2448 = vmatpush2.bf16.msra.mxu0 0
    %2449 = vmatprep.mubr.bf16.mxu0 0
    %2450 = vmatmul.mubr.bf16.gmra.mxu0 %v2415
    %v2451 = vpop.f32.mrf.mxu0
    %v2452 = vadd.f32 %v2400, %v2451
    %v2453 = vpop.f32.mrf.mxu0
    %v2454 = vpop.f32.mrf.mxu0
    %v2455 = vadd.f32 %v2400, %v2454
    %v2456 = vpop.f32.mrf.mxu0
    %2457 = vdwg.mxu0
    %v2458 = vmul.f32 %v2452, 0.5
    %v2459 = vmul.f32 %v2455, 0.5
    %v2460 = vmul.f32 %v2452, 0.044715
    %v2461 = vmul.f32 %v2455, 0.044715
    %v2462 = vmul.f32 %v2460, %v2452
    %v2463 = vmul.f32 %v2461, %v2455
    %v2464 = vmul.f32 %v2462, %v2452
    %v2465 = vmul.f32 %v2463, %v2455
    %v2466 = vadd.f32 %v2452, %v2464
    %v2467 = vadd.f32 %v2455, %v2465
    %v2468 = vmul.f32 %v2466, 0.7978846
    %v2469 = vmul.f32 %v2467, 0.7978846
    %v2470 = vtanh.pop %v2468
    %v2471 = vtanh.pop %v2469
    %v2472 = vadd.f32 %v2470, 1.0
    %v2473 = vadd.f32 %v2471, 1.0
    %v2474 = vmul.f32 %v2458, %v2472
    %v2475 = vmul.f32 %v2459, %v2473
    %v2476 = vpack.c.bf16 %v2475, %v2474
    %s2477 = scalar_lea.vmem %s15, 64
    %v2478 = vld [vmem:[%s2477] sm:$0xf]
    %v2479 = vld [vmem:[%s2477 + $0x4] sm:$0xf]
    %v2480 = vld [vmem:[%s2477 + $0x8] sm:$0xf]
    %v2481 = vld [vmem:[%s2477 + $0xc] sm:$0xf]
    %v2482 = vld [vmem:[%s2477 + $0x10] sm:$0xf]
    %v2483 = vld [vmem:[%s2477 + $0x14] sm:$0xf]
    %v2484 = vld [vmem:[%s2477 + $0x18] sm:$0xf]
    %v2485 = vld [vmem:[%s2477 + $0x1c] sm:$0xf]
    %v2486 = vld [vmem:[%s2477 + $0x20] sm:$0xf]
    %v2487 = vld [vmem:[%s2477 + $0x24] sm:$0xf]
    %v2488 = vld [vmem:[%s2477 + $0x28] sm:$0xf]
    %v2489 = vld [vmem:[%s2477 + $0x2c] sm:$0xf]
    %v2490 = vld [vmem:[%s2477 + $0x30] sm:$0xf]
    %v2491 = vld [vmem:[%s2477 + $0x34] sm:$0xf]
    %v2492 = vld [vmem:[%s2477 + $0x38] sm:$0xf]
    %v2493 = vld [vmem:[%s2477 + $0x3c] sm:$0xf]
    %s2494 = scalar_lea.vmem %s16, 1
    %v2495 = vld [vmem:[%s2494] sm:$0x1]
    %v2497 = vlaneseq
    %v2498 = vshrl.u32 %v2497, 7
    %v2499 = vsub.s32 0, %v2498
    %v2500 = vrot.slane %v2495, %v2499
    %v2518 = vunpack.c.l.b16 %v2478
    %v2519 = vunpack.c.l.b16 %v2479
    %v2520 = vunpack.c.l.b16 %v2480
    %v2521 = vunpack.c.l.b16 %v2481
    %v2522 = vunpack.c.l.b16 %v2482
    %v2523 = vunpack.c.l.b16 %v2483
    %v2524 = vunpack.c.l.b16 %v2484
    %v2525 = vunpack.c.l.b16 %v2485
    %v2526 = vunpack.c.l.b16 %v2486
    %v2527 = vunpack.c.l.b16 %v2487
    %v2528 = vunpack.c.l.b16 %v2488
    %v2529 = vunpack.c.l.b16 %v2489
    %v2530 = vunpack.c.l.b16 %v2490
    %v2531 = vunpack.c.l.b16 %v2491
    %v2532 = vunpack.c.l.b16 %v2492
    %v2533 = vunpack.c.l.b16 %v2493
    %v2534 = vpack.c.b16 %v2519, %v2518
    %v2535 = vpack.c.b16 %v2521, %v2520
    %v2536 = vpack.c.b16 %v2523, %v2522
    %v2537 = vpack.c.b16 %v2525, %v2524
    %v2538 = vpack.c.b16 %v2527, %v2526
    %v2539 = vpack.c.b16 %v2529, %v2528
    %v2540 = vpack.c.b16 %v2531, %v2530
    %v2541 = vpack.c.b16 %v2533, %v2532
    %2550 = vmatprep.subr.bf16.mxu0 0
    %2551 = vmatpush1.bf16.msra.mxu0 %v2541
    %2552 = vmatprep.subr.bf16.mxu0 0
    %2553 = vmatpush1.bf16.msra.mxu0 %v2540
    %2554 = vmatprep.subr.bf16.mxu0 0
    %2555 = vmatpush1.bf16.msra.mxu0 %v2539
    %2556 = vmatprep.subr.bf16.mxu0 0
    %2557 = vmatpush1.bf16.msra.mxu0 %v2538
    %2558 = vmatprep.subr.bf16.mxu0 0
    %2559 = vmatpush1.bf16.msra.mxu0 %v2537
    %2560 = vmatprep.subr.bf16.mxu0 0
    %2561 = vmatpush1.bf16.msra.mxu0 %v2536
    %2562 = vmatprep.subr.bf16.mxu0 0
    %2563 = vmatpush1.bf16.msra.mxu0 %v2535
    %2564 = vmatprep.subr.bf16.mxu0 0
    %2565 = vmatpush1.bf16.msra.mxu0 %v2534
    %2566 = vmatprep.subr.bf16.mxu0 0
    %2567 = vmatpush2.bf16.msra.mxu0 0
    %2568 = vmatprep.subr.bf16.mxu0 0
    %2569 = vmatpush2.bf16.msra.mxu0 0
    %2570 = vmatprep.subr.bf16.mxu0 0
    %2571 = vmatpush2.bf16.msra.mxu0 0
    %2572 = vmatprep.subr.bf16.mxu0 0
    %2573 = vmatpush2.bf16.msra.mxu0 0
    %2574 = vmatprep.subr.bf16.mxu0 0
    %2575 = vmatpush2.bf16.msra.mxu0 0
    %2576 = vmatprep.subr.bf16.mxu0 0
    %2577 = vmatpush2.bf16.msra.mxu0 0
    %2578 = vmatprep.subr.bf16.mxu0 0
    %2579 = vmatpush2.bf16.msra.mxu0 0
    %2580 = vmatprep.subr.bf16.mxu0 0
    %2581 = vmatpush2.bf16.msra.mxu0 0
    %2582 = vmatprep.mubr.bf16.mxu0 0
    %2583 = vmatmul.mubr.bf16.gmra.mxu0 %v2476
    %v2584 = vpop.f32.mrf.mxu0
    %v2585 = vadd.f32 %v2500, %v2584
    %v2586 = vpop.f32.mrf.mxu0
    %v2587 = vpop.f32.mrf.mxu0
    %v2588 = vadd.f32 %v2500, %v2587
    %v2589 = vpop.f32.mrf.mxu0
    %2590 = vdwg.mxu0
    %v2591 = vadd.f32 %v2585, %v2386
    %v2592 = vadd.f32 %v2588, %v2387
    %s2593 = scalar_lea.vmem %s17, 1
    %v2594 = vld [vmem:[%s2593] sm:$0x1]
    %s2595 = scalar_lea.vmem %s18, 1
    %v2596 = vld [vmem:[%s2595] sm:$0x1]
    %v2597 = vsel %vm95, %v2591, 0.0
    %2598 = vadd.xlane.f32.xlu0 %v2597
    %v2599 = vpop.xlane.xlu0 %2598
    %v2600 = vsel %vm95, %v2592, 0.0
    %2601 = vadd.xlane.f32.xlu0 %v2600
    %v2602 = vpop.xlane.xlu0 %2601
    %v2603 = vmul.f32 %v2591, %v2591
    %v2604 = vmul.f32 %v2592, %v2592
    %v2605 = vsel %vm95, %v2603, 0.0
    %2606 = vadd.xlane.f32.xlu0 %v2605
    %v2607 = vpop.xlane.xlu0 %2606
    %v2608 = vsel %vm95, %v2604, 0.0
    %2609 = vadd.xlane.f32.xlu0 %v2608
    %v2610 = vpop.xlane.xlu0 %2609
    %v2611 = vmul.f32 %v2599, 0.03125
    %v2612 = vmul.f32 %v2602, 0.03125
    %v2613 = vmul.f32 %v2607, 0.03125
    %v2614 = vmul.f32 %v2610, 0.03125
    %v2615 = vmul.f32 %v2611, %v2611
    %v2616 = vmul.f32 %v2612, %v2612
    %v2617 = vsub.f32 %v2613, %v2615
    %v2618 = vsub.f32 %v2614, %v2616
    %v2619 = vsub.f32 %v2591, %v2611
    %v2620 = vsub.f32 %v2592, %v2612
    %v2621 = vadd.f32 %v2617, 1e-05
    %v2622 = vadd.f32 %v2618, 1e-05
    %v2623 = vrsqrt.pop %v2621
    %v2624 = vrsqrt.pop %v2622
    %v2625 = vmul.f32 %v2619, %v2623
    %v2626 = vmul.f32 %v2620, %v2624
    %v2628 = vlaneseq
    %v2629 = vshrl.u32 %v2628, 7
    %v2630 = vsub.s32 0, %v2629
    %v2631 = vrot.slane %v2594, %v2630
    %v2633 = vmul.f32 %v2625, %v2631
    %v2634 = vmul.f32 %v2626, %v2631
    %v2636 = vlaneseq
    %v2637 = vshrl.u32 %v2636, 7
    %v2638 = vsub.s32 0, %v2637
    %v2639 = vrot.slane %v2596, %v2638
    %v2641 = vadd.f32 %v2633, %v2639
    %v2642 = vadd.f32 %v2634, %v2639
    %v2643 = vld [vmem:[%s19] sm:$0x3f]
    %v2645 = vsel %vm344, %v2643, 0
    %2647 = vmatprep.subr.mxu0 0.0
    %2648 = vmatpush1.msra.mxu0 0.0
    %2649 = vmatprep.subr.mxu0 0.0
    %2650 = vmatpush1.msra.mxu0 0.0
    %2651 = vmatprep.subr.mxu0 0.0
    %2652 = vmatpush1.msra.mxu0 0.0
    %2653 = vmatprep.subr.mxu0 0.0
    %2654 = vmatpush1.msra.mxu0 0.0
    %2655 = vmatprep.subr.mxu0 0.0
    %2656 = vmatpush1.msra.mxu0 0.0
    %2657 = vmatprep.subr.mxu0 0.0
    %2658 = vmatpush1.msra.mxu0 0.0
    %2659 = vmatprep.subr.mxu0 0.0
    %2660 = vmatpush1.msra.mxu0 0.0
    %2661 = vmatprep.subr.mxu0 0.0
    %2662 = vmatpush1.msra.mxu0 0.0
    %2663 = vmatprep.subr.mxu0 0.0
    %2664 = vmatpush1.msra.mxu0 0.0
    %2665 = vmatprep.subr.mxu0 0.0
    %2666 = vmatpush1.msra.mxu0 0.0
    %2667 = vmatprep.subr.mxu0 0.0
    %2668 = vmatpush1.msra.mxu0 0.0
    %2669 = vmatprep.subr.mxu0 0.0
    %2670 = vmatpush1.msra.mxu0 0.0
    %2671 = vmatprep.subr.mxu0 0.0
    %2672 = vmatpush1.msra.mxu0 0.0
    %2673 = vmatprep.subr.mxu0 0.0
    %2674 = vmatpush1.msra.mxu0 0.0
    %2675 = vmatprep.subr.mxu0 0.0
    %2676 = vmatpush1.msra.mxu0 %v2642
    %2677 = vmatprep.subr.mxu0 0.0
    %2678 = vmatpush1.msra.mxu0 %v2641
    %2679 = vmatprep.subr.mxu0 0.0
    %2680 = vmatpush2.msra.mxu0 0.0
    %2681 = vmatprep.subr.mxu0 0.0
    %2682 = vmatpush2.msra.mxu0 0.0
    %2683 = vmatprep.subr.mxu0 0.0
    %2684 = vmatpush2.msra.mxu0 0.0
    %2685 = vmatprep.subr.mxu0 0.0
    %2686 = vmatpush2.msra.mxu0 0.0
    %2687 = vmatprep.subr.mxu0 0.0
    %2688 = vmatpush2.msra.mxu0 0.0
    %2689 = vmatprep.subr.mxu0 0.0
    %2690 = vmatpush2.msra.mxu0 0.0
    %2691 = vmatprep.subr.mxu0 0.0
    %2692 = vmatpush2.msra.mxu0 0.0
    %2693 = vmatprep.subr.mxu0 0.0
    %2694 = vmatpush2.msra.mxu0 0.0
    %2695 = vmatprep.subr.mxu0 0.0
    %2696 = vmatpush2.msra.mxu0 0.0
    %2697 = vmatprep.subr.mxu0 0.0
    %2698 = vmatpush2.msra.mxu0 0.0
    %2699 = vmatprep.subr.mxu0 0.0
    %2700 = vmatpush2.msra.mxu0 0.0
    %2701 = vmatprep.subr.mxu0 0.0
    %2702 = vmatpush2.msra.mxu0 0.0
    %2703 = vmatprep.subr.mxu0 0.0
    %2704 = vmatpush2.msra.mxu0 0.0
    %2705 = vmatprep.subr.mxu0 0.0
    %2706 = vmatpush2.msra.mxu0 0.0
    %2707 = vmatprep.subr.mxu0 0.0
    %2708 = vmatpush2.msra.mxu0 0.0
    %2709 = vmatprep.subr.mxu0 0.0
    %2710 = vmatpush2.msra.mxu0 0.0
    %2711 = vmatprep.mubr.f32.mxu0 0.0
    %2712 = vmatmul.mubr.f32.gmra.mxu0 %v2645
    %v2713 = vpop.f32.mrf.mxu0
    %v2714 = vadd.f32 0.0, %v2713
    %v2715 = vpop.f32.mrf.mxu0
    %2716 = vdwg.mxu0
    %v2717 = vld [vmem:[%s20] sm:$0xf]
    %v2719 = vsel %vm344, %v2717, 0
    %2721 = vmatprep.subr.mxu0 0.0
    %2722 = vmatpush1.msra.mxu0 0.0
    %2723 = vmatprep.subr.mxu0 0.0
    %2724 = vmatpush1.msra.mxu0 0.0
    %2725 = vmatprep.subr.mxu0 0.0
    %2726 = vmatpush1.msra.mxu0 0.0
    %2727 = vmatprep.subr.mxu0 0.0
    %2728 = vmatpush1.msra.mxu0 0.0
    %2729 = vmatprep.subr.mxu0 0.0
    %2730 = vmatpush1.msra.mxu0 0.0
    %2731 = vmatprep.subr.mxu0 0.0
    %2732 = vmatpush1.msra.mxu0 0.0
    %2733 = vmatprep.subr.mxu0 0.0
    %2734 = vmatpush1.msra.mxu0 0.0
    %2735 = vmatprep.subr.mxu0 0.0
    %2736 = vmatpush1.msra.mxu0 0.0
    %2737 = vmatprep.subr.mxu0 0.0
    %2738 = vmatpush1.msra.mxu0 0.0
    %2739 = vmatprep.subr.mxu0 0.0
    %2740 = vmatpush1.msra.mxu0 0.0
    %2741 = vmatprep.subr.mxu0 0.0
    %2742 = vmatpush1.msra.mxu0 0.0
    %2743 = vmatprep.subr.mxu0 0.0
    %2744 = vmatpush1.msra.mxu0 0.0
    %2745 = vmatprep.subr.mxu0 0.0
    %2746 = vmatpush1.msra.mxu0 0.0
    %2747 = vmatprep.subr.mxu0 0.0
    %2748 = vmatpush1.msra.mxu0 0.0
    %2749 = vmatprep.subr.mxu0 0.0
    %2750 = vmatpush1.msra.mxu0 %v2642
    %2751 = vmatprep.subr.mxu0 0.0
    %2752 = vmatpush1.msra.mxu0 %v2641
    %2753 = vmatprep.subr.mxu0 0.0
    %2754 = vmatpush2.msra.mxu0 0.0
    %2755 = vmatprep.subr.mxu0 0.0
    %2756 = vmatpush2.msra.mxu0 0.0
    %2757 = vmatprep.subr.mxu0 0.0
    %2758 = vmatpush2.msra.mxu0 0.0
    %2759 = vmatprep.subr.mxu0 0.0
    %2760 = vmatpush2.msra.mxu0 0.0
    %2761 = vmatprep.subr.mxu0 0.0
    %2762 = vmatpush2.msra.mxu0 0.0
    %2763 = vmatprep.subr.mxu0 0.0
    %2764 = vmatpush2.msra.mxu0 0.0
    %2765 = vmatprep.subr.mxu0 0.0
    %2766 = vmatpush2.msra.mxu0 0.0
    %2767 = vmatprep.subr.mxu0 0.0
    %2768 = vmatpush2.msra.mxu0 0.0
    %2769 = vmatprep.subr.mxu0 0.0
    %2770 = vmatpush2.msra.mxu0 0.0
    %2771 = vmatprep.subr.mxu0 0.0
    %2772 = vmatpush2.msra.mxu0 0.0
    %2773 = vmatprep.subr.mxu0 0.0
    %2774 = vmatpush2.msra.mxu0 0.0
    %2775 = vmatprep.subr.mxu0 0.0
    %2776 = vmatpush2.msra.mxu0 0.0
    %2777 = vmatprep.subr.mxu0 0.0
    %2778 = vmatpush2.msra.mxu0 0.0
    %2779 = vmatprep.subr.mxu0 0.0
    %2780 = vmatpush2.msra.mxu0 0.0
    %2781 = vmatprep.subr.mxu0 0.0
    %2782 = vmatpush2.msra.mxu0 0.0
    %2783 = vmatprep.subr.mxu0 0.0
    %2784 = vmatpush2.msra.mxu0 0.0
    %2785 = vmatprep.mubr.f32.mxu0 0.0
    %2786 = vmatmul.mubr.f32.gmra.mxu0 %v2719
    %v2787 = vpop.f32.mrf.mxu0
    %v2788 = vadd.f32 0.0, %v2787
    %v2789 = vpop.f32.mrf.mxu0
    %2790 = vdwg.mxu0
    %v2791 = vld [vmem:[%s21] sm:$0xf]
    %v2793 = vsel %vm344, %v2791, 0
    %2795 = vmatprep.subr.mxu0 0.0
    %2796 = vmatpush1.msra.mxu0 0.0
    %2797 = vmatprep.subr.mxu0 0.0
    %2798 = vmatpush1.msra.mxu0 0.0
    %2799 = vmatprep.subr.mxu0 0.0
    %2800 = vmatpush1.msra.mxu0 0.0
    %2801 = vmatprep.subr.mxu0 0.0
    %2802 = vmatpush1.msra.mxu0 0.0
    %2803 = vmatprep.subr.mxu0 0.0
    %2804 = vmatpush1.msra.mxu0 0.0
    %2805 = vmatprep.subr.mxu0 0.0
    %2806 = vmatpush1.msra.mxu0 0.0
    %2807 = vmatprep.subr.mxu0 0.0
    %2808 = vmatpush1.msra.mxu0 0.0
    %2809 = vmatprep.subr.mxu0 0.0
    %2810 = vmatpush1.msra.mxu0 0.0
    %2811 = vmatprep.subr.mxu0 0.0
    %2812 = vmatpush1.msra.mxu0 0.0
    %2813 = vmatprep.subr.mxu0 0.0
    %2814 = vmatpush1.msra.mxu0 0.0
    %2815 = vmatprep.subr.mxu0 0.0
    %2816 = vmatpush1.msra.mxu0 0.0
    %2817 = vmatprep.subr.mxu0 0.0
    %2818 = vmatpush1.msra.mxu0 0.0
    %2819 = vmatprep.subr.mxu0 0.0
    %2820 = vmatpush1.msra.mxu0 0.0
    %2821 = vmatprep.subr.mxu0 0.0
    %2822 = vmatpush1.msra.mxu0 0.0
    %2823 = vmatprep.subr.mxu0 0.0
    %2824 = vmatpush1.msra.mxu0 %v2642
    %2825 = vmatprep.subr.mxu0 0.0
    %2826 = vmatpush1.msra.mxu0 %v2641
    %2827 = vmatprep.subr.mxu0 0.0
    %2828 = vmatpush2.msra.mxu0 0.0
    %2829 = vmatprep.subr.mxu0 0.0
    %2830 = vmatpush2.msra.mxu0 0.0
    %2831 = vmatprep.subr.mxu0 0.0
    %2832 = vmatpush2.msra.mxu0 0.0
    %2833 = vmatprep.subr.mxu0 0.0
    %2834 = vmatpush2.msra.mxu0 0.0
    %2835 = vmatprep.subr.mxu0 0.0
    %2836 = vmatpush2.msra.mxu0 0.0
    %2837 = vmatprep.subr.mxu0 0.0
    %2838 = vmatpush2.msra.mxu0 0.0
    %2839 = vmatprep.subr.mxu0 0.0
    %2840 = vmatpush2.msra.mxu0 0.0
    %2841 = vmatprep.subr.mxu0 0.0
    %2842 = vmatpush2.msra.mxu0 0.0
    %2843 = vmatprep.subr.mxu0 0.0
    %2844 = vmatpush2.msra.mxu0 0.0
    %2845 = vmatprep.subr.mxu0 0.0
    %2846 = vmatpush2.msra.mxu0 0.0
    %2847 = vmatprep.subr.mxu0 0.0
    %2848 = vmatpush2.msra.mxu0 0.0
    %2849 = vmatprep.subr.mxu0 0.0
    %2850 = vmatpush2.msra.mxu0 0.0
    %2851 = vmatprep.subr.mxu0 0.0
    %2852 = vmatpush2.msra.mxu0 0.0
    %2853 = vmatprep.subr.mxu0 0.0
    %2854 = vmatpush2.msra.mxu0 0.0
    %2855 = vmatprep.subr.mxu0 0.0
    %2856 = vmatpush2.msra.mxu0 0.0
    %2857 = vmatprep.subr.mxu0 0.0
    %2858 = vmatpush2.msra.mxu0 0.0
    %2859 = vmatprep.mubr.f32.mxu0 0.0
    %2860 = vmatmul.mubr.f32.gmra.mxu0 %v2793
    %v2861 = vpop.f32.mrf.mxu0
    %v2862 = vadd.f32 0.0, %v2861
    %v2863 = vpop.f32.mrf.mxu0
    %2864 = vdwg.mxu0
    %v2865 = vld [vmem:[%s22] sm:$0xff]
    %v2866 = vld [vmem:[%s22 + $0x8] sm:$0xff]
    %v2867 = vld [vmem:[%s22 + $0x10] sm:$0xff]
    %v2868 = vld [vmem:[%s22 + $0x18] sm:$0xff]
    %v2869 = vld [vmem:[%s23] sm:$0x1]
    %v2871 = vlaneseq
    %v2872 = vshrl.u32 %v2871, 7
    %v2873 = vsub.s32 0, %v2872
    %v2874 = vrot.slane %v2869, %v2873
    %v2877 = vsel %vm95, %v2714, 0
    %2879 = vmatprep.subr.mxu0 0.0
    %2880 = vmatpush1.msra.mxu0 0.0
    %2881 = vmatprep.subr.mxu0 0.0
    %2882 = vmatpush1.msra.mxu0 0.0
    %2883 = vmatprep.subr.mxu0 0.0
    %2884 = vmatpush1.msra.mxu0 0.0
    %2885 = vmatprep.subr.mxu0 0.0
    %2886 = vmatpush1.msra.mxu0 0.0
    %2887 = vmatprep.subr.mxu0 0.0
    %2888 = vmatpush1.msra.mxu0 0.0
    %2889 = vmatprep.subr.mxu0 0.0
    %2890 = vmatpush1.msra.mxu0 0.0
    %2891 = vmatprep.subr.mxu0 0.0
    %2892 = vmatpush1.msra.mxu0 0.0
    %2893 = vmatprep.subr.mxu0 0.0
    %2894 = vmatpush1.msra.mxu0 0.0
    %2895 = vmatprep.subr.mxu0 0.0
    %2896 = vmatpush1.msra.mxu0 0.0
    %2897 = vmatprep.subr.mxu0 0.0
    %2898 = vmatpush1.msra.mxu0 0.0
    %2899 = vmatprep.subr.mxu0 0.0
    %2900 = vmatpush1.msra.mxu0 0.0
    %2901 = vmatprep.subr.mxu0 0.0
    %2902 = vmatpush1.msra.mxu0 0.0
    %2903 = vmatprep.subr.mxu0 0.0
    %2904 = vmatpush1.msra.mxu0 %v2868
    %2905 = vmatprep.subr.mxu0 0.0
    %2906 = vmatpush1.msra.mxu0 %v2867
    %2907 = vmatprep.subr.mxu0 0.0
    %2908 = vmatpush1.msra.mxu0 %v2866
    %2909 = vmatprep.subr.mxu0 0.0
    %2910 = vmatpush1.msra.mxu0 %v2865
    %2911 = vmatprep.subr.mxu0 0.0
    %2912 = vmatpush2.msra.mxu0 0.0
    %2913 = vmatprep.subr.mxu0 0.0
    %2914 = vmatpush2.msra.mxu0 0.0
    %2915 = vmatprep.subr.mxu0 0.0
    %2916 = vmatpush2.msra.mxu0 0.0
    %2917 = vmatprep.subr.mxu0 0.0
    %2918 = vmatpush2.msra.mxu0 0.0
    %2919 = vmatprep.subr.mxu0 0.0
    %2920 = vmatpush2.msra.mxu0 0.0
    %2921 = vmatprep.subr.mxu0 0.0
    %2922 = vmatpush2.msra.mxu0 0.0
    %2923 = vmatprep.subr.mxu0 0.0
    %2924 = vmatpush2.msra.mxu0 0.0
    %2925 = vmatprep.subr.mxu0 0.0
    %2926 = vmatpush2.msra.mxu0 0.0
    %2927 = vmatprep.subr.mxu0 0.0
    %2928 = vmatpush2.msra.mxu0 0.0
    %2929 = vmatprep.subr.mxu0 0.0
    %2930 = vmatpush2.msra.mxu0 0.0
    %2931 = vmatprep.subr.mxu0 0.0
    %2932 = vmatpush2.msra.mxu0 0.0
    %2933 = vmatprep.subr.mxu0 0.0
    %2934 = vmatpush2.msra.mxu0 0.0
    %2935 = vmatprep.subr.mxu0 0.0
    %2936 = vmatpush2.msra.mxu0 0.0
    %2937 = vmatprep.subr.mxu0 0.0
    %2938 = vmatpush2.msra.mxu0 0.0
    %2939 = vmatprep.subr.mxu0 0.0
    %2940 = vmatpush2.msra.mxu0 0.0
    %2941 = vmatprep.subr.mxu0 0.0
    %2942 = vmatpush2.msra.mxu0 0.0
    %2943 = vmatprep.mubr.f32.mxu0 0.0
    %2944 = vmatmul.mubr.f32.gmra.mxu0 %v2877
    %v2945 = vpop.f32.mrf.mxu0
    %v2946 = vadd.f32 %v2874, %v2945
    %v2947 = vpop.f32.mrf.mxu0
    %2948 = vdwg.mxu0
    %v2949 = vld [vmem:[%s24] sm:$0xff]
    %v2950 = vld [vmem:[%s24 + $0x8] sm:$0xff]
    %v2951 = vld [vmem:[%s24 + $0x10] sm:$0xff]
    %v2952 = vld [vmem:[%s24 + $0x18] sm:$0xff]
    %v2953 = vld [vmem:[%s25] sm:$0xff]
    %v2954 = vld [vmem:[%s25 + $0x8] sm:$0xff]
    %v2955 = vld [vmem:[%s25 + $0x10] sm:$0xff]
    %v2956 = vld [vmem:[%s25 + $0x18] sm:$0xff]
    %v2958 = vsel %vm95, %v2862, 0
    %2960 = vmatprep.subr.mxu0 0.0
    %2961 = vmatpush1.msra.mxu0 0.0
    %2962 = vmatprep.subr.mxu0 0.0
    %2963 = vmatpush1.msra.mxu0 0.0
    %2964 = vmatprep.subr.mxu0 0.0
    %2965 = vmatpush1.msra.mxu0 0.0
    %2966 = vmatprep.subr.mxu0 0.0
    %2967 = vmatpush1.msra.mxu0 0.0
    %2968 = vmatprep.subr.mxu0 0.0
    %2969 = vmatpush1.msra.mxu0 0.0
    %2970 = vmatprep.subr.mxu0 0.0
    %2971 = vmatpush1.msra.mxu0 0.0
    %2972 = vmatprep.subr.mxu0 0.0
    %2973 = vmatpush1.msra.mxu0 0.0
    %2974 = vmatprep.subr.mxu0 0.0
    %2975 = vmatpush1.msra.mxu0 0.0
    %2976 = vmatprep.subr.mxu0 0.0
    %2977 = vmatpush1.msra.mxu0 0.0
    %2978 = vmatprep.subr.mxu0 0.0
    %2979 = vmatpush1.msra.mxu0 0.0
    %2980 = vmatprep.subr.mxu0 0.0
    %2981 = vmatpush1.msra.mxu0 0.0
    %2982 = vmatprep.subr.mxu0 0.0
    %2983 = vmatpush1.msra.mxu0 0.0
    %2984 = vmatprep.subr.mxu0 0.0
    %2985 = vmatpush1.msra.mxu0 %v2956
    %2986 = vmatprep.subr.mxu0 0.0
    %2987 = vmatpush1.msra.mxu0 %v2955
    %2988 = vmatprep.subr.mxu0 0.0
    %2989 = vmatpush1.msra.mxu0 %v2954
    %2990 = vmatprep.subr.mxu0 0.0
    %2991 = vmatpush1.msra.mxu0 %v2953
    %2992 = vmatprep.subr.mxu0 0.0
    %2993 = vmatpush2.msra.mxu0 0.0
    %2994 = vmatprep.subr.mxu0 0.0
    %2995 = vmatpush2.msra.mxu0 0.0
    %2996 = vmatprep.subr.mxu0 0.0
    %2997 = vmatpush2.msra.mxu0 0.0
    %2998 = vmatprep.subr.mxu0 0.0
    %2999 = vmatpush2.msra.mxu0 0.0
    %3000 = vmatprep.subr.mxu0 0.0
    %3001 = vmatpush2.msra.mxu0 0.0
    %3002 = vmatprep.subr.mxu0 0.0
    %3003 = vmatpush2.msra.mxu0 0.0
    %3004 = vmatprep.subr.mxu0 0.0
    %3005 = vmatpush2.msra.mxu0 0.0
    %3006 = vmatprep.subr.mxu0 0.0
    %3007 = vmatpush2.msra.mxu0 0.0
    %3008 = vmatprep.subr.mxu0 0.0
    %3009 = vmatpush2.msra.mxu0 0.0
    %3010 = vmatprep.subr.mxu0 0.0
    %3011 = vmatpush2.msra.mxu0 0.0
    %3012 = vmatprep.subr.mxu0 0.0
    %3013 = vmatpush2.msra.mxu0 0.0
    %3014 = vmatprep.subr.mxu0 0.0
    %3015 = vmatpush2.msra.mxu0 0.0
    %3016 = vmatprep.subr.mxu0 0.0
    %3017 = vmatpush2.msra.mxu0 0.0
    %3018 = vmatprep.subr.mxu0 0.0
    %3019 = vmatpush2.msra.mxu0 0.0
    %3020 = vmatprep.subr.mxu0 0.0
    %3021 = vmatpush2.msra.mxu0 0.0
    %3022 = vmatprep.subr.mxu0 0.0
    %3023 = vmatpush2.msra.mxu0 0.0
    %3024 = vmatprep.mubr.f32.mxu0 0.0
    %3025 = vmatmul.mubr.f32.gmra.mxu0 %v2958
    %v3026 = vpop.f32.mrf.mxu0
    %v3027 = vadd.f32 0.0, %v3026
    %v3028 = vpop.f32.mrf.mxu0
    %3029 = vdwg.mxu0
    %v3031 = vsel %vm95, %v2788, 0
    %3033 = vmatprep.subr.mxu0 0.0
    %3034 = vmatpush1.msra.mxu0 0.0
    %3035 = vmatprep.subr.mxu0 0.0
    %3036 = vmatpush1.msra.mxu0 0.0
    %3037 = vmatprep.subr.mxu0 0.0
    %3038 = vmatpush1.msra.mxu0 0.0
    %3039 = vmatprep.subr.mxu0 0.0
    %3040 = vmatpush1.msra.mxu0 0.0
    %3041 = vmatprep.subr.mxu0 0.0
    %3042 = vmatpush1.msra.mxu0 0.0
    %3043 = vmatprep.subr.mxu0 0.0
    %3044 = vmatpush1.msra.mxu0 0.0
    %3045 = vmatprep.subr.mxu0 0.0
    %3046 = vmatpush1.msra.mxu0 0.0
    %3047 = vmatprep.subr.mxu0 0.0
    %3048 = vmatpush1.msra.mxu0 0.0
    %3049 = vmatprep.subr.mxu0 0.0
    %3050 = vmatpush1.msra.mxu0 0.0
    %3051 = vmatprep.subr.mxu0 0.0
    %3052 = vmatpush1.msra.mxu0 0.0
    %3053 = vmatprep.subr.mxu0 0.0
    %3054 = vmatpush1.msra.mxu0 0.0
    %3055 = vmatprep.subr.mxu0 0.0
    %3056 = vmatpush1.msra.mxu0 0.0
    %3057 = vmatprep.subr.mxu0 0.0
    %3058 = vmatpush1.msra.mxu0 %v2952
    %3059 = vmatprep.subr.mxu0 0.0
    %3060 = vmatpush1.msra.mxu0 %v2951
    %3061 = vmatprep.subr.mxu0 0.0
    %3062 = vmatpush1.msra.mxu0 %v2950
    %3063 = vmatprep.subr.mxu0 0.0
    %3064 = vmatpush1.msra.mxu0 %v2949
    %3065 = vmatprep.subr.mxu0 0.0
    %3066 = vmatpush2.msra.mxu0 0.0
    %3067 = vmatprep.subr.mxu0 0.0
    %3068 = vmatpush2.msra.mxu0 0.0
    %3069 = vmatprep.subr.mxu0 0.0
    %3070 = vmatpush2.msra.mxu0 0.0
    %3071 = vmatprep.subr.mxu0 0.0
    %3072 = vmatpush2.msra.mxu0 0.0
    %3073 = vmatprep.subr.mxu0 0.0
    %3074 = vmatpush2.msra.mxu0 0.0
    %3075 = vmatprep.subr.mxu0 0.0
    %3076 = vmatpush2.msra.mxu0 0.0
    %3077 = vmatprep.subr.mxu0 0.0
    %3078 = vmatpush2.msra.mxu0 0.0
    %3079 = vmatprep.subr.mxu0 0.0
    %3080 = vmatpush2.msra.mxu0 0.0
    %3081 = vmatprep.subr.mxu0 0.0
    %3082 = vmatpush2.msra.mxu0 0.0
    %3083 = vmatprep.subr.mxu0 0.0
    %3084 = vmatpush2.msra.mxu0 0.0
    %3085 = vmatprep.subr.mxu0 0.0
    %3086 = vmatpush2.msra.mxu0 0.0
    %3087 = vmatprep.subr.mxu0 0.0
    %3088 = vmatpush2.msra.mxu0 0.0
    %3089 = vmatprep.subr.mxu0 0.0
    %3090 = vmatpush2.msra.mxu0 0.0
    %3091 = vmatprep.subr.mxu0 0.0
    %3092 = vmatpush2.msra.mxu0 0.0
    %3093 = vmatprep.subr.mxu0 0.0
    %3094 = vmatpush2.msra.mxu0 0.0
    %3095 = vmatprep.subr.mxu0 0.0
    %3096 = vmatpush2.msra.mxu0 0.0
    %3097 = vmatprep.mubr.f32.mxu0 0.0
    %3098 = vmatmul.mubr.f32.gmra.mxu0 %v3031
    %v3099 = vpop.f32.mrf.mxu0
    %v3100 = vadd.f32 %v3027, %v3099
    %v3101 = vpop.f32.mrf.mxu0
    %3102 = vdwg.mxu0
    %v3103 = vld [vmem:[%s26] sm:$0x1]
    %v3105 = vlaneseq
    %v3106 = vshrl.u32 %v3105, 7
    %v3107 = vsub.s32 0, %v3106
    %v3108 = vrot.slane %v3103, %v3107
    %v3110 = vadd.f32 %v3100, %v3108
    %v3111 = vtanh.pop %v2946
    %v3112 = vmul.f32 %v3111, 5.0
    %3113 = vst [vmem:[#allocation2] sm:$0x3f] %v3112
    %v3114 = vtanh.pop %v3110
    %v3115 = vmul.f32 %v3114, 5.0
    %3116 = vst [vmem:[#allocation4] sm:$0xf] %v3115
    // Predicated region
    $region110: #{tpu_custom_call.1} parent=1 // pred_check
      _
    $region111: #{tpu_custom_call.1} parent=1 // pred_check_branch
      %3118 = sbr.rel (0) target = $region113
    $region112: #{tpu_custom_call.1} parent=1 // pred_region
      %s3120 = ssub.s32 128, 128
      %3121 = vsyncadd [#allocation3], %s3120
      %s3123 = sshll.u32 [#allocation2], 4
      %s3124 = int_to_ptr.vmem [resolvable:$true] %s3123
      %3126 = dma.vmem_to_hbm [thread:$0]  %s3124, 128, %s27, [#allocation3]
    $region113: #{tpu_custom_call.1} parent=1 // pred_fallthru
      _
    // Predicated region
    $region114: #{tpu_custom_call.1} parent=1 // pred_check
      _
    $region115: #{tpu_custom_call.1} parent=1 // pred_check_branch
      %3128 = sbr.rel (0) target = $region117
    $region116: #{tpu_custom_call.1} parent=1 // pred_region
      %s3130 = ssub.s32 64, 64
      %3131 = vsyncadd [#allocation5], %s3130
      %s3133 = sshll.u32 [#allocation4], 4
      %s3134 = int_to_ptr.vmem [resolvable:$true] %s3133
      %3136 = dma.vmem_to_hbm [thread:$0]  %s3134, 64, %s28, [#allocation5]
    $region117: #{tpu_custom_call.1} parent=1 // pred_fallthru
      _
    // Predicated region
    $region118: #{tpu_custom_call.1} parent=1 // pred_check
      _
    $region119: #{tpu_custom_call.1} parent=1 // pred_check_branch
      %3138 = sbr.rel (0) target = $region121
    $region120: #{tpu_custom_call.1} parent=1 // pred_region
      %3139 = dma.done [#allocation3], 128
    $region121: #{tpu_custom_call.1} parent=1 // pred_fallthru
      _
    // Predicated region
    $region122: #{tpu_custom_call.1} parent=1 // pred_check
      _
    $region123: #{tpu_custom_call.1} parent=1 // pred_check_branch
      %3141 = sbr.rel (0) target = $region125
    $region124: #{tpu_custom_call.1} parent=1 // pred_region
      %3142 = dma.done [#allocation5], 64
    $region125: #{tpu_custom_call.1} parent=1 // pred_fallthru
      _
    %3143 = vsyncpa [#allocation3], 1
    %3144 = vsyncpa [#allocation5], 1

</llo_original>
